<compile_context>
chip_gen: v7x
topology: tpu7x:2x2x1
jax: 0.10.0
libtpu: 0.0.40
codegen_flags: <defaults>
</compile_context>

<pallas_src>
import functools
import math

import jax
import jax.numpy as jnp
from jax.experimental import pallas as pl
from jax.experimental.pallas import tpu as pltpu


# ----------------------------------------------------------------------------
# Small helpers
# ----------------------------------------------------------------------------

def _joint_mean(t):
    # Mean over the last two axes (seq, feature) per leading batch element, as two
    # sequential single-axis reductions (conservative Mosaic lowering).
    return jnp.mean(jnp.mean(t, axis=-1, keepdims=True), axis=-2, keepdims=True)


def _pick_batch_block(batch, per_sample_bytes, budget_bytes=20 << 20):
    """Largest batch block that divides `batch`, fits the per-step VMEM budget, and
    (when possible) leaves >= 2 grid blocks so v7x's two TensorCores both get work."""
    max_blk = max(1, budget_bytes // max(int(per_sample_bytes), 1))
    divs = [d for d in range(1, batch + 1) if batch % d == 0 and d <= max_blk]
    if not divs:
        return 1
    pref = [d for d in divs if batch // d >= 2]
    return max(pref) if pref else max(divs)


def _vmem_limit(block_bytes):
    # Double-buffered pipeline + intermediates headroom, clamped to sane bounds.
    return int(min(100 << 20, max(32 << 20, 3 * int(block_bytes))))


# ----------------------------------------------------------------------------
# Fused encoder stack kernel: grid = (batch_block, layer); activation in VMEM scratch.
# ----------------------------------------------------------------------------

def _encoder_stack_kernel(x_ref, bias_ref,
                          wqkv_ref, bqkv_ref, wo_ref, bo_ref,
                          w1_ref, b1_ref, w2_ref, b2_ref,
                          lnw_ref, lnb_ref,
                          o_ref, act_ref, *, n_heads, eps=1e-6):
    l = pl.program_id(1)

    @pl.when(l == 0)
    def _():
        # Load this batch block once; it stays VMEM-resident across all layers.
        act_ref[...] = x_ref[...].astype(jnp.float32)

    Bblk, S, D = act_ref.shape
    H = n_heads
    Dh = D // H

    x = act_ref[...]                                     # (Bblk, S, D) f32
    x2d = x.reshape(Bblk * S, D)

    # ---- QKV projection: batch folded into M, bf16 operands, f32 accumulation ----
    wqkv = wqkv_ref[0]                                   # (D, 3D) bf16; 1/sqrt(Dh) pre-folded into Q
    qkv = jnp.dot(x2d.astype(wqkv.dtype), wqkv,
                  preferred_element_type=jnp.float32) + bqkv_ref[0].astype(jnp.float32)
    qkv = qkv.reshape(Bblk, S, 3 * D)

    q = qkv[:, :, 0:D]
    kT = jnp.swapaxes(qkv[:, :, D:2 * D], 1, 2)          # ONE transpose per layer step (not per head)
    v = qkv[:, :, 2 * D:3 * D]

    bias = bias_ref[...].astype(jnp.float32)             # (Bblk, 1, S) additive key-padding bias
    wo = wo_ref[0].astype(jnp.float32)                   # (D, D)

    attn = jnp.zeros((Bblk, S, D), jnp.float32)
    for h in range(H):                                    # unrolled; H is small & static
        qh = q[:, :, h * Dh:(h + 1) * Dh]                 # (Bblk, S, Dh)
        kTh = kT[:, h * Dh:(h + 1) * Dh, :]               # (Bblk, Dh, S)
        vh = v[:, :, h * Dh:(h + 1) * Dh]                 # (Bblk, S, Dh)
        s = jax.lax.dot_general(qh, kTh, (((2,), (1,)), ((0,), (0,))),
                                preferred_element_type=jnp.float32)    # (Bblk, S, S)
        s = s + bias
        m = jnp.max(s, axis=-1, keepdims=True)
        p = jnp.exp(s - m)
        p = p * pl.reciprocal(jnp.sum(p, axis=-1, keepdims=True), approx=True)
        oh = jax.lax.dot_general(p, vh, (((2,), (1,)), ((0,), (0,))),
                                 preferred_element_type=jnp.float32)   # (Bblk, S, Dh)
        # Output projection folded into the head loop: concat_h(oh) @ Wo == sum_h oh @ Wo[h].
        attn = attn + jnp.dot(oh, wo[h * Dh:(h + 1) * Dh, :],
                              preferred_element_type=jnp.float32)
    attn = attn + bo_ref[0].astype(jnp.float32)

    # ---- shared LayerNorm over (S, D) jointly, per sample ----
    lnw = lnw_ref[0].astype(jnp.float32)
    lnb = lnb_ref[0].astype(jnp.float32)

    def ln(t):
        mu = _joint_mean(t)
        var = _joint_mean(jnp.square(t - mu))
        return (t - mu) * jax.lax.rsqrt(var + eps) * lnw + lnb

    x1 = ln(attn + x)                                    # dropout -> identity (eval)

    # ---- feed-forward: batch folded into M, bf16 operands, f32 accumulation ----
    w1 = w1_ref[0]
    h1 = jnp.dot(x1.reshape(Bblk * S, D).astype(w1.dtype), w1,
                 preferred_element_type=jnp.float32) + b1_ref[0].astype(jnp.float32)
    h1 = jnp.maximum(h1, 0.0)
    w2 = w2_ref[0]
    h2 = jnp.dot(h1.astype(w2.dtype), w2,
                 preferred_element_type=jnp.float32) + b2_ref[0].astype(jnp.float32)
    x2 = ln(h2.reshape(Bblk, S, D) + x1)                 # dropout -> identity (eval)

    act_ref[...] = x2

    @pl.when(l == pl.num_programs(1) - 1)
    def _():
        o_ref[...] = x2.astype(o_ref.dtype)


def encoder_stack(x, pad_bias, lp, n_heads):
    """x: (B2, S, D) f32; pad_bias: (B2, 1, S) f32; lp: layer-stacked, pre-transposed bf16 params."""
    B2, S, D = x.shape
    L = lp["wqkv"].shape[0]
    Dff = lp["w1"].shape[2]

    # Rough per-sample VMEM footprint (f32 act scratch + i/o blocks + qkv/score intermediates).
    per_sample = 4 * S * (10 * D + 2 * S)
    Bblk = _pick_batch_block(B2, per_sample)
    nb = B2 // Bblk

    layer_w_bytes = 2 * (D * 3 * D + 3 * D + D * D + D + D * Dff + Dff
                         + Dff * D + D + 2 * S * D)        # bf16 blocks per layer step
    vmem_limit = _vmem_limit(layer_w_bytes + Bblk * per_sample)

    return pl.pallas_call(
        functools.partial(_encoder_stack_kernel, n_heads=n_heads),
        out_shape=jax.ShapeDtypeStruct((B2, S, D), x.dtype),
        grid=(nb, L),
        in_specs=[
            pl.BlockSpec((Bblk, S, D), lambda b, l: (b, 0, 0)),      # x (resident across layers)
            pl.BlockSpec((Bblk, 1, S), lambda b, l: (b, 0, 0)),      # key-padding bias
            pl.BlockSpec((1, D, 3 * D), lambda b, l: (l, 0, 0)),     # Wqkv^T (bf16)
            pl.BlockSpec((1, 1, 3 * D), lambda b, l: (l, 0, 0)),     # bqkv
            pl.BlockSpec((1, D, D), lambda b, l: (l, 0, 0)),         # Wo^T
            pl.BlockSpec((1, 1, D), lambda b, l: (l, 0, 0)),         # bo
            pl.BlockSpec((1, D, Dff), lambda b, l: (l, 0, 0)),       # W1^T
            pl.BlockSpec((1, 1, Dff), lambda b, l: (l, 0, 0)),       # b1
            pl.BlockSpec((1, Dff, D), lambda b, l: (l, 0, 0)),       # W2^T
            pl.BlockSpec((1, 1, D), lambda b, l: (l, 0, 0)),         # b2
            pl.BlockSpec((1, S, D), lambda b, l: (l, 0, 0)),         # LN gamma (bf16, per layer)
            pl.BlockSpec((1, S, D), lambda b, l: (l, 0, 0)),         # LN beta
        ],
        out_specs=pl.BlockSpec((Bblk, S, D), lambda b, l: (b, 0, 0)),
        scratch_shapes=[pltpu.VMEM((Bblk, S, D), jnp.float32)],
        compiler_params=pltpu.CompilerParams(
            dimension_semantics=("parallel", "arbitrary"),
            vmem_limit_bytes=vmem_limit),
    )(x, pad_bias, lp["wqkv"], lp["bqkv"], lp["wo"], lp["bo"],
      lp["w1"], lp["b1"], lp["w2"], lp["b2"], lp["lnw"], lp["lnb"])


# ----------------------------------------------------------------------------
# Fused prediction head kernel: fc1+GELU -> joint LayerNorm -> fc2 -> seq log_softmax.
# ----------------------------------------------------------------------------

def _head_kernel(x_ref, w1_ref, b1_ref, lnw_ref, lnb_ref, w2_ref, b2_ref, o_ref,
                 *, eps=1e-6):
    Bblk, S, D = x_ref.shape
    Vp = w2_ref.shape[1]

    x2d = x_ref[...].astype(jnp.float32).reshape(Bblk * S, D)
    w1 = w1_ref[...]
    h = jnp.dot(x2d.astype(w1.dtype), w1,
                preferred_element_type=jnp.float32) + b1_ref[...].astype(jnp.float32)
    # exact (erf) GELU, matching torch.nn.GELU() default
    h = 0.5 * h * (1.0 + jax.lax.erf(h * (1.0 / math.sqrt(2.0))))
    h3 = h.reshape(Bblk, S, D)
    mu = _joint_mean(h3)
    var = _joint_mean(jnp.square(h3 - mu))
    h3 = (h3 - mu) * jax.lax.rsqrt(var + eps) * lnw_ref[...].astype(jnp.float32) \
        + lnb_ref[...].astype(jnp.float32)

    w2 = w2_ref[...]
    logits = jnp.dot(h3.reshape(Bblk * S, D).astype(w2.dtype), w2,
                     preferred_element_type=jnp.float32) + b2_ref[...].astype(jnp.float32)
    logits = logits.reshape(Bblk, S, Vp)
    # F.log_softmax(..., dim=1): normalize over the SEQUENCE axis.
    m = jnp.max(logits, axis=1, keepdims=True)
    lse = jnp.log(jnp.sum(jnp.exp(logits - m), axis=1, keepdims=True)) + m
    o_ref[...] = (logits - lse).astype(o_ref.dtype)


def head_forward(enc, hp):
    B, S, D = enc.shape
    V = hp["w2"].shape[1]
    # Lane-dense output: pad the vocab axis to a multiple of 128 so stores are unmasked
    # full-lane vst's; padded columns are sliced off below (they never affect real columns
    # since log_softmax is over the sequence axis).
    Vp = ((V + 127) // 128) * 128
    w2, b2 = hp["w2"], hp["b2"]
    if Vp != V:
        w2 = jnp.pad(w2, ((0, 0), (0, Vp - V)))
        b2 = jnp.pad(b2, ((0, 0), (0, Vp - V)))

    per_sample = 4 * S * (4 * D + 2 * Vp)
    Bblk = _pick_batch_block(B, per_sample)
    nb = B // Bblk
    w_bytes = 2 * (D * D + D + 2 * S * D + D * Vp + Vp)
    vmem_limit = _vmem_limit(w_bytes + Bblk * per_sample)

    out = pl.pallas_call(
        _head_kernel,
        out_shape=jax.ShapeDtypeStruct((B, S, Vp), enc.dtype),
        grid=(nb,),
        in_specs=[
            pl.BlockSpec((Bblk, S, D), lambda b: (b, 0, 0)),
            pl.BlockSpec((D, D), lambda b: (0, 0)),
            pl.BlockSpec((1, D), lambda b: (0, 0)),
            pl.BlockSpec((S, D), lambda b: (0, 0)),
            pl.BlockSpec((S, D), lambda b: (0, 0)),
            pl.BlockSpec((D, Vp), lambda b: (0, 0)),
            pl.BlockSpec((1, Vp), lambda b: (0, 0)),
        ],
        out_specs=pl.BlockSpec((Bblk, S, Vp), lambda b: (b, 0, 0)),
        compiler_params=pltpu.CompilerParams(
            dimension_semantics=("parallel",),
            vmem_limit_bytes=vmem_limit),
    )(enc, hp["w1"], hp["b1"], hp["lnw"], hp["lnb"], w2, b2)
    return out[:, :, :V] if Vp != V else out


# ----------------------------------------------------------------------------
# Model forward (embedding / PE / masking glue in plain JAX)
# ----------------------------------------------------------------------------

def _embed_and_pe(params, tokens):
    B, S = tokens.shape
    pad_mask = (tokens == 0)                                     # True = padding
    x = jnp.take(params["embedding"], tokens, axis=0)            # (B, S, D) f32
    # Faithful reproduction of PositionalEncoding.forward: x + pe[:x.size(0)] (batch dim).
    x = x + params["pe"][:B]                                     # pe: (max_len, 1, D)
    x = jnp.where(pad_mask[..., None], 0.0, x)
    return x, pad_mask


def token_pretrained_forward(params, inputs_mlm, inputs_ssp, n_heads):
    # Apply embedding + PE per stream (PE depends on the per-stream batch size),
    # then batch both streams through the shared encoder stack in ONE kernel.
    x_mlm, mask_mlm = _embed_and_pe(params, inputs_mlm)
    x_ssp, mask_ssp = _embed_and_pe(params, inputs_ssp)
    x = jnp.concatenate([x_mlm, x_ssp], axis=0)                  # (2B, S, D)
    mask = jnp.concatenate([mask_mlm, mask_ssp], axis=0)         # (2B, S)
    B2, S, _ = x.shape

    pad_bias = jnp.where(mask, -1e30, 0.0).astype(jnp.float32).reshape(B2, 1, S)
    enc = encoder_stack(x, pad_bias, params["layers"], n_heads)
    enc = jnp.where(mask[..., None], 0.0, enc)                   # x[padding_mask] = 0

    enc_mlm, enc_ssp = jnp.split(enc, 2, axis=0)
    out_mlm = head_forward(enc_mlm, params["mlm"])
    out_ssp = head_forward(enc_ssp, params["ssp"])
    return out_mlm, out_ssp


# ----------------------------------------------------------------------------
# Deterministic parameter initialization (synthetic; pre-transposed, layer-stacked, bf16)
# ----------------------------------------------------------------------------

def init_params(key, n_vocabs, n_target_vocabs, d_ff, d_model, n_layers, n_heads, max_len):
    keys = iter(jax.random.split(key, 8 * n_layers + 16))
    bf16 = jnp.bfloat16

    def dense_t(in_dim, out_dim):
        # Stored pre-transposed (Din, Dout) so no runtime transpose is ever needed.
        w = 0.05 * jax.random.normal(next(keys), (in_dim, out_dim), jnp.float32)
        b = 0.01 * jax.random.normal(next(keys), (1, out_dim), jnp.float32)
        return w, b

    emb = 0.05 * jax.random.normal(next(keys), (n_vocabs, d_model), jnp.float32)
    emb = emb.at[0].set(0.0)                                     # padding_idx=0 -> zero row

    position = jnp.arange(max_len, dtype=jnp.float32)[:, None]
    div_term = jnp.exp(jnp.arange(0, d_model, 2, dtype=jnp.float32)
                       * (-math.log(10000.0) / d_model))
    pe = jnp.zeros((max_len, 1, d_model), jnp.float32)
    pe = pe.at[:, 0, 0::2].set(jnp.sin(position * div_term))
    pe = pe.at[:, 0, 1::2].set(jnp.cos(position * div_term))

    def stack(make):
        ws, bs = zip(*[make() for _ in range(n_layers)])
        return jnp.stack(ws), jnp.stack(bs)

    wqkv, bqkv = stack(lambda: dense_t(d_model, 3 * d_model))
    # Fold the attention scale 1/sqrt(Dh) into the Q columns (zero runtime cost).
    scale = 1.0 / math.sqrt(d_model // n_heads)
    wqkv = wqkv.at[:, :, :d_model].multiply(scale)
    bqkv = bqkv.at[:, :, :d_model].multiply(scale)
    wo, bo = stack(lambda: dense_t(d_model, d_model))
    w1, b1 = stack(lambda: dense_t(d_model, d_ff))
    w2, b2 = stack(lambda: dense_t(d_ff, d_model))
    layers = dict(
        wqkv=wqkv.astype(bf16), bqkv=bqkv.astype(bf16),
        wo=wo.astype(bf16), bo=bo.astype(bf16),
        w1=w1.astype(bf16), b1=b1.astype(bf16),
        w2=w2.astype(bf16), b2=b2.astype(bf16),
        lnw=jnp.ones((n_layers, max_len, d_model), bf16),        # default affine
        lnb=jnp.zeros((n_layers, max_len, d_model), bf16),
    )

    def head(out_dim):
        hw1, hb1 = dense_t(d_model, d_model)
        hw2, hb2 = dense_t(d_model, out_dim)
        return dict(w1=hw1.astype(bf16), b1=hb1.astype(bf16),
                    lnw=jnp.ones((max_len, d_model), bf16),
                    lnb=jnp.zeros((max_len, d_model), bf16),
                    w2=hw2.astype(bf16), b2=hb2.astype(bf16))

    return dict(embedding=emb, pe=pe, layers=layers,
                mlm=head(n_vocabs), ssp=head(n_target_vocabs))


# ----------------------------------------------------------------------------
# Main
# ----------------------------------------------------------------------------

if __name__ == "__main__":
    # Small configuration consistent with the module's constructor
    n_vocabs = 32
    n_target_vocabs = 8
    d_ff = 64
    d_model = 32
    n_layers = 2
    n_heads = 4
    max_len = 8          # seq length == max_len (LayerNorm is over [max_len, d_model])
    B = 2

    key = jax.random.PRNGKey(0)
    pkey, k1, k2 = jax.random.split(key, 3)
    params = init_params(pkey, n_vocabs, n_target_vocabs, d_ff, d_model,
                         n_layers, n_heads, max_len)

    inputs_mlm = jax.random.randint(k1, (B, max_len), 1, n_vocabs, dtype=jnp.int32)
    inputs_mlm = inputs_mlm.at[:, -2:].set(0)     # trailing padding tokens
    inputs_ssp = jax.random.randint(k2, (B, max_len), 1, n_vocabs, dtype=jnp.int32)
    inputs_ssp = inputs_ssp.at[:, -1:].set(0)     # trailing padding token

    fwd = jax.jit(functools.partial(token_pretrained_forward, n_heads=n_heads))
    out_mlm, out_ssp = fwd(params, inputs_mlm, inputs_ssp)
    jax.block_until_ready((out_mlm, out_ssp))

    assert out_mlm.shape == (B, max_len, n_vocabs)
    assert out_ssp.shape == (B, max_len, n_target_vocabs)
    assert bool(jnp.all(jnp.isfinite(out_mlm)))
    assert bool(jnp.all(jnp.isfinite(out_ssp)))
    print("KERNEL_OK")
</pallas_src>

<mosaic_0001>
module attributes {stable_mosaic.version = 11 : i64} {
  func.func @_encoder_stack_kernel(%arg0: i32, %arg1: i32, %arg2: memref<2x8x32xf32, #tpu.memory_space<vmem>>, %arg3: memref<2x1x8xf32, #tpu.memory_space<vmem>>, %arg4: memref<1x32x96xbf16, #tpu.memory_space<vmem>>, %arg5: memref<1x1x96xbf16, #tpu.memory_space<vmem>>, %arg6: memref<1x32x32xbf16, #tpu.memory_space<vmem>>, %arg7: memref<1x1x32xbf16, #tpu.memory_space<vmem>>, %arg8: memref<1x32x64xbf16, #tpu.memory_space<vmem>>, %arg9: memref<1x1x64xbf16, #tpu.memory_space<vmem>>, %arg10: memref<1x64x32xbf16, #tpu.memory_space<vmem>>, %arg11: memref<1x1x32xbf16, #tpu.memory_space<vmem>>, %arg12: memref<1x8x32xbf16, #tpu.memory_space<vmem>>, %arg13: memref<1x8x32xbf16, #tpu.memory_space<vmem>>, %arg14: memref<2x8x32xf32, #tpu.memory_space<vmem>>, %arg15: memref<2x8x32xf32, #tpu.memory_space<vmem>>) attributes {dimension_semantics = [#tpu.dimension_semantics<parallel>, #tpu.dimension_semantics<arbitrary>], iteration_bounds = array<i64: 2, 2>, scalar_prefetch = 0 : i64, scratch_operands = 1 : i64, tpu.core_type = #tpu.core_type<tc>, window_params = [{transform_indices = @transform_0, window_bounds = array<i64: 2, 8, 32>}, {transform_indices = @transform_1, window_bounds = array<i64: 2, 1, 8>}, {transform_indices = @transform_2, window_bounds = array<i64: 1, 32, 96>}, {transform_indices = @transform_3, window_bounds = array<i64: 1, 1, 96>}, {transform_indices = @transform_4, window_bounds = array<i64: 1, 32, 32>}, {transform_indices = @transform_5, window_bounds = array<i64: 1, 1, 32>}, {transform_indices = @transform_6, window_bounds = array<i64: 1, 32, 64>}, {transform_indices = @transform_7, window_bounds = array<i64: 1, 1, 64>}, {transform_indices = @transform_8, window_bounds = array<i64: 1, 64, 32>}, {transform_indices = @transform_9, window_bounds = array<i64: 1, 1, 32>}, {transform_indices = @transform_10, window_bounds = array<i64: 1, 8, 32>}, {transform_indices = @transform_11, window_bounds = array<i64: 1, 8, 32>}, {transform_indices = @transform_12, window_bounds = array<i64: 2, 8, 32>}]} {
    %c0_i32 = arith.constant 0 : i32
    %0 = arith.cmpi eq, %arg1, %c0_i32 : i32
    %1 = arith.extui %0 : i1 to i32
    %c0_i32_0 = arith.constant 0 : i32
    %2 = arith.cmpi ne, %1, %c0_i32_0 : i32
    scf.if %2 {
      %c0_82 = arith.constant 0 : index
      %c0_83 = arith.constant 0 : index
      %c0_84 = arith.constant 0 : index
      %208 = vector.load %arg2[%c0_82, %c0_83, %c0_84] : memref<2x8x32xf32, #tpu.memory_space<vmem>>, vector<2x8x32xf32>
      %c0_85 = arith.constant 0 : index
      %c0_86 = arith.constant 0 : index
      %c0_87 = arith.constant 0 : index
      %209 = vector.load %arg15[%c0_85, %c0_86, %c0_87] : memref<2x8x32xf32, #tpu.memory_space<vmem>>, vector<2x8x32xf32>
      tpu.vector_store %arg15[%c0_85, %c0_86, %c0_87], %208 {strides = array<i32>} : memref<2x8x32xf32, #tpu.memory_space<vmem>>, vector<2x8x32xf32>,
    } else {
    }
    %c0 = arith.constant 0 : index
    %c0_1 = arith.constant 0 : index
    %c0_2 = arith.constant 0 : index
    %3 = vector.load %arg15[%c0, %c0_1, %c0_2] : memref<2x8x32xf32, #tpu.memory_space<vmem>>, vector<2x8x32xf32>
    %4 = vector.shape_cast %3 : vector<2x8x32xf32> to vector<16x32xf32>
    %c0_3 = arith.constant 0 : index
    %c0_4 = arith.constant 0 : index
    %c0_5 = arith.constant 0 : index
    %5 = vector.load %arg4[%c0_3, %c0_4, %c0_5] : memref<1x32x96xbf16, #tpu.memory_space<vmem>>, vector<1x32x96xbf16>
    %6 = vector.shape_cast %5 : vector<1x32x96xbf16> to vector<32x96xbf16>
    %7 = arith.truncf %4 : vector<16x32xf32> to vector<16x32xbf16>
    %cst = arith.constant dense<0.000000e+00> : vector<16x96xf32>
    %8 = tpu.matmul %7, %6, %cst {dimension_numbers = #tpu.dot_dimension_numbers<[1], [0], [0], [1], [0, 0, 1, 1], [], []>} : vector<16x32xbf16>, vector<32x96xbf16>, vector<16x96xf32> -> vector<16x96xf32>
    %c0_6 = arith.constant 0 : index
    %c0_7 = arith.constant 0 : index
    %c0_8 = arith.constant 0 : index
    %9 = vector.load %arg5[%c0_6, %c0_7, %c0_8] : memref<1x1x96xbf16, #tpu.memory_space<vmem>>, vector<1x1x96xbf16>
    %10 = vector.shape_cast %9 : vector<1x1x96xbf16> to vector<1x96xbf16>
    %11 = arith.extf %10 : vector<1x96xbf16> to vector<1x96xf32>
    %12 = vector.broadcast %11 : vector<1x96xf32> to vector<16x96xf32>
    %13 = arith.addf %8, %12 : vector<16x96xf32>
    %14 = vector.shape_cast %13 : vector<16x96xf32> to vector<2x8x96xf32>
    %15 = vector.extract_strided_slice %14 {offsets = [0, 0, 0], sizes = [2, 8, 32], strides = [1, 1, 1]} : vector<2x8x96xf32> to vector<2x8x32xf32>
    %16 = vector.extract_strided_slice %14 {offsets = [0, 0, 32], sizes = [2, 8, 32], strides = [1, 1, 1]} : vector<2x8x96xf32> to vector<2x8x32xf32>
    %17 = tpu.transpose %16, [0, 2, 1] : vector<2x8x32xf32> -> vector<2x32x8xf32>
    %18 = vector.extract_strided_slice %14 {offsets = [0, 0, 64], sizes = [2, 8, 32], strides = [1, 1, 1]} : vector<2x8x96xf32> to vector<2x8x32xf32>
    %c0_9 = arith.constant 0 : index
    %c0_10 = arith.constant 0 : index
    %c0_11 = arith.constant 0 : index
    %19 = vector.load %arg3[%c0_9, %c0_10, %c0_11] : memref<2x1x8xf32, #tpu.memory_space<vmem>>, vector<2x1x8xf32>
    %c0_12 = arith.constant 0 : index
    %c0_13 = arith.constant 0 : index
    %c0_14 = arith.constant 0 : index
    %20 = vector.load %arg6[%c0_12, %c0_13, %c0_14] : memref<1x32x32xbf16, #tpu.memory_space<vmem>>, vector<1x32x32xbf16>
    %21 = vector.shape_cast %20 : vector<1x32x32xbf16> to vector<32x32xbf16>
    %22 = arith.extf %21 : vector<32x32xbf16> to vector<32x32xf32>
    %cst_15 = arith.constant 0.000000e+00 : f32
    %23 = vector.broadcast %cst_15 : f32 to vector<2x8x32xf32>
    %24 = vector.extract_strided_slice %15 {offsets = [0, 0, 0], sizes = [2, 8, 8], strides = [1, 1, 1]} : vector<2x8x32xf32> to vector<2x8x8xf32>
    %25 = vector.extract_strided_slice %17 {offsets = [0, 0, 0], sizes = [2, 8, 8], strides = [1, 1, 1]} : vector<2x32x8xf32> to vector<2x8x8xf32>
    %26 = vector.extract_strided_slice %18 {offsets = [0, 0, 0], sizes = [2, 8, 8], strides = [1, 1, 1]} : vector<2x8x32xf32> to vector<2x8x8xf32>
    %cst_16 = arith.constant dense<0.000000e+00> : vector<2x8x8xf32>
    %27 = tpu.matmul %24, %25, %cst_16 {dimension_numbers = #tpu.dot_dimension_numbers<[2], [1], [1], [2], [0, 0, 0, 1, 1, 2], [0], [0]>} : vector<2x8x8xf32>, vector<2x8x8xf32>, vector<2x8x8xf32> -> vector<2x8x8xf32>
    %28 = vector.broadcast %19 : vector<2x1x8xf32> to vector<2x8x8xf32>
    %29 = arith.addf %27, %28 : vector<2x8x8xf32>
    %cst_17 = arith.constant dense<0xFF800000> : vector<2x8xf32>
    %30 = vector.multi_reduction <maximumf>, %29, %cst_17 [2] : vector<2x8x8xf32> to vector<2x8xf32>
    %31 = vector.shape_cast %30 : vector<2x8xf32> to vector<2x8x1xf32>
    %32 = vector.broadcast %31 : vector<2x8x1xf32> to vector<2x8x8xf32>
    %33 = arith.subf %29, %32 : vector<2x8x8xf32>
    %34 = math.exp %33 : vector<2x8x8xf32>
    %cst_18 = arith.constant dense<0.000000e+00> : vector<2x8xf32>
    %35 = vector.multi_reduction <add>, %34, %cst_18 [2] : vector<2x8x8xf32> to vector<2x8xf32>
    %36 = vector.shape_cast %35 : vector<2x8xf32> to vector<2x8x1xf32>
    %37 = tpu.reciprocal %36 {approx = true} : vector<2x8x1xf32> -> vector<2x8x1xf32>
    %38 = vector.broadcast %37 : vector<2x8x1xf32> to vector<2x8x8xf32>
    %39 = arith.mulf %34, %38 : vector<2x8x8xf32>
    %cst_19 = arith.constant dense<0.000000e+00> : vector<2x8x8xf32>
    %40 = tpu.matmul %39, %26, %cst_19 {dimension_numbers = #tpu.dot_dimension_numbers<[2], [1], [1], [2], [0, 0, 0, 1, 1, 2], [0], [0]>} : vector<2x8x8xf32>, vector<2x8x8xf32>, vector<2x8x8xf32> -> vector<2x8x8xf32>
    %41 = vector.extract_strided_slice %22 {offsets = [0, 0], sizes = [8, 32], strides = [1, 1]} : vector<32x32xf32> to vector<8x32xf32>
    %cst_20 = arith.constant dense<0.000000e+00> : vector<2x8x32xf32>
    %42 = tpu.matmul %40, %41, %cst_20 {dimension_numbers = #tpu.dot_dimension_numbers<[2], [0], [0, 1], [1], [0, 0, 0, 1, 1, 1], [], []>} : vector<2x8x8xf32>, vector<8x32xf32>, vector<2x8x32xf32> -> vector<2x8x32xf32>
    %43 = arith.addf %23, %42 : vector<2x8x32xf32>
    %44 = vector.extract_strided_slice %15 {offsets = [0, 0, 8], sizes = [2, 8, 8], strides = [1, 1, 1]} : vector<2x8x32xf32> to vector<2x8x8xf32>
    %45 = vector.extract_strided_slice %17 {offsets = [0, 8, 0], sizes = [2, 8, 8], strides = [1, 1, 1]} : vector<2x32x8xf32> to vector<2x8x8xf32>
    %46 = vector.extract_strided_slice %18 {offsets = [0, 0, 8], sizes = [2, 8, 8], strides = [1, 1, 1]} : vector<2x8x32xf32> to vector<2x8x8xf32>
    %cst_21 = arith.constant dense<0.000000e+00> : vector<2x8x8xf32>
    %47 = tpu.matmul %44, %45, %cst_21 {dimension_numbers = #tpu.dot_dimension_numbers<[2], [1], [1], [2], [0, 0, 0, 1, 1, 2], [0], [0]>} : vector<2x8x8xf32>, vector<2x8x8xf32>, vector<2x8x8xf32> -> vector<2x8x8xf32>
    %48 = vector.broadcast %19 : vector<2x1x8xf32> to vector<2x8x8xf32>
    %49 = arith.addf %47, %48 : vector<2x8x8xf32>
    %cst_22 = arith.constant dense<0xFF800000> : vector<2x8xf32>
    %50 = vector.multi_reduction <maximumf>, %49, %cst_22 [2] : vector<2x8x8xf32> to vector<2x8xf32>
    %51 = vector.shape_cast %50 : vector<2x8xf32> to vector<2x8x1xf32>
    %52 = vector.broadcast %51 : vector<2x8x1xf32> to vector<2x8x8xf32>
    %53 = arith.subf %49, %52 : vector<2x8x8xf32>
    %54 = math.exp %53 : vector<2x8x8xf32>
    %cst_23 = arith.constant dense<0.000000e+00> : vector<2x8xf32>
    %55 = vector.multi_reduction <add>, %54, %cst_23 [2] : vector<2x8x8xf32> to vector<2x8xf32>
    %56 = vector.shape_cast %55 : vector<2x8xf32> to vector<2x8x1xf32>
    %57 = tpu.reciprocal %56 {approx = true} : vector<2x8x1xf32> -> vector<2x8x1xf32>
    %58 = vector.broadcast %57 : vector<2x8x1xf32> to vector<2x8x8xf32>
    %59 = arith.mulf %54, %58 : vector<2x8x8xf32>
    %cst_24 = arith.constant dense<0.000000e+00> : vector<2x8x8xf32>
    %60 = tpu.matmul %59, %46, %cst_24 {dimension_numbers = #tpu.dot_dimension_numbers<[2], [1], [1], [2], [0, 0, 0, 1, 1, 2], [0], [0]>} : vector<2x8x8xf32>, vector<2x8x8xf32>, vector<2x8x8xf32> -> vector<2x8x8xf32>
    %61 = vector.extract_strided_slice %22 {offsets = [8, 0], sizes = [8, 32], strides = [1, 1]} : vector<32x32xf32> to vector<8x32xf32>
    %cst_25 = arith.constant dense<0.000000e+00> : vector<2x8x32xf32>
    %62 = tpu.matmul %60, %61, %cst_25 {dimension_numbers = #tpu.dot_dimension_numbers<[2], [0], [0, 1], [1], [0, 0, 0, 1, 1, 1], [], []>} : vector<2x8x8xf32>, vector<8x32xf32>, vector<2x8x32xf32> -> vector<2x8x32xf32>
    %63 = arith.addf %43, %62 : vector<2x8x32xf32>
    %64 = vector.extract_strided_slice %15 {offsets = [0, 0, 16], sizes = [2, 8, 8], strides = [1, 1, 1]} : vector<2x8x32xf32> to vector<2x8x8xf32>
    %65 = vector.extract_strided_slice %17 {offsets = [0, 16, 0], sizes = [2, 8, 8], strides = [1, 1, 1]} : vector<2x32x8xf32> to vector<2x8x8xf32>
    %66 = vector.extract_strided_slice %18 {offsets = [0, 0, 16], sizes = [2, 8, 8], strides = [1, 1, 1]} : vector<2x8x32xf32> to vector<2x8x8xf32>
    %cst_26 = arith.constant dense<0.000000e+00> : vector<2x8x8xf32>
    %67 = tpu.matmul %64, %65, %cst_26 {dimension_numbers = #tpu.dot_dimension_numbers<[2], [1], [1], [2], [0, 0, 0, 1, 1, 2], [0], [0]>} : vector<2x8x8xf32>, vector<2x8x8xf32>, vector<2x8x8xf32> -> vector<2x8x8xf32>
    %68 = vector.broadcast %19 : vector<2x1x8xf32> to vector<2x8x8xf32>
    %69 = arith.addf %67, %68 : vector<2x8x8xf32>
    %cst_27 = arith.constant dense<0xFF800000> : vector<2x8xf32>
    %70 = vector.multi_reduction <maximumf>, %69, %cst_27 [2] : vector<2x8x8xf32> to vector<2x8xf32>
    %71 = vector.shape_cast %70 : vector<2x8xf32> to vector<2x8x1xf32>
    %72 = vector.broadcast %71 : vector<2x8x1xf32> to vector<2x8x8xf32>
    %73 = arith.subf %69, %72 : vector<2x8x8xf32>
    %74 = math.exp %73 : vector<2x8x8xf32>
    %cst_28 = arith.constant dense<0.000000e+00> : vector<2x8xf32>
    %75 = vector.multi_reduction <add>, %74, %cst_28 [2] : vector<2x8x8xf32> to vector<2x8xf32>
    %76 = vector.shape_cast %75 : vector<2x8xf32> to vector<2x8x1xf32>
    %77 = tpu.reciprocal %76 {approx = true} : vector<2x8x1xf32> -> vector<2x8x1xf32>
    %78 = vector.broadcast %77 : vector<2x8x1xf32> to vector<2x8x8xf32>
    %79 = arith.mulf %74, %78 : vector<2x8x8xf32>
    %cst_29 = arith.constant dense<0.000000e+00> : vector<2x8x8xf32>
    %80 = tpu.matmul %79, %66, %cst_29 {dimension_numbers = #tpu.dot_dimension_numbers<[2], [1], [1], [2], [0, 0, 0, 1, 1, 2], [0], [0]>} : vector<2x8x8xf32>, vector<2x8x8xf32>, vector<2x8x8xf32> -> vector<2x8x8xf32>
    %81 = vector.extract_strided_slice %22 {offsets = [16, 0], sizes = [8, 32], strides = [1, 1]} : vector<32x32xf32> to vector<8x32xf32>
    %cst_30 = arith.constant dense<0.000000e+00> : vector<2x8x32xf32>
    %82 = tpu.matmul %80, %81, %cst_30 {dimension_numbers = #tpu.dot_dimension_numbers<[2], [0], [0, 1], [1], [0, 0, 0, 1, 1, 1], [], []>} : vector<2x8x8xf32>, vector<8x32xf32>, vector<2x8x32xf32> -> vector<2x8x32xf32>
    %83 = arith.addf %63, %82 : vector<2x8x32xf32>
    %84 = vector.extract_strided_slice %15 {offsets = [0, 0, 24], sizes = [2, 8, 8], strides = [1, 1, 1]} : vector<2x8x32xf32> to vector<2x8x8xf32>
    %85 = vector.extract_strided_slice %17 {offsets = [0, 24, 0], sizes = [2, 8, 8], strides = [1, 1, 1]} : vector<2x32x8xf32> to vector<2x8x8xf32>
    %86 = vector.extract_strided_slice %18 {offsets = [0, 0, 24], sizes = [2, 8, 8], strides = [1, 1, 1]} : vector<2x8x32xf32> to vector<2x8x8xf32>
    %cst_31 = arith.constant dense<0.000000e+00> : vector<2x8x8xf32>
    %87 = tpu.matmul %84, %85, %cst_31 {dimension_numbers = #tpu.dot_dimension_numbers<[2], [1], [1], [2], [0, 0, 0, 1, 1, 2], [0], [0]>} : vector<2x8x8xf32>, vector<2x8x8xf32>, vector<2x8x8xf32> -> vector<2x8x8xf32>
    %88 = vector.broadcast %19 : vector<2x1x8xf32> to vector<2x8x8xf32>
    %89 = arith.addf %87, %88 : vector<2x8x8xf32>
    %cst_32 = arith.constant dense<0xFF800000> : vector<2x8xf32>
    %90 = vector.multi_reduction <maximumf>, %89, %cst_32 [2] : vector<2x8x8xf32> to vector<2x8xf32>
    %91 = vector.shape_cast %90 : vector<2x8xf32> to vector<2x8x1xf32>
    %92 = vector.broadcast %91 : vector<2x8x1xf32> to vector<2x8x8xf32>
    %93 = arith.subf %89, %92 : vector<2x8x8xf32>
    %94 = math.exp %93 : vector<2x8x8xf32>
    %cst_33 = arith.constant dense<0.000000e+00> : vector<2x8xf32>
    %95 = vector.multi_reduction <add>, %94, %cst_33 [2] : vector<2x8x8xf32> to vector<2x8xf32>
    %96 = vector.shape_cast %95 : vector<2x8xf32> to vector<2x8x1xf32>
    %97 = tpu.reciprocal %96 {approx = true} : vector<2x8x1xf32> -> vector<2x8x1xf32>
    %98 = vector.broadcast %97 : vector<2x8x1xf32> to vector<2x8x8xf32>
    %99 = arith.mulf %94, %98 : vector<2x8x8xf32>
    %cst_34 = arith.constant dense<0.000000e+00> : vector<2x8x8xf32>
    %100 = tpu.matmul %99, %86, %cst_34 {dimension_numbers = #tpu.dot_dimension_numbers<[2], [1], [1], [2], [0, 0, 0, 1, 1, 2], [0], [0]>} : vector<2x8x8xf32>, vector<2x8x8xf32>, vector<2x8x8xf32> -> vector<2x8x8xf32>
    %101 = vector.extract_strided_slice %22 {offsets = [24, 0], sizes = [8, 32], strides = [1, 1]} : vector<32x32xf32> to vector<8x32xf32>
    %cst_35 = arith.constant dense<0.000000e+00> : vector<2x8x32xf32>
    %102 = tpu.matmul %100, %101, %cst_35 {dimension_numbers = #tpu.dot_dimension_numbers<[2], [0], [0, 1], [1], [0, 0, 0, 1, 1, 1], [], []>} : vector<2x8x8xf32>, vector<8x32xf32>, vector<2x8x32xf32> -> vector<2x8x32xf32>
    %103 = arith.addf %83, %102 : vector<2x8x32xf32>
    %c0_36 = arith.constant 0 : index
    %c0_37 = arith.constant 0 : index
    %c0_38 = arith.constant 0 : index
    %104 = vector.load %arg7[%c0_36, %c0_37, %c0_38] : memref<1x1x32xbf16, #tpu.memory_space<vmem>>, vector<1x1x32xbf16>
    %105 = vector.shape_cast %104 : vector<1x1x32xbf16> to vector<1x32xbf16>
    %106 = arith.extf %105 : vector<1x32xbf16> to vector<1x32xf32>
    %107 = vector.shape_cast %106 : vector<1x32xf32> to vector<1x1x32xf32>
    %108 = vector.broadcast %107 : vector<1x1x32xf32> to vector<2x8x32xf32>
    %109 = arith.addf %103, %108 : vector<2x8x32xf32>
    %c0_39 = arith.constant 0 : index
    %c0_40 = arith.constant 0 : index
    %c0_41 = arith.constant 0 : index
    %110 = vector.load %arg12[%c0_39, %c0_40, %c0_41] : memref<1x8x32xbf16, #tpu.memory_space<vmem>>, vector<1x8x32xbf16>
    %111 = vector.shape_cast %110 : vector<1x8x32xbf16> to vector<8x32xbf16>
    %112 = arith.extf %111 : vector<8x32xbf16> to vector<8x32xf32>
    %c0_42 = arith.constant 0 : index
    %c0_43 = arith.constant 0 : index
    %c0_44 = arith.constant 0 : index
    %113 = vector.load %arg13[%c0_42, %c0_43, %c0_44] : memref<1x8x32xbf16, #tpu.memory_space<vmem>>, vector<1x8x32xbf16>
    %114 = vector.shape_cast %113 : vector<1x8x32xbf16> to vector<8x32xbf16>
    %115 = arith.extf %114 : vector<8x32xbf16> to vector<8x32xf32>
    %116 = arith.addf %109, %3 : vector<2x8x32xf32>
    %cst_45 = arith.constant dense<0.000000e+00> : vector<2x8xf32>
    %117 = vector.multi_reduction <add>, %116, %cst_45 [2] : vector<2x8x32xf32> to vector<2x8xf32>
    %118 = vector.shape_cast %117 : vector<2x8xf32> to vector<2x8x1xf32>
    %cst_46 = arith.constant 3.200000e+01 : f32
    %119 = vector.broadcast %cst_46 : f32 to vector<2x8x1xf32>
    %120 = arith.divf %118, %119 : vector<2x8x1xf32>
    %cst_47 = arith.constant dense<0.000000e+00> : vector<2x1xf32>
    %121 = vector.multi_reduction <add>, %120, %cst_47 [1] : vector<2x8x1xf32> to vector<2x1xf32>
    %122 = vector.shape_cast %121 : vector<2x1xf32> to vector<2x1x1xf32>
    %cst_48 = arith.constant 8.000000e+00 : f32
    %123 = vector.broadcast %cst_48 : f32 to vector<2x1x1xf32>
    %124 = arith.divf %122, %123 : vector<2x1x1xf32>
    %125 = vector.broadcast %124 : vector<2x1x1xf32> to vector<2x8x32xf32>
    %126 = arith.subf %116, %125 : vector<2x8x32xf32>
    %127 = arith.mulf %126, %126 : vector<2x8x32xf32>
    %cst_49 = arith.constant dense<0.000000e+00> : vector<2x8xf32>
    %128 = vector.multi_reduction <add>, %127, %cst_49 [2] : vector<2x8x32xf32> to vector<2x8xf32>
    %129 = vector.shape_cast %128 : vector<2x8xf32> to vector<2x8x1xf32>
    %cst_50 = arith.constant 3.200000e+01 : f32
    %130 = vector.broadcast %cst_50 : f32 to vector<2x8x1xf32>
    %131 = arith.divf %129, %130 : vector<2x8x1xf32>
    %cst_51 = arith.constant dense<0.000000e+00> : vector<2x1xf32>
    %132 = vector.multi_reduction <add>, %131, %cst_51 [1] : vector<2x8x1xf32> to vector<2x1xf32>
    %133 = vector.shape_cast %132 : vector<2x1xf32> to vector<2x1x1xf32>
    %cst_52 = arith.constant 8.000000e+00 : f32
    %134 = vector.broadcast %cst_52 : f32 to vector<2x1x1xf32>
    %135 = arith.divf %133, %134 : vector<2x1x1xf32>
    %136 = vector.broadcast %124 : vector<2x1x1xf32> to vector<2x8x32xf32>
    %137 = arith.subf %116, %136 : vector<2x8x32xf32>
    %cst_53 = arith.constant 9.99999997E-7 : f32
    %138 = vector.broadcast %cst_53 : f32 to vector<2x1x1xf32>
    %139 = arith.addf %135, %138 : vector<2x1x1xf32>
    %140 = math.rsqrt %139 : vector<2x1x1xf32>
    %141 = vector.broadcast %140 : vector<2x1x1xf32> to vector<2x8x32xf32>
    %142 = arith.mulf %137, %141 : vector<2x8x32xf32>
    %143 = vector.shape_cast %112 : vector<8x32xf32> to vector<1x8x32xf32>
    %144 = vector.broadcast %143 : vector<1x8x32xf32> to vector<2x8x32xf32>
    %145 = arith.mulf %142, %144 : vector<2x8x32xf32>
    %146 = vector.shape_cast %115 : vector<8x32xf32> to vector<1x8x32xf32>
    %147 = vector.broadcast %146 : vector<1x8x32xf32> to vector<2x8x32xf32>
    %148 = arith.addf %145, %147 : vector<2x8x32xf32>
    %c0_54 = arith.constant 0 : index
    %c0_55 = arith.constant 0 : index
    %c0_56 = arith.constant 0 : index
    %149 = vector.load %arg8[%c0_54, %c0_55, %c0_56] : memref<1x32x64xbf16, #tpu.memory_space<vmem>>, vector<1x32x64xbf16>
    %150 = vector.shape_cast %149 : vector<1x32x64xbf16> to vector<32x64xbf16>
    %151 = vector.shape_cast %148 : vector<2x8x32xf32> to vector<16x32xf32>
    %152 = arith.truncf %151 : vector<16x32xf32> to vector<16x32xbf16>
    %cst_57 = arith.constant dense<0.000000e+00> : vector<16x64xf32>
    %153 = tpu.matmul %152, %150, %cst_57 {dimension_numbers = #tpu.dot_dimension_numbers<[1], [0], [0], [1], [0, 0, 1, 1], [], []>} : vector<16x32xbf16>, vector<32x64xbf16>, vector<16x64xf32> -> vector<16x64xf32>
    %c0_58 = arith.constant 0 : index
    %c0_59 = arith.constant 0 : index
    %c0_60 = arith.constant 0 : index
    %154 = vector.load %arg9[%c0_58, %c0_59, %c0_60] : memref<1x1x64xbf16, #tpu.memory_space<vmem>>, vector<1x1x64xbf16>
    %155 = vector.shape_cast %154 : vector<1x1x64xbf16> to vector<1x64xbf16>
    %156 = arith.extf %155 : vector<1x64xbf16> to vector<1x64xf32>
    %157 = vector.broadcast %156 : vector<1x64xf32> to vector<16x64xf32>
    %158 = arith.addf %153, %157 : vector<16x64xf32>
    %cst_61 = arith.constant 0.000000e+00 : f32
    %159 = vector.broadcast %cst_61 : f32 to vector<16x64xf32>
    %160 = arith.maximumf %158, %159 : vector<16x64xf32>
    %c0_62 = arith.constant 0 : index
    %c0_63 = arith.constant 0 : index
    %c0_64 = arith.constant 0 : index
    %161 = vector.load %arg10[%c0_62, %c0_63, %c0_64] : memref<1x64x32xbf16, #tpu.memory_space<vmem>>, vector<1x64x32xbf16>
    %162 = vector.shape_cast %161 : vector<1x64x32xbf16> to vector<64x32xbf16>
    %163 = arith.truncf %160 : vector<16x64xf32> to vector<16x64xbf16>
    %cst_65 = arith.constant dense<0.000000e+00> : vector<16x32xf32>
    %164 = tpu.matmul %163, %162, %cst_65 {dimension_numbers = #tpu.dot_dimension_numbers<[1], [0], [0], [1], [0, 0, 1, 1], [], []>} : vector<16x64xbf16>, vector<64x32xbf16>, vector<16x32xf32> -> vector<16x32xf32>
    %c0_66 = arith.constant 0 : index
    %c0_67 = arith.constant 0 : index
    %c0_68 = arith.constant 0 : index
    %165 = vector.load %arg11[%c0_66, %c0_67, %c0_68] : memref<1x1x32xbf16, #tpu.memory_space<vmem>>, vector<1x1x32xbf16>
    %166 = vector.shape_cast %165 : vector<1x1x32xbf16> to vector<1x32xbf16>
    %167 = arith.extf %166 : vector<1x32xbf16> to vector<1x32xf32>
    %168 = vector.broadcast %167 : vector<1x32xf32> to vector<16x32xf32>
    %169 = arith.addf %164, %168 : vector<16x32xf32>
    %170 = vector.shape_cast %169 : vector<16x32xf32> to vector<2x8x32xf32>
    %171 = arith.addf %170, %148 : vector<2x8x32xf32>
    %cst_69 = arith.constant dense<0.000000e+00> : vector<2x8xf32>
    %172 = vector.multi_reduction <add>, %171, %cst_69 [2] : vector<2x8x32xf32> to vector<2x8xf32>
    %173 = vector.shape_cast %172 : vector<2x8xf32> to vector<2x8x1xf32>
    %cst_70 = arith.constant 3.200000e+01 : f32
    %174 = vector.broadcast %cst_70 : f32 to vector<2x8x1xf32>
    %175 = arith.divf %173, %174 : vector<2x8x1xf32>
    %cst_71 = arith.constant dense<0.000000e+00> : vector<2x1xf32>
    %176 = vector.multi_reduction <add>, %175, %cst_71 [1] : vector<2x8x1xf32> to vector<2x1xf32>
    %177 = vector.shape_cast %176 : vector<2x1xf32> to vector<2x1x1xf32>
    %cst_72 = arith.constant 8.000000e+00 : f32
    %178 = vector.broadcast %cst_72 : f32 to vector<2x1x1xf32>
    %179 = arith.divf %177, %178 : vector<2x1x1xf32>
    %180 = vector.broadcast %179 : vector<2x1x1xf32> to vector<2x8x32xf32>
    %181 = arith.subf %171, %180 : vector<2x8x32xf32>
    %182 = arith.mulf %181, %181 : vector<2x8x32xf32>
    %cst_73 = arith.constant dense<0.000000e+00> : vector<2x8xf32>
    %183 = vector.multi_reduction <add>, %182, %cst_73 [2] : vector<2x8x32xf32> to vector<2x8xf32>
    %184 = vector.shape_cast %183 : vector<2x8xf32> to vector<2x8x1xf32>
    %cst_74 = arith.constant 3.200000e+01 : f32
    %185 = vector.broadcast %cst_74 : f32 to vector<2x8x1xf32>
    %186 = arith.divf %184, %185 : vector<2x8x1xf32>
    %cst_75 = arith.constant dense<0.000000e+00> : vector<2x1xf32>
    %187 = vector.multi_reduction <add>, %186, %cst_75 [1] : vector<2x8x1xf32> to vector<2x1xf32>
    %188 = vector.shape_cast %187 : vector<2x1xf32> to vector<2x1x1xf32>
    %cst_76 = arith.constant 8.000000e+00 : f32
    %189 = vector.broadcast %cst_76 : f32 to vector<2x1x1xf32>
    %190 = arith.divf %188, %189 : vector<2x1x1xf32>
    %191 = vector.broadcast %179 : vector<2x1x1xf32> to vector<2x8x32xf32>
    %192 = arith.subf %171, %191 : vector<2x8x32xf32>
    %cst_77 = arith.constant 9.99999997E-7 : f32
    %193 = vector.broadcast %cst_77 : f32 to vector<2x1x1xf32>
    %194 = arith.addf %190, %193 : vector<2x1x1xf32>
    %195 = math.rsqrt %194 : vector<2x1x1xf32>
    %196 = vector.broadcast %195 : vector<2x1x1xf32> to vector<2x8x32xf32>
    %197 = arith.mulf %192, %196 : vector<2x8x32xf32>
    %198 = vector.shape_cast %112 : vector<8x32xf32> to vector<1x8x32xf32>
    %199 = vector.broadcast %198 : vector<1x8x32xf32> to vector<2x8x32xf32>
    %200 = arith.mulf %197, %199 : vector<2x8x32xf32>
    %201 = vector.shape_cast %115 : vector<8x32xf32> to vector<1x8x32xf32>
    %202 = vector.broadcast %201 : vector<1x8x32xf32> to vector<2x8x32xf32>
    %203 = arith.addf %200, %202 : vector<2x8x32xf32>
    %c0_78 = arith.constant 0 : index
    %c0_79 = arith.constant 0 : index
    %c0_80 = arith.constant 0 : index
    %204 = vector.load %arg15[%c0_78, %c0_79, %c0_80] : memref<2x8x32xf32, #tpu.memory_space<vmem>>, vector<2x8x32xf32>
    tpu.vector_store %arg15[%c0_78, %c0_79, %c0_80], %203 {strides = array<i32>} : memref<2x8x32xf32, #tpu.memory_space<vmem>>, vector<2x8x32xf32>,
    %c1_i32 = arith.constant 1 : i32
    %205 = arith.cmpi eq, %arg1, %c1_i32 : i32
    %206 = arith.extui %205 : i1 to i32
    %c0_i32_81 = arith.constant 0 : i32
    %207 = arith.cmpi ne, %206, %c0_i32_81 : i32
    scf.if %207 {
      %c0_82 = arith.constant 0 : index
      %c0_83 = arith.constant 0 : index
      %c0_84 = arith.constant 0 : index
      %208 = vector.load %arg14[%c0_82, %c0_83, %c0_84] : memref<2x8x32xf32, #tpu.memory_space<vmem>>, vector<2x8x32xf32>
      tpu.vector_store %arg14[%c0_82, %c0_83, %c0_84], %203 {strides = array<i32>} : memref<2x8x32xf32, #tpu.memory_space<vmem>>, vector<2x8x32xf32>,
    } else {
    }
    return
  }
  func.func @transform_0(%arg0: i32, %arg1: i32) -> (i32, i32, i32) {
    %c0_i32 = arith.constant 0 : i32
    %c0_i32_0 = arith.constant 0 : i32
    %c0_i32_1 = arith.constant 0 : i32
    return %arg0, %c0_i32, %c0_i32_0 : i32, i32, i32
  }
  func.func @transform_1(%arg0: i32, %arg1: i32) -> (i32, i32, i32) {
    %c0_i32 = arith.constant 0 : i32
    %c0_i32_0 = arith.constant 0 : i32
    %c0_i32_1 = arith.constant 0 : i32
    return %arg0, %c0_i32, %c0_i32_0 : i32, i32, i32
  }
  func.func @transform_2(%arg0: i32, %arg1: i32) -> (i32, i32, i32) {
    %c0_i32 = arith.constant 0 : i32
    %c0_i32_0 = arith.constant 0 : i32
    %c0_i32_1 = arith.constant 0 : i32
    return %arg1, %c0_i32, %c0_i32_0 : i32, i32, i32
  }
  func.func @transform_3(%arg0: i32, %arg1: i32) -> (i32, i32, i32) {
    %c0_i32 = arith.constant 0 : i32
    %c0_i32_0 = arith.constant 0 : i32
    %c0_i32_1 = arith.constant 0 : i32
    return %arg1, %c0_i32, %c0_i32_0 : i32, i32, i32
  }
  func.func @transform_4(%arg0: i32, %arg1: i32) -> (i32, i32, i32) {
    %c0_i32 = arith.constant 0 : i32
    %c0_i32_0 = arith.constant 0 : i32
    %c0_i32_1 = arith.constant 0 : i32
    return %arg1, %c0_i32, %c0_i32_0 : i32, i32, i32
  }
  func.func @transform_5(%arg0: i32, %arg1: i32) -> (i32, i32, i32) {
    %c0_i32 = arith.constant 0 : i32
    %c0_i32_0 = arith.constant 0 : i32
    %c0_i32_1 = arith.constant 0 : i32
    return %arg1, %c0_i32, %c0_i32_0 : i32, i32, i32
  }
  func.func @transform_6(%arg0: i32, %arg1: i32) -> (i32, i32, i32) {
    %c0_i32 = arith.constant 0 : i32
    %c0_i32_0 = arith.constant 0 : i32
    %c0_i32_1 = arith.constant 0 : i32
    return %arg1, %c0_i32, %c0_i32_0 : i32, i32, i32
  }
  func.func @transform_7(%arg0: i32, %arg1: i32) -> (i32, i32, i32) {
    %c0_i32 = arith.constant 0 : i32
    %c0_i32_0 = arith.constant 0 : i32
    %c0_i32_1 = arith.constant 0 : i32
    return %arg1, %c0_i32, %c0_i32_0 : i32, i32, i32
  }
  func.func @transform_8(%arg0: i32, %arg1: i32) -> (i32, i32, i32) {
    %c0_i32 = arith.constant 0 : i32
    %c0_i32_0 = arith.constant 0 : i32
    %c0_i32_1 = arith.constant 0 : i32
    return %arg1, %c0_i32, %c0_i32_0 : i32, i32, i32
  }
  func.func @transform_9(%arg0: i32, %arg1: i32) -> (i32, i32, i32) {
    %c0_i32 = arith.constant 0 : i32
    %c0_i32_0 = arith.constant 0 : i32
    %c0_i32_1 = arith.constant 0 : i32
    return %arg1, %c0_i32, %c0_i32_0 : i32, i32, i32
  }
  func.func @transform_10(%arg0: i32, %arg1: i32) -> (i32, i32, i32) {
    %c0_i32 = arith.constant 0 : i32
    %c0_i32_0 = arith.constant 0 : i32
    %c0_i32_1 = arith.constant 0 : i32
    return %arg1, %c0_i32, %c0_i32_0 : i32, i32, i32
  }
  func.func @transform_11(%arg0: i32, %arg1: i32) -> (i32, i32, i32) {
    %c0_i32 = arith.constant 0 : i32
    %c0_i32_0 = arith.constant 0 : i32
    %c0_i32_1 = arith.constant 0 : i32
    return %arg1, %c0_i32, %c0_i32_0 : i32, i32, i32
  }
  func.func @transform_12(%arg0: i32, %arg1: i32) -> (i32, i32, i32) {
    %c0_i32 = arith.constant 0 : i32
    %c0_i32_0 = arith.constant 0 : i32
    %c0_i32_1 = arith.constant 0 : i32
    return %arg0, %c0_i32, %c0_i32_0 : i32, i32, i32
  }
}

module attributes {stable_mosaic.version = 11 : i64} {
  func.func @_head_kernel(%arg0: i32, %arg1: memref<1x8x32xf32, #tpu.memory_space<vmem>>, %arg2: memref<32x32xbf16, #tpu.memory_space<vmem>>, %arg3: memref<1x32xbf16, #tpu.memory_space<vmem>>, %arg4: memref<8x32xbf16, #tpu.memory_space<vmem>>, %arg5: memref<8x32xbf16, #tpu.memory_space<vmem>>, %arg6: memref<32x128xbf16, #tpu.memory_space<vmem>>, %arg7: memref<1x128xbf16, #tpu.memory_space<vmem>>, %arg8: memref<1x8x128xf32, #tpu.memory_space<vmem>>) attributes {dimension_semantics = [#tpu.dimension_semantics<parallel>], iteration_bounds = array<i64: 2>, scalar_prefetch = 0 : i64, scratch_operands = 0 : i64, tpu.core_type = #tpu.core_type<tc>, window_params = [{transform_indices = @transform_0, window_bounds = array<i64: 1, 8, 32>}, {pipeline_mode = #tpu.pipeline_mode<synchronous>, transform_indices = @transform_1, window_bounds = array<i64: 32, 32>}, {pipeline_mode = #tpu.pipeline_mode<synchronous>, transform_indices = @transform_2, window_bounds = array<i64: 1, 32>}, {pipeline_mode = #tpu.pipeline_mode<synchronous>, transform_indices = @transform_3, window_bounds = array<i64: 8, 32>}, {pipeline_mode = #tpu.pipeline_mode<synchronous>, transform_indices = @transform_4, window_bounds = array<i64: 8, 32>}, {pipeline_mode = #tpu.pipeline_mode<synchronous>, transform_indices = @transform_5, window_bounds = array<i64: 32, 128>}, {pipeline_mode = #tpu.pipeline_mode<synchronous>, transform_indices = @transform_6, window_bounds = array<i64: 1, 128>}, {transform_indices = @transform_7, window_bounds = array<i64: 1, 8, 128>}]} {
    %c0 = arith.constant 0 : index
    %c0_0 = arith.constant 0 : index
    %c0_1 = arith.constant 0 : index
    %0 = vector.load %arg1[%c0, %c0_0, %c0_1] : memref<1x8x32xf32, #tpu.memory_space<vmem>>, vector<1x8x32xf32>
    %1 = vector.shape_cast %0 : vector<1x8x32xf32> to vector<8x32xf32>
    %c0_2 = arith.constant 0 : index
    %c0_3 = arith.constant 0 : index
    %2 = vector.load %arg2[%c0_2, %c0_3] : memref<32x32xbf16, #tpu.memory_space<vmem>>, vector<32x32xbf16>
    %3 = arith.truncf %1 : vector<8x32xf32> to vector<8x32xbf16>
    %cst = arith.constant dense<0.000000e+00> : vector<8x32xf32>
    %4 = tpu.matmul %3, %2, %cst {dimension_numbers = #tpu.dot_dimension_numbers<[1], [0], [0], [1], [0, 0, 1, 1], [], []>} : vector<8x32xbf16>, vector<32x32xbf16>, vector<8x32xf32> -> vector<8x32xf32>
    %c0_4 = arith.constant 0 : index
    %c0_5 = arith.constant 0 : index
    %5 = vector.load %arg3[%c0_4, %c0_5] : memref<1x32xbf16, #tpu.memory_space<vmem>>, vector<1x32xbf16>
    %6 = arith.extf %5 : vector<1x32xbf16> to vector<1x32xf32>
    %7 = vector.broadcast %6 : vector<1x32xf32> to vector<8x32xf32>
    %8 = arith.addf %4, %7 : vector<8x32xf32>
    %cst_6 = arith.constant 5.000000e-01 : f32
    %9 = vector.broadcast %cst_6 : f32 to vector<8x32xf32>
    %10 = arith.mulf %9, %8 : vector<8x32xf32>
    %cst_7 = arith.constant 0.707106769 : f32
    %11 = vector.broadcast %cst_7 : f32 to vector<8x32xf32>
    %12 = arith.mulf %8, %11 : vector<8x32xf32>
    %13 = math.erf %12 : vector<8x32xf32>
    %cst_8 = arith.constant 1.000000e+00 : f32
    %14 = vector.broadcast %cst_8 : f32 to vector<8x32xf32>
    %15 = arith.addf %14, %13 : vector<8x32xf32>
    %16 = arith.mulf %10, %15 : vector<8x32xf32>
    %17 = vector.shape_cast %16 : vector<8x32xf32> to vector<1x8x32xf32>
    %cst_9 = arith.constant dense<0.000000e+00> : vector<1x8xf32>
    %18 = vector.multi_reduction <add>, %17, %cst_9 [2] : vector<1x8x32xf32> to vector<1x8xf32>
    %19 = vector.shape_cast %18 : vector<1x8xf32> to vector<1x8x1xf32>
    %cst_10 = arith.constant 3.200000e+01 : f32
    %20 = vector.broadcast %cst_10 : f32 to vector<1x8x1xf32>
    %21 = arith.divf %19, %20 : vector<1x8x1xf32>
    %cst_11 = arith.constant dense<0.000000e+00> : vector<1x1xf32>
    %22 = vector.multi_reduction <add>, %21, %cst_11 [1] : vector<1x8x1xf32> to vector<1x1xf32>
    %23 = vector.shape_cast %22 : vector<1x1xf32> to vector<1x1x1xf32>
    %cst_12 = arith.constant 8.000000e+00 : f32
    %24 = vector.broadcast %cst_12 : f32 to vector<1x1x1xf32>
    %25 = arith.divf %23, %24 : vector<1x1x1xf32>
    %26 = vector.broadcast %25 : vector<1x1x1xf32> to vector<1x8x32xf32>
    %27 = arith.subf %17, %26 : vector<1x8x32xf32>
    %28 = arith.mulf %27, %27 : vector<1x8x32xf32>
    %cst_13 = arith.constant dense<0.000000e+00> : vector<1x8xf32>
    %29 = vector.multi_reduction <add>, %28, %cst_13 [2] : vector<1x8x32xf32> to vector<1x8xf32>
    %30 = vector.shape_cast %29 : vector<1x8xf32> to vector<1x8x1xf32>
    %cst_14 = arith.constant 3.200000e+01 : f32
    %31 = vector.broadcast %cst_14 : f32 to vector<1x8x1xf32>
    %32 = arith.divf %30, %31 : vector<1x8x1xf32>
    %cst_15 = arith.constant dense<0.000000e+00> : vector<1x1xf32>
    %33 = vector.multi_reduction <add>, %32, %cst_15 [1] : vector<1x8x1xf32> to vector<1x1xf32>
    %34 = vector.shape_cast %33 : vector<1x1xf32> to vector<1x1x1xf32>
    %cst_16 = arith.constant 8.000000e+00 : f32
    %35 = vector.broadcast %cst_16 : f32 to vector<1x1x1xf32>
    %36 = arith.divf %34, %35 : vector<1x1x1xf32>
    %37 = vector.broadcast %25 : vector<1x1x1xf32> to vector<1x8x32xf32>
    %38 = arith.subf %17, %37 : vector<1x8x32xf32>
    %cst_17 = arith.constant 9.99999997E-7 : f32
    %39 = vector.broadcast %cst_17 : f32 to vector<1x1x1xf32>
    %40 = arith.addf %36, %39 : vector<1x1x1xf32>
    %41 = math.rsqrt %40 : vector<1x1x1xf32>
    %42 = vector.broadcast %41 : vector<1x1x1xf32> to vector<1x8x32xf32>
    %43 = arith.mulf %38, %42 : vector<1x8x32xf32>
    %c0_18 = arith.constant 0 : index
    %c0_19 = arith.constant 0 : index
    %44 = vector.load %arg4[%c0_18, %c0_19] : memref<8x32xbf16, #tpu.memory_space<vmem>>, vector<8x32xbf16>
    %45 = arith.extf %44 : vector<8x32xbf16> to vector<8x32xf32>
    %46 = vector.shape_cast %45 : vector<8x32xf32> to vector<1x8x32xf32>
    %47 = arith.mulf %43, %46 : vector<1x8x32xf32>
    %c0_20 = arith.constant 0 : index
    %c0_21 = arith.constant 0 : index
    %48 = vector.load %arg5[%c0_20, %c0_21] : memref<8x32xbf16, #tpu.memory_space<vmem>>, vector<8x32xbf16>
    %49 = arith.extf %48 : vector<8x32xbf16> to vector<8x32xf32>
    %50 = vector.shape_cast %49 : vector<8x32xf32> to vector<1x8x32xf32>
    %51 = arith.addf %47, %50 : vector<1x8x32xf32>
    %c0_22 = arith.constant 0 : index
    %c0_23 = arith.constant 0 : index
    %52 = vector.load %arg6[%c0_22, %c0_23] : memref<32x128xbf16, #tpu.memory_space<vmem>>, vector<32x128xbf16>
    %53 = vector.shape_cast %51 : vector<1x8x32xf32> to vector<8x32xf32>
    %54 = arith.truncf %53 : vector<8x32xf32> to vector<8x32xbf16>
    %cst_24 = arith.constant dense<0.000000e+00> : vector<8x128xf32>
    %55 = tpu.matmul %54, %52, %cst_24 {dimension_numbers = #tpu.dot_dimension_numbers<[1], [0], [0], [1], [0, 0, 1, 1], [], []>} : vector<8x32xbf16>, vector<32x128xbf16>, vector<8x128xf32> -> vector<8x128xf32>
    %c0_25 = arith.constant 0 : index
    %c0_26 = arith.constant 0 : index
    %56 = vector.load %arg7[%c0_25, %c0_26] : memref<1x128xbf16, #tpu.memory_space<vmem>>, vector<1x128xbf16>
    %57 = arith.extf %56 : vector<1x128xbf16> to vector<1x128xf32>
    %58 = vector.broadcast %57 : vector<1x128xf32> to vector<8x128xf32>
    %59 = arith.addf %55, %58 : vector<8x128xf32>
    %60 = vector.shape_cast %59 : vector<8x128xf32> to vector<1x8x128xf32>
    %cst_27 = arith.constant dense<0xFF800000> : vector<1x128xf32>
    %61 = vector.multi_reduction <maximumf>, %60, %cst_27 [1] : vector<1x8x128xf32> to vector<1x128xf32>
    %62 = vector.shape_cast %61 : vector<1x128xf32> to vector<1x1x128xf32>
    %63 = vector.broadcast %62 : vector<1x1x128xf32> to vector<1x8x128xf32>
    %64 = arith.subf %60, %63 : vector<1x8x128xf32>
    %65 = math.exp %64 : vector<1x8x128xf32>
    %cst_28 = arith.constant dense<0.000000e+00> : vector<1x128xf32>
    %66 = vector.multi_reduction <add>, %65, %cst_28 [1] : vector<1x8x128xf32> to vector<1x128xf32>
    %67 = vector.shape_cast %66 : vector<1x128xf32> to vector<1x1x128xf32>
    %68 = math.log %67 : vector<1x1x128xf32>
    %69 = arith.addf %68, %62 : vector<1x1x128xf32>
    %70 = vector.broadcast %69 : vector<1x1x128xf32> to vector<1x8x128xf32>
    %71 = arith.subf %60, %70 : vector<1x8x128xf32>
    %c0_29 = arith.constant 0 : index
    %c0_30 = arith.constant 0 : index
    %c0_31 = arith.constant 0 : index
    %72 = vector.load %arg8[%c0_29, %c0_30, %c0_31] : memref<1x8x128xf32, #tpu.memory_space<vmem>>, vector<1x8x128xf32>
    tpu.vector_store %arg8[%c0_29, %c0_30, %c0_31], %71 {strides = array<i32>} : memref<1x8x128xf32, #tpu.memory_space<vmem>>, vector<1x8x128xf32>,
    return
  }
  func.func @transform_0(%arg0: i32) -> (i32, i32, i32) {
    %c0_i32 = arith.constant 0 : i32
    %c0_i32_0 = arith.constant 0 : i32
    %c0_i32_1 = arith.constant 0 : i32
    return %arg0, %c0_i32, %c0_i32_0 : i32, i32, i32
  }
  func.func @transform_1(%arg0: i32) -> (i32, i32) {
    %c0_i32 = arith.constant 0 : i32
    %c0_i32_0 = arith.constant 0 : i32
    %c0_i32_1 = arith.constant 0 : i32
    return %c0_i32, %c0_i32_0 : i32, i32
  }
  func.func @transform_2(%arg0: i32) -> (i32, i32) {
    %c0_i32 = arith.constant 0 : i32
    %c0_i32_0 = arith.constant 0 : i32
    %c0_i32_1 = arith.constant 0 : i32
    return %c0_i32, %c0_i32_0 : i32, i32
  }
  func.func @transform_3(%arg0: i32) -> (i32, i32) {
    %c0_i32 = arith.constant 0 : i32
    %c0_i32_0 = arith.constant 0 : i32
    %c0_i32_1 = arith.constant 0 : i32
    return %c0_i32, %c0_i32_0 : i32, i32
  }
  func.func @transform_4(%arg0: i32) -> (i32, i32) {
    %c0_i32 = arith.constant 0 : i32
    %c0_i32_0 = arith.constant 0 : i32
    %c0_i32_1 = arith.constant 0 : i32
    return %c0_i32, %c0_i32_0 : i32, i32
  }
  func.func @transform_5(%arg0: i32) -> (i32, i32) {
    %c0_i32 = arith.constant 0 : i32
    %c0_i32_0 = arith.constant 0 : i32
    %c0_i32_1 = arith.constant 0 : i32
    return %c0_i32, %c0_i32_0 : i32, i32
  }
  func.func @transform_6(%arg0: i32) -> (i32, i32) {
    %c0_i32 = arith.constant 0 : i32
    %c0_i32_0 = arith.constant 0 : i32
    %c0_i32_1 = arith.constant 0 : i32
    return %c0_i32, %c0_i32_0 : i32, i32
  }
  func.func @transform_7(%arg0: i32) -> (i32, i32, i32) {
    %c0_i32 = arith.constant 0 : i32
    %c0_i32_0 = arith.constant 0 : i32
    %c0_i32_1 = arith.constant 0 : i32
    return %arg0, %c0_i32, %c0_i32_0 : i32, i32, i32
  }
}

</mosaic_0001>

<llo_original>
// kernel: token_pretrained_forward.5
$region0: #{token_pretrained_forward.5}
  #allocation0 [shape = 'u32[]', space=smem, size = 0x4, offset = 0x4, fixed_abs, tag = 'smem constant byte address 0x4 - core index']
  #allocation1 [shape = 'u32[144,128]{1,0:T(1,128)}', space=vmem, size = 0x12000, scoped, tag = 'internal scratch']
  %s0 = inlined_call_operand.vmem [shape: f32[2,8,32], index: 0, kind: input, shape index: {}]
  %s1 = inlined_call_operand.vmem [shape: bf16[32,32], index: 1, kind: input, shape index: {}]
  %s2 = inlined_call_operand.vmem [shape: bf16[1,32], index: 2, kind: input, shape index: {}]
  %s3 = inlined_call_operand.vmem [shape: bf16[8,32], index: 3, kind: input, shape index: {}]
  %s4 = inlined_call_operand.vmem [shape: bf16[8,32], index: 4, kind: input, shape index: {}]
  %s5 = inlined_call_operand.vmem [shape: bf16[32,128], index: 5, kind: input, shape index: {}]
  %s6 = inlined_call_operand.vmem [shape: bf16[1,128], index: 6, kind: input, shape index: {}]
  %s7 = inlined_call_operand.hbm [shape: f32[2,8,128], index: 7, kind: output, shape index: {}]
  %s8 = sld [smem:[#allocation0]]
  $region61: #{token_pretrained_forward.5} parent=0
    _
  %s10 = ssub.s32 1, %s8
  %s11 = scalar_select 0, %s10, %s8
  $region1: #{token_pretrained_forward.5} parent=0
    #allocation2 [shape = 'u8[8192]{0}', space=vmem, size = 0x2000, scoped, tag = 'output window, operand 0']
    #allocation3 [shape = 's32[2]{0}', space=sflag, size = 0x8, scoped, tag = 'scoped memory for token_pretrained_forward.5']
    %12 = vsyncpa [#allocation3], 0
    %s13 = scalar_lea.sflag [#allocation3], 1
    %14 = vsyncpa %s13, 0
    loop: start=0, step=1, limit=4
    $region2: #{token_pretrained_forward.5} parent=1 // loop_pre_header
      _
    $region3: #{token_pretrained_forward.5} parent=1 // loop_header
      %s16 = sphi 0, %s20
      %p17 = scmp.ge.s32.totalorder %s16, 4
      %s26 = sphi 0, %s28
      %s29 = sphi 0, %s26
      %s30 = sphi 0, %s29
      %s46 = sphi 0, %s30
      %s50 = sphi 0, %s50
      %s52 = sphi 0, %s50
      %s53 = sphi 0, %s52
      %s67 = sphi 0, %s53
      %s71 = sphi 0, %s71
      %s73 = sphi 0, %s71
      %s74 = sphi 0, %s73
      %s88 = sphi 0, %s74
      %s92 = sphi 0, %s92
      %s94 = sphi 0, %s92
      %s95 = sphi 0, %s94
      %s109 = sphi 0, %s95
      %s113 = sphi 0, %s113
      %s115 = sphi 0, %s113
      %s116 = sphi 0, %s115
      %s130 = sphi 0, %s116
      %s134 = sphi 0, %s134
      %s136 = sphi 0, %s134
      %s137 = sphi 0, %s136
      %s151 = sphi 0, %s137
      %s155 = sphi 0, %s155
      %s157 = sphi 0, %s155
      %s158 = sphi 0, %s157
      %s172 = sphi 0, %s158
      %s178 = sphi 0, %s180
      %s181 = sphi 0, %s178
      %s182 = sphi 0, %s181
      %s198 = sphi 0, %s182
    $region4: #{token_pretrained_forward.5} parent=1 // loop_header_branch
      %19 = sbr.rel (%p17) target = $region8
    $region5: #{token_pretrained_forward.5} parent=1 // loop_body
      %s21 = ssub.s32 %s16, 1
      %s22 = ssub.s32 %s16, 2
      %s23 = sadd.s32 %s16, 1
      %s24 = ssub.s32 %s16, %s23
      %p25 = scmp.eq.s32.totalorder %s24, 0
      %s27 = sadd.s32 %s26, 1
      %s28 = scalar_select %p25, %s26, %s27
      %p31 = pneg %p25
      %p32 = scmp.eq.s32.totalorder %s16, 1
      %p33 = por %p31, %p32
      %p34 = scmp.ne.s32.totalorder %s26, %s29
      %p35 = scmp.eq.s32.totalorder %s16, 0
      %p36 = por %p34, %p35
      %p37 = scmp.ne.s32.totalorder %s26, %s29
      %p38 = scmp.eq.s32.totalorder %s21, 1
      %p39 = por %p37, %p38
      %p40 = scmp.ne.s32.totalorder %s29, %s30
      %p41 = scmp.eq.s32.totalorder %s21, 0
      %p42 = por %p40, %p41
      %p43 = scmp.ne.s32.totalorder %s29, %s30
      %p44 = scmp.eq.s32.totalorder %s22, 1
      %p45 = por %p43, %p44
      %p47 = scmp.ne.s32.totalorder %s30, %s46
      %p48 = scmp.eq.s32.totalorder %s22, 0
      %p49 = por %p47, %p48
      %s51 = sadd.s32 %s50, 1
      %p54 = scmp.eq.s32.totalorder %s16, 1
      %p55 = scmp.ne.s32.totalorder %s50, %s52
      %p56 = scmp.eq.s32.totalorder %s16, 0
      %p57 = por %p55, %p56
      %p58 = scmp.ne.s32.totalorder %s50, %s52
      %p59 = scmp.eq.s32.totalorder %s21, 1
      %p60 = por %p58, %p59
      %p61 = scmp.ne.s32.totalorder %s52, %s53
      %p62 = scmp.eq.s32.totalorder %s21, 0
      %p63 = por %p61, %p62
      %p64 = scmp.ne.s32.totalorder %s52, %s53
      %p65 = scmp.eq.s32.totalorder %s22, 1
      %p66 = por %p64, %p65
      %p68 = scmp.ne.s32.totalorder %s53, %s67
      %p69 = scmp.eq.s32.totalorder %s22, 0
      %p70 = por %p68, %p69
      %s72 = sadd.s32 %s71, 1
      %p75 = scmp.eq.s32.totalorder %s16, 1
      %p76 = scmp.ne.s32.totalorder %s71, %s73
      %p77 = scmp.eq.s32.totalorder %s16, 0
      %p78 = por %p76, %p77
      %p79 = scmp.ne.s32.totalorder %s71, %s73
      %p80 = scmp.eq.s32.totalorder %s21, 1
      %p81 = por %p79, %p80
      %p82 = scmp.ne.s32.totalorder %s73, %s74
      %p83 = scmp.eq.s32.totalorder %s21, 0
      %p84 = por %p82, %p83
      %p85 = scmp.ne.s32.totalorder %s73, %s74
      %p86 = scmp.eq.s32.totalorder %s22, 1
      %p87 = por %p85, %p86
      %p89 = scmp.ne.s32.totalorder %s74, %s88
      %p90 = scmp.eq.s32.totalorder %s22, 0
      %p91 = por %p89, %p90
      %s93 = sadd.s32 %s92, 1
      %p96 = scmp.eq.s32.totalorder %s16, 1
      %p97 = scmp.ne.s32.totalorder %s92, %s94
      %p98 = scmp.eq.s32.totalorder %s16, 0
      %p99 = por %p97, %p98
      %p100 = scmp.ne.s32.totalorder %s92, %s94
      %p101 = scmp.eq.s32.totalorder %s21, 1
      %p102 = por %p100, %p101
      %p103 = scmp.ne.s32.totalorder %s94, %s95
      %p104 = scmp.eq.s32.totalorder %s21, 0
      %p105 = por %p103, %p104
      %p106 = scmp.ne.s32.totalorder %s94, %s95
      %p107 = scmp.eq.s32.totalorder %s22, 1
      %p108 = por %p106, %p107
      %p110 = scmp.ne.s32.totalorder %s95, %s109
      %p111 = scmp.eq.s32.totalorder %s22, 0
      %p112 = por %p110, %p111
      %s114 = sadd.s32 %s113, 1
      %p117 = scmp.eq.s32.totalorder %s16, 1
      %p118 = scmp.ne.s32.totalorder %s113, %s115
      %p119 = scmp.eq.s32.totalorder %s16, 0
      %p120 = por %p118, %p119
      %p121 = scmp.ne.s32.totalorder %s113, %s115
      %p122 = scmp.eq.s32.totalorder %s21, 1
      %p123 = por %p121, %p122
      %p124 = scmp.ne.s32.totalorder %s115, %s116
      %p125 = scmp.eq.s32.totalorder %s21, 0
      %p126 = por %p124, %p125
      %p127 = scmp.ne.s32.totalorder %s115, %s116
      %p128 = scmp.eq.s32.totalorder %s22, 1
      %p129 = por %p127, %p128
      %p131 = scmp.ne.s32.totalorder %s116, %s130
      %p132 = scmp.eq.s32.totalorder %s22, 0
      %p133 = por %p131, %p132
      %s135 = sadd.s32 %s134, 1
      %p138 = scmp.eq.s32.totalorder %s16, 1
      %p139 = scmp.ne.s32.totalorder %s134, %s136
      %p140 = scmp.eq.s32.totalorder %s16, 0
      %p141 = por %p139, %p140
      %p142 = scmp.ne.s32.totalorder %s134, %s136
      %p143 = scmp.eq.s32.totalorder %s21, 1
      %p144 = por %p142, %p143
      %p145 = scmp.ne.s32.totalorder %s136, %s137
      %p146 = scmp.eq.s32.totalorder %s21, 0
      %p147 = por %p145, %p146
      %p148 = scmp.ne.s32.totalorder %s136, %s137
      %p149 = scmp.eq.s32.totalorder %s22, 1
      %p150 = por %p148, %p149
      %p152 = scmp.ne.s32.totalorder %s137, %s151
      %p153 = scmp.eq.s32.totalorder %s22, 0
      %p154 = por %p152, %p153
      %s156 = sadd.s32 %s155, 1
      %p159 = scmp.eq.s32.totalorder %s16, 1
      %p160 = scmp.ne.s32.totalorder %s155, %s157
      %p161 = scmp.eq.s32.totalorder %s16, 0
      %p162 = por %p160, %p161
      %p163 = scmp.ne.s32.totalorder %s155, %s157
      %p164 = scmp.eq.s32.totalorder %s21, 1
      %p165 = por %p163, %p164
      %p166 = scmp.ne.s32.totalorder %s157, %s158
      %p167 = scmp.eq.s32.totalorder %s21, 0
      %p168 = por %p166, %p167
      %p169 = scmp.ne.s32.totalorder %s157, %s158
      %p170 = scmp.eq.s32.totalorder %s22, 1
      %p171 = por %p169, %p170
      %p173 = scmp.ne.s32.totalorder %s158, %s172
      %p174 = scmp.eq.s32.totalorder %s22, 0
      %p175 = por %p173, %p174
      %s176 = ssub.s32 %s16, %s23
      %p177 = scmp.eq.s32.totalorder %s176, 0
      %s179 = sadd.s32 %s178, 1
      %s180 = scalar_select %p177, %s178, %s179
      %p183 = pneg %p177
      %p184 = scmp.eq.s32.totalorder %s16, 1
      %p185 = por %p183, %p184
      %p186 = scmp.ne.s32.totalorder %s178, %s181
      %p187 = scmp.eq.s32.totalorder %s16, 0
      %p188 = por %p186, %p187
      %p189 = scmp.ne.s32.totalorder %s178, %s181
      %p190 = scmp.eq.s32.totalorder %s21, 1
      %p191 = por %p189, %p190
      %p192 = scmp.ne.s32.totalorder %s181, %s182
      %p193 = scmp.eq.s32.totalorder %s21, 0
      %p194 = por %p192, %p193
      %p195 = scmp.ne.s32.totalorder %s181, %s182
      %p196 = scmp.eq.s32.totalorder %s22, 1
      %p197 = por %p195, %p196
      %p199 = scmp.ne.s32.totalorder %s182, %s198
      %p200 = scmp.eq.s32.totalorder %s22, 0
      %p201 = por %p199, %p200
      %p202 = scmp.le.s32.totalorder 1, %s16
      %p203 = scmp.lt.s32.totalorder %s16, 3
      %p204 = pnand %p202, %p203
      %p205 = pneg %p204
      // Predicated region
      $region9: #{token_pretrained_forward.5} parent=5 // pred_check
        _
      $region10: #{token_pretrained_forward.5} parent=5 // pred_check_branch
        %207 = sbr.rel (%p204) target = $region12
      $region11: #{token_pretrained_forward.5} parent=5 // pred_region
        %s208 = ssub.s32 %s16, 1
        // Predicated region
        $region13: #{token_pretrained_forward.5} parent=11 // pred_check
          %p209 = pneg %p63
        $region14: #{token_pretrained_forward.5} parent=11 // pred_check_branch
          %211 = sbr.rel (%p209) target = $region16
        $region15: #{token_pretrained_forward.5} parent=11 // pred_region
          _
        $region16: #{token_pretrained_forward.5} parent=11 // pred_fallthru
          _
        // Predicated region
        $region17: #{token_pretrained_forward.5} parent=11 // pred_check
          %p212 = pneg %p84
        $region18: #{token_pretrained_forward.5} parent=11 // pred_check_branch
          %214 = sbr.rel (%p212) target = $region20
        $region19: #{token_pretrained_forward.5} parent=11 // pred_region
          _
        $region20: #{token_pretrained_forward.5} parent=11 // pred_fallthru
          _
        // Predicated region
        $region21: #{token_pretrained_forward.5} parent=11 // pred_check
          %p215 = pneg %p105
        $region22: #{token_pretrained_forward.5} parent=11 // pred_check_branch
          %217 = sbr.rel (%p215) target = $region24
        $region23: #{token_pretrained_forward.5} parent=11 // pred_region
          _
        $region24: #{token_pretrained_forward.5} parent=11 // pred_fallthru
          _
        // Predicated region
        $region25: #{token_pretrained_forward.5} parent=11 // pred_check
          %p218 = pneg %p126
        $region26: #{token_pretrained_forward.5} parent=11 // pred_check_branch
          %220 = sbr.rel (%p218) target = $region28
        $region27: #{token_pretrained_forward.5} parent=11 // pred_region
          _
        $region28: #{token_pretrained_forward.5} parent=11 // pred_fallthru
          _
        // Predicated region
        $region29: #{token_pretrained_forward.5} parent=11 // pred_check
          %p221 = pneg %p147
        $region30: #{token_pretrained_forward.5} parent=11 // pred_check_branch
          %223 = sbr.rel (%p221) target = $region32
        $region31: #{token_pretrained_forward.5} parent=11 // pred_region
          _
        $region32: #{token_pretrained_forward.5} parent=11 // pred_fallthru
          _
        // Predicated region
        $region33: #{token_pretrained_forward.5} parent=11 // pred_check
          %p224 = pneg %p168
        $region34: #{token_pretrained_forward.5} parent=11 // pred_check_branch
          %226 = sbr.rel (%p224) target = $region36
        $region35: #{token_pretrained_forward.5} parent=11 // pred_region
          _
        $region36: #{token_pretrained_forward.5} parent=11 // pred_fallthru
          _
      $region12: #{token_pretrained_forward.5} parent=5 // pred_fallthru
        _
      %p227 = scmp.lt.s32.totalorder %s16, 2
      // Predicated region
      $region37: #{token_pretrained_forward.5} parent=5 // pred_check
        %p228 = pneg %p227
      $region38: #{token_pretrained_forward.5} parent=5 // pred_check_branch
        %230 = sbr.rel (%p228) target = $region40
      $region39: #{token_pretrained_forward.5} parent=5 // pred_region
        // Predicated region
        $region41: #{token_pretrained_forward.5} parent=39 // pred_check
          %p231 = pneg %p36
        $region42: #{token_pretrained_forward.5} parent=39 // pred_check_branch
          %233 = sbr.rel (%p231) target = $region44
        $region43: #{token_pretrained_forward.5} parent=39 // pred_region
          %p234 = scmp.lt.s32.totalorder %s16, 1
          %s235 = scalar_select %p234, %s16, 1
          %s236 = smul.addr %s235, 8
          %s237 = scalar_lea.vmem %s0, %s236
        $region44: #{token_pretrained_forward.5} parent=39 // pred_fallthru
          _
      $region40: #{token_pretrained_forward.5} parent=5 // pred_fallthru
        _
      %p238 = scmp.le.s32.totalorder 1, %s16
      %p239 = scmp.lt.s32.totalorder %s16, 3
      %p240 = pnand %p238, %p239
      %p241 = pneg %p240
      // Predicated region
      $region45: #{token_pretrained_forward.5} parent=5 // pred_check
        _
      $region46: #{token_pretrained_forward.5} parent=5 // pred_check_branch
        %243 = sbr.rel (%p240) target = $region48
      $region47: #{token_pretrained_forward.5} parent=5 // pred_region
        %s244 = ssub.s32 %s16, 1
        %p245 = scmp.lt.s32.totalorder %s21, 1
        %s246 = scalar_select %p245, %s21, 1
        %s247 = smul.addr %s246, 8
        %s248 = scalar_lea.vmem %s0, %s247
        %p249 = pneg %p42
        %p250 = pneg %p39
        %p251 = pneg %p63
        %p252 = pneg %p60
        %p253 = pneg %p84
        %p254 = pneg %p81
        %p255 = pneg %p105
        %p256 = pneg %p102
        %p257 = pneg %p126
        %p258 = pneg %p123
        %p259 = pneg %p147
        %p260 = pneg %p144
        %p261 = pneg %p168
        %p262 = pneg %p165
        %p263 = pneg %p194
        %p264 = pneg %p191
        %s265 = sand.u32 %s181, 1
        %s266 = scalar_lea.sflag [#allocation3], %s265
        %s267 = sand.u32 %s181, 1
        %s268 = smul.addr %s267, 8
        %s269 = scalar_lea.vmem [#allocation2], %s268
        %p270 = scmp.lt.s32.totalorder %s21, 1
        %s271 = scalar_select %p270, %s21, 1
        %s272 = smul.addr %s271, 8
        %s273 = scalar_lea.vmem %s0, %s272
        %v275 = vld [vmem:[%s273] sm:$0xff]
        %v276 = vld [vmem:[%s1] sm:$0xf]
        %v277 = vld [vmem:[%s1 + $0x4] sm:$0xf]
        %v278 = vld [vmem:[%s1 + $0x8] sm:$0xf]
        %v279 = vld [vmem:[%s1 + $0xc] sm:$0xf]
        %v280 = vpack.c.bf16 %v275, %v275
        %v281 = vld [vmem:[%s2] sm:$0x1]
        %v282 = vunpack.c.l.bf16 %v281
        %v283 = vlaneseq
        %v284 = vshrl.u32 %v283, 7
        %v285 = vsub.s32 0, %v284
        %v286 = vrot.slane %v282, %v285
        %v291 = vunpack.c.l.b16 %v276
        %v292 = vunpack.c.l.b16 %v277
        %v293 = vunpack.c.l.b16 %v278
        %v294 = vunpack.c.l.b16 %v279
        %v295 = vpack.c.b16 %v292, %v291
        %v296 = vpack.c.b16 %v294, %v293
        %vm299 = vcmask 261120
        %v301 = vsel %vm299, %v280, 0
        %303 = vmatprep.subr.bf16.mxu0 0
        %304 = vmatpush1.bf16.msra.mxu0 %v295
        %305 = vmatprep.subr.bf16.mxu0 0
        %306 = vmatpush1.bf16.msra.mxu0 %v296
        %307 = vmatprep.subr.bf16.mxu0 0
        %308 = vmatpush1.bf16.msra.mxu0 0
        %309 = vmatprep.subr.bf16.mxu0 0
        %310 = vmatpush1.bf16.msra.mxu0 0
        %311 = vmatprep.subr.bf16.mxu0 0
        %312 = vmatpush1.bf16.msra.mxu0 0
        %313 = vmatprep.subr.bf16.mxu0 0
        %314 = vmatpush1.bf16.msra.mxu0 0
        %315 = vmatprep.subr.bf16.mxu0 0
        %316 = vmatpush1.bf16.msra.mxu0 0
        %317 = vmatprep.subr.bf16.mxu0 0
        %318 = vmatpush1.bf16.msra.mxu0 0
        %319 = vmatprep.subr.bf16.mxu0 0
        %320 = vmatpush1.bf16.msra.mxu0 0
        %321 = vmatprep.subr.bf16.mxu0 0
        %322 = vmatpush1.bf16.msra.mxu0 0
        %323 = vmatprep.subr.bf16.mxu0 0
        %324 = vmatpush1.bf16.msra.mxu0 0
        %325 = vmatprep.subr.bf16.mxu0 0
        %326 = vmatpush1.bf16.msra.mxu0 0
        %327 = vmatprep.subr.bf16.mxu0 0
        %328 = vmatpush1.bf16.msra.mxu0 0
        %329 = vmatprep.subr.bf16.mxu0 0
        %330 = vmatpush1.bf16.msra.mxu0 0
        %331 = vmatprep.subr.bf16.mxu0 0
        %332 = vmatpush1.bf16.msra.mxu0 0
        %333 = vmatprep.subr.bf16.mxu0 0
        %334 = vmatpush1.bf16.msra.mxu0 0
        %335 = vmatprep.mubr.bf16.mxu0 0
        %336 = vmatmul.mubr.bf16.gmra.mrb[0].mxu0 %v301
        %v337 = vpop.f32.mrb[0].mxu0
        %v338 = vadd.f32 %v286, %v337
        %v339 = vpop.f32.mrb[0].mxu0
        %v340 = vpop.f32.mrb[0].mxu0
        %v341 = vpop.f32.mrb[0].mxu0
        %342 = vdwg.mxu0
        %v343 = vmul.f32 %v338, 0.5
        %v344 = vmul.f32 %v338, 0.70710677
        %v345 = verf.f32.pop %v344
        %v346 = vadd.f32 %v345, 1.0
        %v347 = vmul.f32 %v343, %v346
        %v348 = vsel %vm299, %v347, 0.0
        %349 = vadd.xlane.f32.xlu0 %v348
        %v350 = vpop.xlane.xlu0 %349
        %v351 = vrcp.pop 32.0
        %v352 = vmul.f32 %v350, %v351
        %v353 = vrot.slane %v352, 4
        %v354 = vadd.f32 %v352, %v353
        %v355 = vrot.slane %v354, 2
        %v356 = vadd.f32 %v354, %v355
        %v357 = vrot.slane %v356, 1
        %v358 = vadd.f32 %v356, %v357
        %v359 = vrcp.pop 8.0
        %v360 = vmul.f32 %v358, %v359
        %v361 = vsub.f32 %v347, %v360
        %v362 = vmul.f32 %v361, %v361
        %v363 = vsel %vm299, %v362, 0.0
        %364 = vadd.xlane.f32.xlu0 %v363
        %v365 = vpop.xlane.xlu0 %364
        %v366 = vmul.f32 %v365, %v351
        %v367 = vrot.slane %v366, 4
        %v368 = vadd.f32 %v366, %v367
        %v369 = vrot.slane %v368, 2
        %v370 = vadd.f32 %v368, %v369
        %v371 = vrot.slane %v370, 1
        %v372 = vadd.f32 %v370, %v371
        %v373 = vmul.f32 %v372, %v359
        %v374 = vadd.f32 %v373, 1e-06
        %v375 = vrsqrt.pop %v374
        %v376 = vmul.f32 %v361, %v375
        %v377 = vld [vmem:[%s3] sm:$0xf]
        %v378 = vunpack.c.l.bf16 %v377
        %v379 = vmul.f32 %v376, %v378
        %v380 = vld [vmem:[%s4] sm:$0xf]
        %v381 = vunpack.c.l.bf16 %v380
        %v382 = vadd.f32 %v379, %v381
        %v383 = vld [vmem:[%s5] sm:$0xf]
        %v384 = vld [vmem:[%s5 + $0x4] sm:$0xf]
        %v385 = vld [vmem:[%s5 + $0x8] sm:$0xf]
        %v386 = vld [vmem:[%s5 + $0xc] sm:$0xf]
        %v387 = vpack.c.bf16 %v382, %v382
        %v388 = vld [vmem:[%s6] sm:$0x1]
        %v389 = vunpack.c.l.bf16 %v388
        %v390 = vlaneseq
        %v391 = vshrl.u32 %v390, 7
        %v392 = vsub.s32 0, %v391
        %v393 = vrot.slane %v389, %v392
        %v398 = vunpack.c.l.b16 %v383
        %v399 = vunpack.c.l.b16 %v384
        %v400 = vunpack.c.l.b16 %v385
        %v401 = vunpack.c.l.b16 %v386
        %v402 = vpack.c.b16 %v399, %v398
        %v403 = vpack.c.b16 %v401, %v400
        %v407 = vsel %vm299, %v387, 0
        %409 = vmatprep.subr.bf16.mxu0 0
        %410 = vmatpush1.bf16.msra.mxu0 %v402
        %411 = vmatprep.subr.bf16.mxu0 0
        %412 = vmatpush1.bf16.msra.mxu0 %v403
        %413 = vmatprep.subr.bf16.mxu0 0
        %414 = vmatpush1.bf16.msra.mxu0 0
        %415 = vmatprep.subr.bf16.mxu0 0
        %416 = vmatpush1.bf16.msra.mxu0 0
        %417 = vmatprep.subr.bf16.mxu0 0
        %418 = vmatpush1.bf16.msra.mxu0 0
        %419 = vmatprep.subr.bf16.mxu0 0
        %420 = vmatpush1.bf16.msra.mxu0 0
        %421 = vmatprep.subr.bf16.mxu0 0
        %422 = vmatpush1.bf16.msra.mxu0 0
        %423 = vmatprep.subr.bf16.mxu0 0
        %424 = vmatpush1.bf16.msra.mxu0 0
        %425 = vmatprep.subr.bf16.mxu0 0
        %426 = vmatpush1.bf16.msra.mxu0 0
        %427 = vmatprep.subr.bf16.mxu0 0
        %428 = vmatpush1.bf16.msra.mxu0 0
        %429 = vmatprep.subr.bf16.mxu0 0
        %430 = vmatpush1.bf16.msra.mxu0 0
        %431 = vmatprep.subr.bf16.mxu0 0
        %432 = vmatpush1.bf16.msra.mxu0 0
        %433 = vmatprep.subr.bf16.mxu0 0
        %434 = vmatpush1.bf16.msra.mxu0 0
        %435 = vmatprep.subr.bf16.mxu0 0
        %436 = vmatpush1.bf16.msra.mxu0 0
        %437 = vmatprep.subr.bf16.mxu0 0
        %438 = vmatpush1.bf16.msra.mxu0 0
        %439 = vmatprep.subr.bf16.mxu0 0
        %440 = vmatpush1.bf16.msra.mxu0 0
        %441 = vmatprep.mubr.bf16.mxu0 0
        %442 = vmatmul.mubr.bf16.gmra.mrb[0].mxu0 %v407
        %v443 = vpop.f32.mrb[0].mxu0
        %v444 = vadd.f32 %v393, %v443
        %v445 = vpop.f32.mrb[0].mxu0
        %v446 = vpop.f32.mrb[0].mxu0
        %v447 = vpop.f32.mrb[0].mxu0
        %448 = vdwg.mxu0
        %v449 = vrot.slane %v444, 4
        %v450 = vmax.f32 %v444, %v449
        %v451 = vrot.slane %v450, 2
        %v452 = vmax.f32 %v450, %v451
        %v453 = vrot.slane %v452, 1
        %v454 = vmax.f32 %v452, %v453
        %v455 = vsub.f32 %v444, %v454
        %v456 = vmul.f32 %v455, 1.442695
        %v457 = vpow.pop %v456
        %v458 = vrot.slane %v457, 4
        %v459 = vadd.f32 %v457, %v458
        %v460 = vrot.slane %v459, 2
        %v461 = vadd.f32 %v459, %v460
        %v462 = vrot.slane %v461, 1
        %v463 = vadd.f32 %v461, %v462
        %v464 = vlog2.pop %v463
        %v465 = vmul.f32 %v464, 0.6931472
        %v466 = vadd.f32 %v465, %v454
        %v467 = vsub.f32 %v444, %v466
        %468 = vst [vmem:[%s269] sm:$0xff] %v467
        %s469 = sand.u32 %s181, 1
        %s470 = scalar_lea.sflag [#allocation3], %s469
        %s471 = sand.u32 %s181, 1
        %s472 = smul.addr %s471, 8
        %s473 = scalar_lea.vmem [#allocation2], %s472
        // Predicated region
        $region49: #{token_pretrained_forward.5} parent=47 // pred_check
          %p474 = pneg %p191
        $region50: #{token_pretrained_forward.5} parent=47 // pred_check_branch
          %476 = sbr.rel (%p474) target = $region52
        $region51: #{token_pretrained_forward.5} parent=47 // pred_region
          %s478 = ssub.s32 128, 128
          %479 = vsyncadd %s470, %s478
          %s480 = smul.addr %s21, 128
          %s481 = scalar_lea.hbm %s7, %s480
          %s483 = sshll.u32 %s473, 4
          %s484 = int_to_ptr.vmem [resolvable:$true] %s483
          %486 = dma.vmem_to_hbm [thread:$0]  %s484, 128, %s481, %s470
        $region52: #{token_pretrained_forward.5} parent=47 // pred_fallthru
          _
      $region48: #{token_pretrained_forward.5} parent=5 // pred_fallthru
        _
      %p487 = scmp.le.s32.totalorder 2, %s16
      // Predicated region
      $region53: #{token_pretrained_forward.5} parent=5 // pred_check
        %p488 = pneg %p487
      $region54: #{token_pretrained_forward.5} parent=5 // pred_check_branch
        %490 = sbr.rel (%p488) target = $region56
      $region55: #{token_pretrained_forward.5} parent=5 // pred_region
        %s491 = ssub.s32 %s16, 2
        // Predicated region
        $region57: #{token_pretrained_forward.5} parent=55 // pred_check
          %p492 = pneg %p197
        $region58: #{token_pretrained_forward.5} parent=55 // pred_check_branch
          %494 = sbr.rel (%p492) target = $region60
        $region59: #{token_pretrained_forward.5} parent=55 // pred_region
          %s495 = sand.u32 %s182, 1
          %s496 = scalar_lea.sflag [#allocation3], %s495
          %s497 = sand.u32 %s182, 1
          %s498 = smul.addr %s497, 8
          %s499 = scalar_lea.vmem [#allocation2], %s498
          %500 = dma.done %s496, 128
        $region60: #{token_pretrained_forward.5} parent=55 // pred_fallthru
          _
      $region56: #{token_pretrained_forward.5} parent=5 // pred_fallthru
        _
    $region6: #{token_pretrained_forward.5} parent=1 // loop_footer
      %s20 = sadd.s32 1, %s16
    $region7: #{token_pretrained_forward.5} parent=1 // loop_footer_branch
      %15 = sbr.rel target = $region3
    $region8: #{token_pretrained_forward.5} parent=1 // loop_exit
      _
    %501 = vsyncpa [#allocation3], 1
    %s502 = scalar_lea.sflag [#allocation3], 1
    %503 = vsyncpa %s502, 1

// kernel: token_pretrained_forward.3
$region0: #{token_pretrained_forward.3}
  #allocation0 [shape = 'u32[]', space=smem, size = 0x4, offset = 0x4, fixed_abs, tag = 'smem constant byte address 0x4 - core index']
  #allocation1 [shape = 'u32[144,128]{1,0:T(1,128)}', space=vmem, size = 0x12000, scoped, tag = 'internal scratch']
  #allocation2 [shape = 'f32[2,8,32]{2,1,0:T(8,128)}', space=vmem, size = 0x2000, scoped, tag = 'scratch operand']
  %s0 = inlined_call_operand.vmem [shape: f32[4,8,32], index: 0, kind: input, shape index: {}]
  %s1 = inlined_call_operand.vmem [shape: f32[4,1,8], index: 1, kind: input, shape index: {}]
  %s2 = inlined_call_operand.vmem [shape: bf16[2,32,96], index: 2, kind: input, shape index: {}]
  %s3 = inlined_call_operand.vmem [shape: bf16[2,1,96], index: 3, kind: input, shape index: {}]
  %s4 = inlined_call_operand.vmem [shape: bf16[2,32,32], index: 4, kind: input, shape index: {}]
  %s5 = inlined_call_operand.vmem [shape: bf16[2,1,32], index: 5, kind: input, shape index: {}]
  %s6 = inlined_call_operand.vmem [shape: bf16[2,32,64], index: 6, kind: input, shape index: {}]
  %s7 = inlined_call_operand.vmem [shape: bf16[2,1,64], index: 7, kind: input, shape index: {}]
  %s8 = inlined_call_operand.vmem [shape: bf16[2,64,32], index: 8, kind: input, shape index: {}]
  %s9 = inlined_call_operand.vmem [shape: bf16[2,1,32], index: 9, kind: input, shape index: {}]
  %s10 = inlined_call_operand.vmem [shape: bf16[2,8,32], index: 10, kind: input, shape index: {}]
  %s11 = inlined_call_operand.vmem [shape: bf16[2,8,32], index: 11, kind: input, shape index: {}]
  %s12 = inlined_call_operand.vmem [shape: f32[4,8,32], index: 12, kind: output, shape index: {}]
  %s13 = sld [smem:[#allocation0]]
  $region89: #{token_pretrained_forward.3} parent=0
    _
  %s15 = ssub.s32 1, %s13
  %s16 = scalar_select 0, %s15, %s13
  loop: start=0, step=1, limit=6
  $region2: #{token_pretrained_forward.3} parent=0 // loop_pre_header
    _
  $region3: #{token_pretrained_forward.3} parent=0 // loop_header
    %s18 = sphi 0, %s22
    %p19 = scmp.ge.s32.totalorder %s18, 6
    %s25 = sphi 0, %s37
    %s26 = sphi 0, %s33
    %s27 = sphi 0, %s25
    %s28 = sphi 0, %s26
    %s29 = sphi 0, %s27
    %s30 = sphi 0, %s28
    %s40 = sphi 0, %s42
    %s43 = sphi 0, %s40
    %s44 = sphi 0, %s43
    %s60 = sphi 0, %s44
    %s66 = sphi 0, %s68
    %s69 = sphi 0, %s66
    %s70 = sphi 0, %s69
    %s86 = sphi 0, %s70
    %s92 = sphi 0, %s94
    %s95 = sphi 0, %s92
    %s96 = sphi 0, %s95
    %s112 = sphi 0, %s96
    %s118 = sphi 0, %s120
    %s121 = sphi 0, %s118
    %s122 = sphi 0, %s121
    %s138 = sphi 0, %s122
    %s144 = sphi 0, %s146
    %s147 = sphi 0, %s144
    %s148 = sphi 0, %s147
    %s164 = sphi 0, %s148
    %s170 = sphi 0, %s172
    %s173 = sphi 0, %s170
    %s174 = sphi 0, %s173
    %s190 = sphi 0, %s174
    %s196 = sphi 0, %s198
    %s199 = sphi 0, %s196
    %s200 = sphi 0, %s199
    %s216 = sphi 0, %s200
    %s222 = sphi 0, %s224
    %s225 = sphi 0, %s222
    %s226 = sphi 0, %s225
    %s242 = sphi 0, %s226
    %s248 = sphi 0, %s250
    %s251 = sphi 0, %s248
    %s252 = sphi 0, %s251
    %s268 = sphi 0, %s252
    %s274 = sphi 0, %s276
    %s277 = sphi 0, %s274
    %s278 = sphi 0, %s277
    %s294 = sphi 0, %s278
    %s300 = sphi 0, %s302
    %s303 = sphi 0, %s300
    %s304 = sphi 0, %s303
    %s320 = sphi 0, %s304
    %s326 = sphi 0, %s328
    %s329 = sphi 0, %s326
    %s330 = sphi 0, %s329
    %s346 = sphi 0, %s330
    %s352 = sphi 0, %s354
    %s355 = sphi 0, %s352
    %s356 = sphi 0, %s355
    %s372 = sphi 0, %s356
  $region4: #{token_pretrained_forward.3} parent=0 // loop_header_branch
    %21 = sbr.rel (%p19) target = $region8
  $region5: #{token_pretrained_forward.3} parent=0 // loop_body
    %s23 = ssub.s32 %s18, 1
    %s24 = ssub.s32 %s18, 2
    %s31 = sadd.s32 1, %s26
    %p32 = scmp.ge.s32.totalorder %s31, 2
    %s33 = scalar_select %p32, 0, %s31
    %s34 = sadd.s32 1, %s25
    %s35 = scalar_select %p32, %s34, %s25
    %p36 = scmp.ge.s32.totalorder %s35, 2
    %s37 = scalar_select %p36, 0, %s35
    %s38 = ssub.s32 %s25, %s37
    %p39 = scmp.eq.s32.totalorder %s38, 0
    %s41 = sadd.s32 %s40, 1
    %s42 = scalar_select %p39, %s40, %s41
    %p45 = pneg %p39
    %p46 = scmp.eq.s32.totalorder %s18, 3
    %p47 = por %p45, %p46
    %p48 = scmp.ne.s32.totalorder %s40, %s43
    %p49 = scmp.eq.s32.totalorder %s18, 0
    %p50 = por %p48, %p49
    %p51 = scmp.ne.s32.totalorder %s40, %s43
    %p52 = scmp.eq.s32.totalorder %s23, 3
    %p53 = por %p51, %p52
    %p54 = scmp.ne.s32.totalorder %s43, %s44
    %p55 = scmp.eq.s32.totalorder %s23, 0
    %p56 = por %p54, %p55
    %p57 = scmp.ne.s32.totalorder %s43, %s44
    %p58 = scmp.eq.s32.totalorder %s24, 3
    %p59 = por %p57, %p58
    %p61 = scmp.ne.s32.totalorder %s44, %s60
    %p62 = scmp.eq.s32.totalorder %s24, 0
    %p63 = por %p61, %p62
    %s64 = ssub.s32 %s25, %s37
    %p65 = scmp.eq.s32.totalorder %s64, 0
    %s67 = sadd.s32 %s66, 1
    %s68 = scalar_select %p65, %s66, %s67
    %p71 = pneg %p65
    %p72 = scmp.eq.s32.totalorder %s18, 3
    %p73 = por %p71, %p72
    %p74 = scmp.ne.s32.totalorder %s66, %s69
    %p75 = scmp.eq.s32.totalorder %s18, 0
    %p76 = por %p74, %p75
    %p77 = scmp.ne.s32.totalorder %s66, %s69
    %p78 = scmp.eq.s32.totalorder %s23, 3
    %p79 = por %p77, %p78
    %p80 = scmp.ne.s32.totalorder %s69, %s70
    %p81 = scmp.eq.s32.totalorder %s23, 0
    %p82 = por %p80, %p81
    %p83 = scmp.ne.s32.totalorder %s69, %s70
    %p84 = scmp.eq.s32.totalorder %s24, 3
    %p85 = por %p83, %p84
    %p87 = scmp.ne.s32.totalorder %s70, %s86
    %p88 = scmp.eq.s32.totalorder %s24, 0
    %p89 = por %p87, %p88
    %s90 = ssub.s32 %s26, %s33
    %p91 = scmp.eq.s32.totalorder %s90, 0
    %s93 = sadd.s32 %s92, 1
    %s94 = scalar_select %p91, %s92, %s93
    %p97 = pneg %p91
    %p98 = scmp.eq.s32.totalorder %s18, 3
    %p99 = por %p97, %p98
    %p100 = scmp.ne.s32.totalorder %s92, %s95
    %p101 = scmp.eq.s32.totalorder %s18, 0
    %p102 = por %p100, %p101
    %p103 = scmp.ne.s32.totalorder %s92, %s95
    %p104 = scmp.eq.s32.totalorder %s23, 3
    %p105 = por %p103, %p104
    %p106 = scmp.ne.s32.totalorder %s95, %s96
    %p107 = scmp.eq.s32.totalorder %s23, 0
    %p108 = por %p106, %p107
    %p109 = scmp.ne.s32.totalorder %s95, %s96
    %p110 = scmp.eq.s32.totalorder %s24, 3
    %p111 = por %p109, %p110
    %p113 = scmp.ne.s32.totalorder %s96, %s112
    %p114 = scmp.eq.s32.totalorder %s24, 0
    %p115 = por %p113, %p114
    %s116 = ssub.s32 %s26, %s33
    %p117 = scmp.eq.s32.totalorder %s116, 0
    %s119 = sadd.s32 %s118, 1
    %s120 = scalar_select %p117, %s118, %s119
    %p123 = pneg %p117
    %p124 = scmp.eq.s32.totalorder %s18, 3
    %p125 = por %p123, %p124
    %p126 = scmp.ne.s32.totalorder %s118, %s121
    %p127 = scmp.eq.s32.totalorder %s18, 0
    %p128 = por %p126, %p127
    %p129 = scmp.ne.s32.totalorder %s118, %s121
    %p130 = scmp.eq.s32.totalorder %s23, 3
    %p131 = por %p129, %p130
    %p132 = scmp.ne.s32.totalorder %s121, %s122
    %p133 = scmp.eq.s32.totalorder %s23, 0
    %p134 = por %p132, %p133
    %p135 = scmp.ne.s32.totalorder %s121, %s122
    %p136 = scmp.eq.s32.totalorder %s24, 3
    %p137 = por %p135, %p136
    %p139 = scmp.ne.s32.totalorder %s122, %s138
    %p140 = scmp.eq.s32.totalorder %s24, 0
    %p141 = por %p139, %p140
    %s142 = ssub.s32 %s26, %s33
    %p143 = scmp.eq.s32.totalorder %s142, 0
    %s145 = sadd.s32 %s144, 1
    %s146 = scalar_select %p143, %s144, %s145
    %p149 = pneg %p143
    %p150 = scmp.eq.s32.totalorder %s18, 3
    %p151 = por %p149, %p150
    %p152 = scmp.ne.s32.totalorder %s144, %s147
    %p153 = scmp.eq.s32.totalorder %s18, 0
    %p154 = por %p152, %p153
    %p155 = scmp.ne.s32.totalorder %s144, %s147
    %p156 = scmp.eq.s32.totalorder %s23, 3
    %p157 = por %p155, %p156
    %p158 = scmp.ne.s32.totalorder %s147, %s148
    %p159 = scmp.eq.s32.totalorder %s23, 0
    %p160 = por %p158, %p159
    %p161 = scmp.ne.s32.totalorder %s147, %s148
    %p162 = scmp.eq.s32.totalorder %s24, 3
    %p163 = por %p161, %p162
    %p165 = scmp.ne.s32.totalorder %s148, %s164
    %p166 = scmp.eq.s32.totalorder %s24, 0
    %p167 = por %p165, %p166
    %s168 = ssub.s32 %s26, %s33
    %p169 = scmp.eq.s32.totalorder %s168, 0
    %s171 = sadd.s32 %s170, 1
    %s172 = scalar_select %p169, %s170, %s171
    %p175 = pneg %p169
    %p176 = scmp.eq.s32.totalorder %s18, 3
    %p177 = por %p175, %p176
    %p178 = scmp.ne.s32.totalorder %s170, %s173
    %p179 = scmp.eq.s32.totalorder %s18, 0
    %p180 = por %p178, %p179
    %p181 = scmp.ne.s32.totalorder %s170, %s173
    %p182 = scmp.eq.s32.totalorder %s23, 3
    %p183 = por %p181, %p182
    %p184 = scmp.ne.s32.totalorder %s173, %s174
    %p185 = scmp.eq.s32.totalorder %s23, 0
    %p186 = por %p184, %p185
    %p187 = scmp.ne.s32.totalorder %s173, %s174
    %p188 = scmp.eq.s32.totalorder %s24, 3
    %p189 = por %p187, %p188
    %p191 = scmp.ne.s32.totalorder %s174, %s190
    %p192 = scmp.eq.s32.totalorder %s24, 0
    %p193 = por %p191, %p192
    %s194 = ssub.s32 %s26, %s33
    %p195 = scmp.eq.s32.totalorder %s194, 0
    %s197 = sadd.s32 %s196, 1
    %s198 = scalar_select %p195, %s196, %s197
    %p201 = pneg %p195
    %p202 = scmp.eq.s32.totalorder %s18, 3
    %p203 = por %p201, %p202
    %p204 = scmp.ne.s32.totalorder %s196, %s199
    %p205 = scmp.eq.s32.totalorder %s18, 0
    %p206 = por %p204, %p205
    %p207 = scmp.ne.s32.totalorder %s196, %s199
    %p208 = scmp.eq.s32.totalorder %s23, 3
    %p209 = por %p207, %p208
    %p210 = scmp.ne.s32.totalorder %s199, %s200
    %p211 = scmp.eq.s32.totalorder %s23, 0
    %p212 = por %p210, %p211
    %p213 = scmp.ne.s32.totalorder %s199, %s200
    %p214 = scmp.eq.s32.totalorder %s24, 3
    %p215 = por %p213, %p214
    %p217 = scmp.ne.s32.totalorder %s200, %s216
    %p218 = scmp.eq.s32.totalorder %s24, 0
    %p219 = por %p217, %p218
    %s220 = ssub.s32 %s26, %s33
    %p221 = scmp.eq.s32.totalorder %s220, 0
    %s223 = sadd.s32 %s222, 1
    %s224 = scalar_select %p221, %s222, %s223
    %p227 = pneg %p221
    %p228 = scmp.eq.s32.totalorder %s18, 3
    %p229 = por %p227, %p228
    %p230 = scmp.ne.s32.totalorder %s222, %s225
    %p231 = scmp.eq.s32.totalorder %s18, 0
    %p232 = por %p230, %p231
    %p233 = scmp.ne.s32.totalorder %s222, %s225
    %p234 = scmp.eq.s32.totalorder %s23, 3
    %p235 = por %p233, %p234
    %p236 = scmp.ne.s32.totalorder %s225, %s226
    %p237 = scmp.eq.s32.totalorder %s23, 0
    %p238 = por %p236, %p237
    %p239 = scmp.ne.s32.totalorder %s225, %s226
    %p240 = scmp.eq.s32.totalorder %s24, 3
    %p241 = por %p239, %p240
    %p243 = scmp.ne.s32.totalorder %s226, %s242
    %p244 = scmp.eq.s32.totalorder %s24, 0
    %p245 = por %p243, %p244
    %s246 = ssub.s32 %s26, %s33
    %p247 = scmp.eq.s32.totalorder %s246, 0
    %s249 = sadd.s32 %s248, 1
    %s250 = scalar_select %p247, %s248, %s249
    %p253 = pneg %p247
    %p254 = scmp.eq.s32.totalorder %s18, 3
    %p255 = por %p253, %p254
    %p256 = scmp.ne.s32.totalorder %s248, %s251
    %p257 = scmp.eq.s32.totalorder %s18, 0
    %p258 = por %p256, %p257
    %p259 = scmp.ne.s32.totalorder %s248, %s251
    %p260 = scmp.eq.s32.totalorder %s23, 3
    %p261 = por %p259, %p260
    %p262 = scmp.ne.s32.totalorder %s251, %s252
    %p263 = scmp.eq.s32.totalorder %s23, 0
    %p264 = por %p262, %p263
    %p265 = scmp.ne.s32.totalorder %s251, %s252
    %p266 = scmp.eq.s32.totalorder %s24, 3
    %p267 = por %p265, %p266
    %p269 = scmp.ne.s32.totalorder %s252, %s268
    %p270 = scmp.eq.s32.totalorder %s24, 0
    %p271 = por %p269, %p270
    %s272 = ssub.s32 %s26, %s33
    %p273 = scmp.eq.s32.totalorder %s272, 0
    %s275 = sadd.s32 %s274, 1
    %s276 = scalar_select %p273, %s274, %s275
    %p279 = pneg %p273
    %p280 = scmp.eq.s32.totalorder %s18, 3
    %p281 = por %p279, %p280
    %p282 = scmp.ne.s32.totalorder %s274, %s277
    %p283 = scmp.eq.s32.totalorder %s18, 0
    %p284 = por %p282, %p283
    %p285 = scmp.ne.s32.totalorder %s274, %s277
    %p286 = scmp.eq.s32.totalorder %s23, 3
    %p287 = por %p285, %p286
    %p288 = scmp.ne.s32.totalorder %s277, %s278
    %p289 = scmp.eq.s32.totalorder %s23, 0
    %p290 = por %p288, %p289
    %p291 = scmp.ne.s32.totalorder %s277, %s278
    %p292 = scmp.eq.s32.totalorder %s24, 3
    %p293 = por %p291, %p292
    %p295 = scmp.ne.s32.totalorder %s278, %s294
    %p296 = scmp.eq.s32.totalorder %s24, 0
    %p297 = por %p295, %p296
    %s298 = ssub.s32 %s26, %s33
    %p299 = scmp.eq.s32.totalorder %s298, 0
    %s301 = sadd.s32 %s300, 1
    %s302 = scalar_select %p299, %s300, %s301
    %p305 = pneg %p299
    %p306 = scmp.eq.s32.totalorder %s18, 3
    %p307 = por %p305, %p306
    %p308 = scmp.ne.s32.totalorder %s300, %s303
    %p309 = scmp.eq.s32.totalorder %s18, 0
    %p310 = por %p308, %p309
    %p311 = scmp.ne.s32.totalorder %s300, %s303
    %p312 = scmp.eq.s32.totalorder %s23, 3
    %p313 = por %p311, %p312
    %p314 = scmp.ne.s32.totalorder %s303, %s304
    %p315 = scmp.eq.s32.totalorder %s23, 0
    %p316 = por %p314, %p315
    %p317 = scmp.ne.s32.totalorder %s303, %s304
    %p318 = scmp.eq.s32.totalorder %s24, 3
    %p319 = por %p317, %p318
    %p321 = scmp.ne.s32.totalorder %s304, %s320
    %p322 = scmp.eq.s32.totalorder %s24, 0
    %p323 = por %p321, %p322
    %s324 = ssub.s32 %s26, %s33
    %p325 = scmp.eq.s32.totalorder %s324, 0
    %s327 = sadd.s32 %s326, 1
    %s328 = scalar_select %p325, %s326, %s327
    %p331 = pneg %p325
    %p332 = scmp.eq.s32.totalorder %s18, 3
    %p333 = por %p331, %p332
    %p334 = scmp.ne.s32.totalorder %s326, %s329
    %p335 = scmp.eq.s32.totalorder %s18, 0
    %p336 = por %p334, %p335
    %p337 = scmp.ne.s32.totalorder %s326, %s329
    %p338 = scmp.eq.s32.totalorder %s23, 3
    %p339 = por %p337, %p338
    %p340 = scmp.ne.s32.totalorder %s329, %s330
    %p341 = scmp.eq.s32.totalorder %s23, 0
    %p342 = por %p340, %p341
    %p343 = scmp.ne.s32.totalorder %s329, %s330
    %p344 = scmp.eq.s32.totalorder %s24, 3
    %p345 = por %p343, %p344
    %p347 = scmp.ne.s32.totalorder %s330, %s346
    %p348 = scmp.eq.s32.totalorder %s24, 0
    %p349 = por %p347, %p348
    %s350 = ssub.s32 %s25, %s37
    %p351 = scmp.eq.s32.totalorder %s350, 0
    %s353 = sadd.s32 %s352, 1
    %s354 = scalar_select %p351, %s352, %s353
    %p357 = pneg %p351
    %p358 = scmp.eq.s32.totalorder %s18, 3
    %p359 = por %p357, %p358
    %p360 = scmp.ne.s32.totalorder %s352, %s355
    %p361 = scmp.eq.s32.totalorder %s18, 0
    %p362 = por %p360, %p361
    %p363 = scmp.ne.s32.totalorder %s352, %s355
    %p364 = scmp.eq.s32.totalorder %s23, 3
    %p365 = por %p363, %p364
    %p366 = scmp.ne.s32.totalorder %s355, %s356
    %p367 = scmp.eq.s32.totalorder %s23, 0
    %p368 = por %p366, %p367
    %p369 = scmp.ne.s32.totalorder %s355, %s356
    %p370 = scmp.eq.s32.totalorder %s24, 3
    %p371 = por %p369, %p370
    %p373 = scmp.ne.s32.totalorder %s356, %s372
    %p374 = scmp.eq.s32.totalorder %s24, 0
    %p375 = por %p373, %p374
    %p376 = scmp.le.s32.totalorder 1, %s18
    %p377 = scmp.lt.s32.totalorder %s18, 5
    %p378 = pnand %p376, %p377
    %p379 = pneg %p378
    // Predicated region
    $region9: #{token_pretrained_forward.3} parent=5 // pred_check
      _
    $region10: #{token_pretrained_forward.3} parent=5 // pred_check_branch
      %381 = sbr.rel (%p378) target = $region12
    $region11: #{token_pretrained_forward.3} parent=5 // pred_region
      %s382 = ssub.s32 %s18, 1
    $region12: #{token_pretrained_forward.3} parent=5 // pred_fallthru
      _
    %p383 = scmp.lt.s32.totalorder %s18, 4
    // Predicated region
    $region13: #{token_pretrained_forward.3} parent=5 // pred_check
      %p384 = pneg %p383
    $region14: #{token_pretrained_forward.3} parent=5 // pred_check_branch
      %386 = sbr.rel (%p384) target = $region16
    $region15: #{token_pretrained_forward.3} parent=5 // pred_region
      // Predicated region
      $region17: #{token_pretrained_forward.3} parent=15 // pred_check
        %p387 = pneg %p50
      $region18: #{token_pretrained_forward.3} parent=15 // pred_check_branch
        %389 = sbr.rel (%p387) target = $region20
      $region19: #{token_pretrained_forward.3} parent=15 // pred_region
        %s390 = smul.u32 2, %s25
        %p391 = scmp.lt.s32.totalorder %s390, 3
        %s392 = scalar_select %p391, %s390, 3
        %s393 = smul.addr %s392, 8
        %s394 = scalar_lea.vmem %s0, %s393
        %s395 = smul.u32 2, %s25
      $region20: #{token_pretrained_forward.3} parent=15 // pred_fallthru
        _
      // Predicated region
      $region21: #{token_pretrained_forward.3} parent=15 // pred_check
        %p396 = pneg %p76
      $region22: #{token_pretrained_forward.3} parent=15 // pred_check_branch
        %398 = sbr.rel (%p396) target = $region24
      $region23: #{token_pretrained_forward.3} parent=15 // pred_region
        %s399 = smul.u32 2, %s25
        %p400 = scmp.lt.s32.totalorder %s399, 3
        %s401 = scalar_select %p400, %s399, 3
        %s402 = scalar_lea.vmem %s1, %s401
        %s403 = smul.u32 2, %s25
      $region24: #{token_pretrained_forward.3} parent=15 // pred_fallthru
        _
      // Predicated region
      $region25: #{token_pretrained_forward.3} parent=15 // pred_check
        %p404 = pneg %p102
      $region26: #{token_pretrained_forward.3} parent=15 // pred_check_branch
        %406 = sbr.rel (%p404) target = $region28
      $region27: #{token_pretrained_forward.3} parent=15 // pred_region
        %p407 = scmp.lt.s32.totalorder %s26, 1
        %s408 = scalar_select %p407, %s26, 1
        %s409 = smul.addr %s408, 4
        %s410 = smul.addr %s409, 4
        %s411 = scalar_lea.vmem %s2, %s410
      $region28: #{token_pretrained_forward.3} parent=15 // pred_fallthru
        _
      // Predicated region
      $region29: #{token_pretrained_forward.3} parent=15 // pred_check
        %p412 = pneg %p128
      $region30: #{token_pretrained_forward.3} parent=15 // pred_check_branch
        %414 = sbr.rel (%p412) target = $region32
      $region31: #{token_pretrained_forward.3} parent=15 // pred_region
        %p415 = scmp.lt.s32.totalorder %s26, 1
        %s416 = scalar_select %p415, %s26, 1
        %s417 = scalar_lea.vmem %s3, %s416
      $region32: #{token_pretrained_forward.3} parent=15 // pred_fallthru
        _
      // Predicated region
      $region33: #{token_pretrained_forward.3} parent=15 // pred_check
        %p418 = pneg %p154
      $region34: #{token_pretrained_forward.3} parent=15 // pred_check_branch
        %420 = sbr.rel (%p418) target = $region36
      $region35: #{token_pretrained_forward.3} parent=15 // pred_region
        %p421 = scmp.lt.s32.totalorder %s26, 1
        %s422 = scalar_select %p421, %s26, 1
        %s423 = smul.addr %s422, 4
        %s424 = smul.addr %s423, 4
        %s425 = scalar_lea.vmem %s4, %s424
      $region36: #{token_pretrained_forward.3} parent=15 // pred_fallthru
        _
      // Predicated region
      $region37: #{token_pretrained_forward.3} parent=15 // pred_check
        %p426 = pneg %p180
      $region38: #{token_pretrained_forward.3} parent=15 // pred_check_branch
        %428 = sbr.rel (%p426) target = $region40
      $region39: #{token_pretrained_forward.3} parent=15 // pred_region
        %p429 = scmp.lt.s32.totalorder %s26, 1
        %s430 = scalar_select %p429, %s26, 1
        %s431 = scalar_lea.vmem %s5, %s430
      $region40: #{token_pretrained_forward.3} parent=15 // pred_fallthru
        _
      // Predicated region
      $region41: #{token_pretrained_forward.3} parent=15 // pred_check
        %p432 = pneg %p206
      $region42: #{token_pretrained_forward.3} parent=15 // pred_check_branch
        %434 = sbr.rel (%p432) target = $region44
      $region43: #{token_pretrained_forward.3} parent=15 // pred_region
        %p435 = scmp.lt.s32.totalorder %s26, 1
        %s436 = scalar_select %p435, %s26, 1
        %s437 = smul.addr %s436, 4
        %s438 = smul.addr %s437, 4
        %s439 = scalar_lea.vmem %s6, %s438
      $region44: #{token_pretrained_forward.3} parent=15 // pred_fallthru
        _
      // Predicated region
      $region45: #{token_pretrained_forward.3} parent=15 // pred_check
        %p440 = pneg %p232
      $region46: #{token_pretrained_forward.3} parent=15 // pred_check_branch
        %442 = sbr.rel (%p440) target = $region48
      $region47: #{token_pretrained_forward.3} parent=15 // pred_region
        %p443 = scmp.lt.s32.totalorder %s26, 1
        %s444 = scalar_select %p443, %s26, 1
        %s445 = scalar_lea.vmem %s7, %s444
      $region48: #{token_pretrained_forward.3} parent=15 // pred_fallthru
        _
      // Predicated region
      $region49: #{token_pretrained_forward.3} parent=15 // pred_check
        %p446 = pneg %p258
      $region50: #{token_pretrained_forward.3} parent=15 // pred_check_branch
        %448 = sbr.rel (%p446) target = $region52
      $region51: #{token_pretrained_forward.3} parent=15 // pred_region
        %p449 = scmp.lt.s32.totalorder %s26, 1
        %s450 = scalar_select %p449, %s26, 1
        %s451 = smul.addr %s450, 8
        %s452 = smul.addr %s451, 4
        %s453 = scalar_lea.vmem %s8, %s452
      $region52: #{token_pretrained_forward.3} parent=15 // pred_fallthru
        _
      // Predicated region
      $region53: #{token_pretrained_forward.3} parent=15 // pred_check
        %p454 = pneg %p284
      $region54: #{token_pretrained_forward.3} parent=15 // pred_check_branch
        %456 = sbr.rel (%p454) target = $region56
      $region55: #{token_pretrained_forward.3} parent=15 // pred_region
        %p457 = scmp.lt.s32.totalorder %s26, 1
        %s458 = scalar_select %p457, %s26, 1
        %s459 = scalar_lea.vmem %s9, %s458
      $region56: #{token_pretrained_forward.3} parent=15 // pred_fallthru
        _
      // Predicated region
      $region57: #{token_pretrained_forward.3} parent=15 // pred_check
        %p460 = pneg %p310
      $region58: #{token_pretrained_forward.3} parent=15 // pred_check_branch
        %462 = sbr.rel (%p460) target = $region60
      $region59: #{token_pretrained_forward.3} parent=15 // pred_region
        %p463 = scmp.lt.s32.totalorder %s26, 1
        %s464 = scalar_select %p463, %s26, 1
        %s465 = smul.addr %s464, 4
        %s466 = scalar_lea.vmem %s10, %s465
      $region60: #{token_pretrained_forward.3} parent=15 // pred_fallthru
        _
      // Predicated region
      $region61: #{token_pretrained_forward.3} parent=15 // pred_check
        %p467 = pneg %p336
      $region62: #{token_pretrained_forward.3} parent=15 // pred_check_branch
        %469 = sbr.rel (%p467) target = $region64
      $region63: #{token_pretrained_forward.3} parent=15 // pred_region
        %p470 = scmp.lt.s32.totalorder %s26, 1
        %s471 = scalar_select %p470, %s26, 1
        %s472 = smul.addr %s471, 4
        %s473 = scalar_lea.vmem %s11, %s472
      $region64: #{token_pretrained_forward.3} parent=15 // pred_fallthru
        _
    $region16: #{token_pretrained_forward.3} parent=5 // pred_fallthru
      _
    %p474 = scmp.le.s32.totalorder 1, %s18
    %p475 = scmp.lt.s32.totalorder %s18, 5
    %p476 = pnand %p474, %p475
    %p477 = pneg %p476
    // Predicated region
    $region65: #{token_pretrained_forward.3} parent=5 // pred_check
      _
    $region66: #{token_pretrained_forward.3} parent=5 // pred_check_branch
      %479 = sbr.rel (%p476) target = $region68
    $region67: #{token_pretrained_forward.3} parent=5 // pred_region
      %s480 = ssub.s32 %s18, 1
      %s481 = smul.u32 2, %s27
      %p482 = scmp.lt.s32.totalorder %s481, 3
      %s483 = scalar_select %p482, %s481, 3
      %s484 = smul.addr %s483, 8
      %s485 = scalar_lea.vmem %s0, %s484
      %p486 = pneg %p56
      %p487 = pneg %p53
      %s488 = smul.u32 2, %s27
      %p489 = scmp.lt.s32.totalorder %s488, 3
      %s490 = scalar_select %p489, %s488, 3
      %s491 = scalar_lea.vmem %s1, %s490
      %p492 = pneg %p82
      %p493 = pneg %p79
      %p494 = scmp.lt.s32.totalorder %s28, 1
      %s495 = scalar_select %p494, %s28, 1
      %s496 = smul.addr %s495, 4
      %s497 = smul.addr %s496, 4
      %s498 = scalar_lea.vmem %s2, %s497
      %p499 = pneg %p108
      %p500 = pneg %p105
      %p501 = scmp.lt.s32.totalorder %s28, 1
      %s502 = scalar_select %p501, %s28, 1
      %s503 = scalar_lea.vmem %s3, %s502
      %p504 = pneg %p134
      %p505 = pneg %p131
      %p506 = scmp.lt.s32.totalorder %s28, 1
      %s507 = scalar_select %p506, %s28, 1
      %s508 = smul.addr %s507, 4
      %s509 = smul.addr %s508, 4
      %s510 = scalar_lea.vmem %s4, %s509
      %p511 = pneg %p160
      %p512 = pneg %p157
      %p513 = scmp.lt.s32.totalorder %s28, 1
      %s514 = scalar_select %p513, %s28, 1
      %s515 = scalar_lea.vmem %s5, %s514
      %p516 = pneg %p186
      %p517 = pneg %p183
      %p518 = scmp.lt.s32.totalorder %s28, 1
      %s519 = scalar_select %p518, %s28, 1
      %s520 = smul.addr %s519, 4
      %s521 = smul.addr %s520, 4
      %s522 = scalar_lea.vmem %s6, %s521
      %p523 = pneg %p212
      %p524 = pneg %p209
      %p525 = scmp.lt.s32.totalorder %s28, 1
      %s526 = scalar_select %p525, %s28, 1
      %s527 = scalar_lea.vmem %s7, %s526
      %p528 = pneg %p238
      %p529 = pneg %p235
      %p530 = scmp.lt.s32.totalorder %s28, 1
      %s531 = scalar_select %p530, %s28, 1
      %s532 = smul.addr %s531, 8
      %s533 = smul.addr %s532, 4
      %s534 = scalar_lea.vmem %s8, %s533
      %p535 = pneg %p264
      %p536 = pneg %p261
      %p537 = scmp.lt.s32.totalorder %s28, 1
      %s538 = scalar_select %p537, %s28, 1
      %s539 = scalar_lea.vmem %s9, %s538
      %p540 = pneg %p290
      %p541 = pneg %p287
      %p542 = scmp.lt.s32.totalorder %s28, 1
      %s543 = scalar_select %p542, %s28, 1
      %s544 = smul.addr %s543, 4
      %s545 = scalar_lea.vmem %s10, %s544
      %p546 = pneg %p316
      %p547 = pneg %p313
      %p548 = scmp.lt.s32.totalorder %s28, 1
      %s549 = scalar_select %p548, %s28, 1
      %s550 = smul.addr %s549, 4
      %s551 = scalar_lea.vmem %s11, %s550
      %p552 = pneg %p342
      %p553 = pneg %p339
      %p554 = pneg %p368
      %p555 = pneg %p365
      %s556 = smul.u32 2, %s27
      %p557 = scmp.lt.s32.totalorder %s556, 3
      %s558 = scalar_select %p557, %s556, 3
      %s559 = smul.addr %s558, 8
      %s560 = scalar_lea.vmem %s12, %s559
      %s561 = smul.u32 2, %s27
      %p562 = scmp.lt.s32.totalorder %s561, 3
      %s563 = scalar_select %p562, %s561, 3
      %s564 = smul.addr %s563, 8
      %s565 = scalar_lea.vmem %s0, %s564
      %s566 = smul.u32 2, %s27
      %s567 = smul.u32 2, %s27
      %p568 = scmp.lt.s32.totalorder %s567, 3
      %s569 = scalar_select %p568, %s567, 3
      %s570 = scalar_lea.vmem %s1, %s569
      %s571 = smul.u32 2, %s27
      %p572 = scmp.lt.s32.totalorder %s28, 1
      %s573 = scalar_select %p572, %s28, 1
      %s574 = smul.addr %s573, 4
      %s575 = smul.addr %s574, 4
      %s576 = scalar_lea.vmem %s2, %s575
      %p577 = scmp.lt.s32.totalorder %s28, 1
      %s578 = scalar_select %p577, %s28, 1
      %s579 = scalar_lea.vmem %s3, %s578
      %p580 = scmp.lt.s32.totalorder %s28, 1
      %s581 = scalar_select %p580, %s28, 1
      %s582 = smul.addr %s581, 4
      %s583 = smul.addr %s582, 4
      %s584 = scalar_lea.vmem %s4, %s583
      %p585 = scmp.lt.s32.totalorder %s28, 1
      %s586 = scalar_select %p585, %s28, 1
      %s587 = scalar_lea.vmem %s5, %s586
      %p588 = scmp.lt.s32.totalorder %s28, 1
      %s589 = scalar_select %p588, %s28, 1
      %s590 = smul.addr %s589, 4
      %s591 = smul.addr %s590, 4
      %s592 = scalar_lea.vmem %s6, %s591
      %p593 = scmp.lt.s32.totalorder %s28, 1
      %s594 = scalar_select %p593, %s28, 1
      %s595 = scalar_lea.vmem %s7, %s594
      %p596 = scmp.lt.s32.totalorder %s28, 1
      %s597 = scalar_select %p596, %s28, 1
      %s598 = smul.addr %s597, 8
      %s599 = smul.addr %s598, 4
      %s600 = scalar_lea.vmem %s8, %s599
      %p601 = scmp.lt.s32.totalorder %s28, 1
      %s602 = scalar_select %p601, %s28, 1
      %s603 = scalar_lea.vmem %s9, %s602
      %p604 = scmp.lt.s32.totalorder %s28, 1
      %s605 = scalar_select %p604, %s28, 1
      %s606 = smul.addr %s605, 4
      %s607 = scalar_lea.vmem %s10, %s606
      %p608 = scmp.lt.s32.totalorder %s28, 1
      %s609 = scalar_select %p608, %s28, 1
      %s610 = smul.addr %s609, 4
      %s611 = scalar_lea.vmem %s11, %s610
      %s612 = smul.u32 2, %s27
      %p613 = scmp.lt.s32.totalorder %s612, 3
      %s614 = scalar_select %p613, %s612, 3
      %s615 = smul.addr %s614, 8
      %s616 = scalar_lea.vmem %s12, %s615
      %s617 = smul.u32 2, %s27
      %p619 = scmp.eq.s32.totalorder %s28, 0
      // Predicated region
      $region69: #{token_pretrained_forward.3} parent=67 // pred_check
        %p620 = pneg %p619
      $region70: #{token_pretrained_forward.3} parent=67 // pred_check_branch
        %622 = sbr.rel (%p620) target = $region72
      $region71: #{token_pretrained_forward.3} parent=67 // pred_region
        %v623 = vld [vmem:[%s565] sm:$0xff]
        %v624 = vld [vmem:[%s565 + $0x8] sm:$0xff]
        %vm625 = vcmask 261120
        %626 = vst.msk [vmem:[#allocation2] sm:$0xff] %vm625, %v623
        %627 = vst.msk [vmem:[#allocation2 + $0x8] sm:$0xff] %vm625, %v624
      $region72: #{token_pretrained_forward.3} parent=67 // pred_fallthru
        _
      %v628 = vld [vmem:[#allocation2] sm:$0xff]
      %v629 = vld [vmem:[#allocation2 + $0x8] sm:$0xff]
      %v630 = vld [vmem:[%s576] sm:$0xf]
      %v631 = vld [vmem:[%s576 + $0x4] sm:$0xf]
      %v632 = vld [vmem:[%s576 + $0x8] sm:$0xf]
      %v633 = vld [vmem:[%s576 + $0xc] sm:$0xf]
      %v634 = vpack.c.bf16 %v629, %v628
      %v635 = vld [vmem:[%s579] sm:$0x1]
      %v636 = vunpack.c.l.bf16 %v635
      %v637 = vlaneseq
      %v638 = vshrl.u32 %v637, 7
      %v639 = vsub.s32 0, %v638
      %v640 = vrot.slane %v636, %v639
      %v645 = vunpack.c.l.b16 %v630
      %v646 = vunpack.c.l.b16 %v631
      %v647 = vunpack.c.l.b16 %v632
      %v648 = vunpack.c.l.b16 %v633
      %v649 = vpack.c.b16 %v646, %v645
      %v650 = vpack.c.b16 %v648, %v647
      %vm653 = vcmask 261120
      %v655 = vsel %vm653, %v634, 0
      %657 = vmatprep.subr.bf16.mxu0 0
      %658 = vmatpush1.bf16.msra.mxu0 %v649
      %659 = vmatprep.subr.bf16.mxu0 0
      %660 = vmatpush1.bf16.msra.mxu0 %v650
      %661 = vmatprep.subr.bf16.mxu0 0
      %662 = vmatpush1.bf16.msra.mxu0 0
      %663 = vmatprep.subr.bf16.mxu0 0
      %664 = vmatpush1.bf16.msra.mxu0 0
      %665 = vmatprep.subr.bf16.mxu0 0
      %666 = vmatpush1.bf16.msra.mxu0 0
      %667 = vmatprep.subr.bf16.mxu0 0
      %668 = vmatpush1.bf16.msra.mxu0 0
      %669 = vmatprep.subr.bf16.mxu0 0
      %670 = vmatpush1.bf16.msra.mxu0 0
      %671 = vmatprep.subr.bf16.mxu0 0
      %672 = vmatpush1.bf16.msra.mxu0 0
      %673 = vmatprep.subr.bf16.mxu0 0
      %674 = vmatpush1.bf16.msra.mxu0 0
      %675 = vmatprep.subr.bf16.mxu0 0
      %676 = vmatpush1.bf16.msra.mxu0 0
      %677 = vmatprep.subr.bf16.mxu0 0
      %678 = vmatpush1.bf16.msra.mxu0 0
      %679 = vmatprep.subr.bf16.mxu0 0
      %680 = vmatpush1.bf16.msra.mxu0 0
      %681 = vmatprep.subr.bf16.mxu0 0
      %682 = vmatpush1.bf16.msra.mxu0 0
      %683 = vmatprep.subr.bf16.mxu0 0
      %684 = vmatpush1.bf16.msra.mxu0 0
      %685 = vmatprep.subr.bf16.mxu0 0
      %686 = vmatpush1.bf16.msra.mxu0 0
      %687 = vmatprep.subr.bf16.mxu0 0
      %688 = vmatpush1.bf16.msra.mxu0 0
      %689 = vmatprep.mubr.bf16.mxu0 0
      %690 = vmatmul.mubr.bf16.gmra.mrb[0].mxu0 %v655
      %v691 = vpop.f32.mrb[0].mxu0
      %v692 = vadd.f32 %v640, %v691
      %v693 = vpop.f32.mrb[0].mxu0
      %v694 = vpop.f32.mrb[0].mxu0
      %v695 = vadd.f32 %v640, %v694
      %v696 = vpop.f32.mrb[0].mxu0
      %697 = vdwg.mxu0
      %v698 = vld [vmem:[%s570] sm:$0x1]
      %v699 = vld [vmem:[%s570 + $0x1] sm:$0x1]
      %v700 = vld [vmem:[%s584] sm:$0xf]
      %v701 = vld [vmem:[%s584 + $0x4] sm:$0xf]
      %v702 = vld [vmem:[%s584 + $0x8] sm:$0xf]
      %v703 = vld [vmem:[%s584 + $0xc] sm:$0xf]
      %v704 = vunpack.c.l.bf16 %v700
      %v705 = vunpack.c.l.bf16 %v701
      %v706 = vunpack.c.l.bf16 %v702
      %v707 = vunpack.c.l.bf16 %v703
      %v710 = vlaneseq
      %v711 = vshrl.u32 %v710, 7
      %v712 = vsub.s32 0, %v711
      %v713 = vrot.slane %v698, %v712
      %v714 = vlaneseq
      %v715 = vshrl.u32 %v714, 7
      %v716 = vsub.s32 0, %v715
      %v717 = vrot.slane %v699, %v716
      %721 = vrot.lane.b32.xlu0 %v692, 96
      %v722 = vpop.permute.xlu0 %721
      %vm723 = vcmask 64512
      %v724 = vsel %vm723, %v692, 0
      %v726 = vsel %vm723, %v722, 0
      %728 = vmatprep.subr.mxu0 0.0
      %729 = vmatpush1.xpose.msra.mxu0 %v726
      %730 = vmatprep.subr.mxu0 0.0
      %731 = vmatpush1.xpose.msra.mxu0 0.0
      %732 = vmatprep.subr.mxu0 0.0
      %733 = vmatpush1.xpose.msra.mxu0 0.0
      %734 = vmatprep.subr.mxu0 0.0
      %735 = vmatpush1.xpose.msra.mxu0 0.0
      %736 = vmatprep.subr.mxu0 0.0
      %737 = vmatpush1.xpose.msra.mxu0 0.0
      %738 = vmatprep.subr.mxu0 0.0
      %739 = vmatpush1.xpose.msra.mxu0 0.0
      %740 = vmatprep.subr.mxu0 0.0
      %741 = vmatpush1.xpose.msra.mxu0 0.0
      %742 = vmatprep.subr.mxu0 0.0
      %743 = vmatpush1.xpose.msra.mxu0 0.0
      %744 = vmatprep.subr.mxu0 0.0
      %745 = vmatpush1.xpose.msra.mxu0 0.0
      %746 = vmatprep.subr.mxu0 0.0
      %747 = vmatpush1.xpose.msra.mxu0 0.0
      %748 = vmatprep.subr.mxu0 0.0
      %749 = vmatpush1.xpose.msra.mxu0 0.0
      %750 = vmatprep.subr.mxu0 0.0
      %751 = vmatpush1.xpose.msra.mxu0 0.0
      %752 = vmatprep.subr.mxu0 0.0
      %753 = vmatpush1.xpose.msra.mxu0 0.0
      %754 = vmatprep.subr.mxu0 0.0
      %755 = vmatpush1.xpose.msra.mxu0 0.0
      %756 = vmatprep.subr.mxu0 0.0
      %757 = vmatpush1.xpose.msra.mxu0 0.0
      %758 = vmatprep.subr.mxu0 0.0
      %759 = vmatpush1.xpose.msra.mxu0 0.0
      %760 = vmatprep.subr.mxu0 0.0
      %761 = vmatpush1.xpose.msra.mxu0 0.0
      %762 = vmatprep.subr.mxu0 0.0
      %763 = vmatpush1.xpose.msra.mxu0 0.0
      %764 = vmatprep.subr.mxu0 0.0
      %765 = vmatpush1.xpose.msra.mxu0 0.0
      %766 = vmatprep.subr.mxu0 0.0
      %767 = vmatpush1.xpose.msra.mxu0 0.0
      %768 = vmatprep.subr.mxu0 0.0
      %769 = vmatpush1.xpose.msra.mxu0 0.0
      %770 = vmatprep.subr.mxu0 0.0
      %771 = vmatpush1.xpose.msra.mxu0 0.0
      %772 = vmatprep.subr.mxu0 0.0
      %773 = vmatpush1.xpose.msra.mxu0 0.0
      %774 = vmatprep.subr.mxu0 0.0
      %775 = vmatpush1.xpose.msra.mxu0 0.0
      %776 = vmatprep.subr.mxu0 0.0
      %777 = vmatpush1.xpose.msra.mxu0 0.0
      %778 = vmatprep.subr.mxu0 0.0
      %779 = vmatpush1.xpose.msra.mxu0 0.0
      %780 = vmatprep.subr.mxu0 0.0
      %781 = vmatpush1.xpose.msra.mxu0 0.0
      %782 = vmatprep.subr.mxu0 0.0
      %783 = vmatpush1.xpose.msra.mxu0 0.0
      %784 = vmatprep.subr.mxu0 0.0
      %785 = vmatpush1.xpose.msra.mxu0 0.0
      %786 = vmatprep.subr.mxu0 0.0
      %787 = vmatpush1.xpose.msra.mxu0 0.0
      %788 = vmatprep.subr.mxu0 0.0
      %789 = vmatpush1.xpose.msra.mxu0 0.0
      %790 = vmatprep.subr.mxu0 0.0
      %791 = vmatpush1.xpose.msra.mxu0 0.0
      %792 = vmatprep.mubr.f32.mxu0 0.0
      %793 = vmatmul.mubr.f32.gmra.mrb[0].mxu0 %v724
      %v794 = vpop.f32.mrb[0].mxu0
      %v795 = vadd.f32 %v713, %v794
      %v796 = vpop.f32.mrb[0].mxu0
      %797 = vdwg.mxu0
      %799 = vrot.lane.b32.xlu0 %v695, 96
      %v800 = vpop.permute.xlu0 %799
      %v801 = vsel %vm723, %v695, 0
      %v803 = vsel %vm723, %v800, 0
      %805 = vmatprep.subr.mxu0 0.0
      %806 = vmatpush1.xpose.msra.mxu0 %v803
      %807 = vmatprep.subr.mxu0 0.0
      %808 = vmatpush1.xpose.msra.mxu0 0.0
      %809 = vmatprep.subr.mxu0 0.0
      %810 = vmatpush1.xpose.msra.mxu0 0.0
      %811 = vmatprep.subr.mxu0 0.0
      %812 = vmatpush1.xpose.msra.mxu0 0.0
      %813 = vmatprep.subr.mxu0 0.0
      %814 = vmatpush1.xpose.msra.mxu0 0.0
      %815 = vmatprep.subr.mxu0 0.0
      %816 = vmatpush1.xpose.msra.mxu0 0.0
      %817 = vmatprep.subr.mxu0 0.0
      %818 = vmatpush1.xpose.msra.mxu0 0.0
      %819 = vmatprep.subr.mxu0 0.0
      %820 = vmatpush1.xpose.msra.mxu0 0.0
      %821 = vmatprep.subr.mxu0 0.0
      %822 = vmatpush1.xpose.msra.mxu0 0.0
      %823 = vmatprep.subr.mxu0 0.0
      %824 = vmatpush1.xpose.msra.mxu0 0.0
      %825 = vmatprep.subr.mxu0 0.0
      %826 = vmatpush1.xpose.msra.mxu0 0.0
      %827 = vmatprep.subr.mxu0 0.0
      %828 = vmatpush1.xpose.msra.mxu0 0.0
      %829 = vmatprep.subr.mxu0 0.0
      %830 = vmatpush1.xpose.msra.mxu0 0.0
      %831 = vmatprep.subr.mxu0 0.0
      %832 = vmatpush1.xpose.msra.mxu0 0.0
      %833 = vmatprep.subr.mxu0 0.0
      %834 = vmatpush1.xpose.msra.mxu0 0.0
      %835 = vmatprep.subr.mxu0 0.0
      %836 = vmatpush1.xpose.msra.mxu0 0.0
      %837 = vmatprep.subr.mxu0 0.0
      %838 = vmatpush1.xpose.msra.mxu0 0.0
      %839 = vmatprep.subr.mxu0 0.0
      %840 = vmatpush1.xpose.msra.mxu0 0.0
      %841 = vmatprep.subr.mxu0 0.0
      %842 = vmatpush1.xpose.msra.mxu0 0.0
      %843 = vmatprep.subr.mxu0 0.0
      %844 = vmatpush1.xpose.msra.mxu0 0.0
      %845 = vmatprep.subr.mxu0 0.0
      %846 = vmatpush1.xpose.msra.mxu0 0.0
      %847 = vmatprep.subr.mxu0 0.0
      %848 = vmatpush1.xpose.msra.mxu0 0.0
      %849 = vmatprep.subr.mxu0 0.0
      %850 = vmatpush1.xpose.msra.mxu0 0.0
      %851 = vmatprep.subr.mxu0 0.0
      %852 = vmatpush1.xpose.msra.mxu0 0.0
      %853 = vmatprep.subr.mxu0 0.0
      %854 = vmatpush1.xpose.msra.mxu0 0.0
      %855 = vmatprep.subr.mxu0 0.0
      %856 = vmatpush1.xpose.msra.mxu0 0.0
      %857 = vmatprep.subr.mxu0 0.0
      %858 = vmatpush1.xpose.msra.mxu0 0.0
      %859 = vmatprep.subr.mxu0 0.0
      %860 = vmatpush1.xpose.msra.mxu0 0.0
      %861 = vmatprep.subr.mxu0 0.0
      %862 = vmatpush1.xpose.msra.mxu0 0.0
      %863 = vmatprep.subr.mxu0 0.0
      %864 = vmatpush1.xpose.msra.mxu0 0.0
      %865 = vmatprep.subr.mxu0 0.0
      %866 = vmatpush1.xpose.msra.mxu0 0.0
      %867 = vmatprep.subr.mxu0 0.0
      %868 = vmatpush1.xpose.msra.mxu0 0.0
      %869 = vmatprep.mubr.f32.mxu0 0.0
      %870 = vmatmul.mubr.f32.gmra.mrb[0].mxu0 %v801
      %v871 = vpop.f32.mrb[0].mxu0
      %v872 = vadd.f32 %v717, %v871
      %v873 = vpop.f32.mrb[0].mxu0
      %874 = vdwg.mxu0
      %v875 = vsel %vm723, %v795, -inf
      %876 = vmax.xlane.f32.xlu0 %v875
      %v877 = vpop.xlane.xlu0 %876
      %v878 = vsel %vm723, %v872, -inf
      %879 = vmax.xlane.f32.xlu0 %v878
      %v880 = vpop.xlane.xlu0 %879
      %v881 = vsub.f32 %v795, %v877
      %v882 = vsub.f32 %v872, %v880
      %v883 = vmul.f32 %v881, 1.442695
      %v884 = vpow.pop %v883
      %v885 = vmul.f32 %v882, 1.442695
      %v886 = vpow.pop %v885
      %v887 = vsel %vm723, %v884, 0.0
      %888 = vadd.xlane.f32.xlu0 %v887
      %v889 = vpop.xlane.xlu0 %888
      %v890 = vsel %vm723, %v886, 0.0
      %891 = vadd.xlane.f32.xlu0 %v890
      %v892 = vpop.xlane.xlu0 %891
      %v893 = vrcp.pop %v889
      %v894 = vrcp.pop %v892
      %v895 = vmul.f32 %v884, %v893
      %v896 = vmul.f32 %v886, %v894
      %897 = vrot.lane.b32.xlu0 %v692, 64
      %v898 = vpop.permute.xlu0 %897
      %v901 = vsel %vm723, %v895, 0
      %903 = vmatprep.subr.mxu0 0.0
      %904 = vmatpush1.msra.mxu0 %v898
      %905 = vmatprep.subr.mxu0 0.0
      %906 = vmatpush1.msra.mxu0 0.0
      %907 = vmatprep.subr.mxu0 0.0
      %908 = vmatpush1.msra.mxu0 0.0
      %909 = vmatprep.subr.mxu0 0.0
      %910 = vmatpush1.msra.mxu0 0.0
      %911 = vmatprep.subr.mxu0 0.0
      %912 = vmatpush1.msra.mxu0 0.0
      %913 = vmatprep.subr.mxu0 0.0
      %914 = vmatpush1.msra.mxu0 0.0
      %915 = vmatprep.subr.mxu0 0.0
      %916 = vmatpush1.msra.mxu0 0.0
      %917 = vmatprep.subr.mxu0 0.0
      %918 = vmatpush1.msra.mxu0 0.0
      %919 = vmatprep.subr.mxu0 0.0
      %920 = vmatpush1.msra.mxu0 0.0
      %921 = vmatprep.subr.mxu0 0.0
      %922 = vmatpush1.msra.mxu0 0.0
      %923 = vmatprep.subr.mxu0 0.0
      %924 = vmatpush1.msra.mxu0 0.0
      %925 = vmatprep.subr.mxu0 0.0
      %926 = vmatpush1.msra.mxu0 0.0
      %927 = vmatprep.subr.mxu0 0.0
      %928 = vmatpush1.msra.mxu0 0.0
      %929 = vmatprep.subr.mxu0 0.0
      %930 = vmatpush1.msra.mxu0 0.0
      %931 = vmatprep.subr.mxu0 0.0
      %932 = vmatpush1.msra.mxu0 0.0
      %933 = vmatprep.subr.mxu0 0.0
      %934 = vmatpush1.msra.mxu0 0.0
      %935 = vmatprep.subr.mxu0 0.0
      %936 = vmatpush1.msra.mxu0 0.0
      %937 = vmatprep.subr.mxu0 0.0
      %938 = vmatpush1.msra.mxu0 0.0
      %939 = vmatprep.subr.mxu0 0.0
      %940 = vmatpush1.msra.mxu0 0.0
      %941 = vmatprep.subr.mxu0 0.0
      %942 = vmatpush1.msra.mxu0 0.0
      %943 = vmatprep.subr.mxu0 0.0
      %944 = vmatpush1.msra.mxu0 0.0
      %945 = vmatprep.subr.mxu0 0.0
      %946 = vmatpush1.msra.mxu0 0.0
      %947 = vmatprep.subr.mxu0 0.0
      %948 = vmatpush1.msra.mxu0 0.0
      %949 = vmatprep.subr.mxu0 0.0
      %950 = vmatpush1.msra.mxu0 0.0
      %951 = vmatprep.subr.mxu0 0.0
      %952 = vmatpush1.msra.mxu0 0.0
      %953 = vmatprep.subr.mxu0 0.0
      %954 = vmatpush1.msra.mxu0 0.0
      %955 = vmatprep.subr.mxu0 0.0
      %956 = vmatpush1.msra.mxu0 0.0
      %957 = vmatprep.subr.mxu0 0.0
      %958 = vmatpush1.msra.mxu0 0.0
      %959 = vmatprep.subr.mxu0 0.0
      %960 = vmatpush1.msra.mxu0 0.0
      %961 = vmatprep.subr.mxu0 0.0
      %962 = vmatpush1.msra.mxu0 0.0
      %963 = vmatprep.subr.mxu0 0.0
      %964 = vmatpush1.msra.mxu0 0.0
      %965 = vmatprep.subr.mxu0 0.0
      %966 = vmatpush1.msra.mxu0 0.0
      %967 = vmatprep.mubr.f32.mxu0 0.0
      %968 = vmatmul.mubr.f32.gmra.mrb[0].mxu0 %v901
      %v969 = vpop.f32.mrb[0].mxu0
      %v970 = vadd.f32 0.0, %v969
      %v971 = vpop.f32.mrb[0].mxu0
      %972 = vdwg.mxu0
      %973 = vrot.lane.b32.xlu0 %v695, 64
      %v974 = vpop.permute.xlu0 %973
      %v977 = vsel %vm723, %v896, 0
      %979 = vmatprep.subr.mxu0 0.0
      %980 = vmatpush1.msra.mxu0 %v974
      %981 = vmatprep.subr.mxu0 0.0
      %982 = vmatpush1.msra.mxu0 0.0
      %983 = vmatprep.subr.mxu0 0.0
      %984 = vmatpush1.msra.mxu0 0.0
      %985 = vmatprep.subr.mxu0 0.0
      %986 = vmatpush1.msra.mxu0 0.0
      %987 = vmatprep.subr.mxu0 0.0
      %988 = vmatpush1.msra.mxu0 0.0
      %989 = vmatprep.subr.mxu0 0.0
      %990 = vmatpush1.msra.mxu0 0.0
      %991 = vmatprep.subr.mxu0 0.0
      %992 = vmatpush1.msra.mxu0 0.0
      %993 = vmatprep.subr.mxu0 0.0
      %994 = vmatpush1.msra.mxu0 0.0
      %995 = vmatprep.subr.mxu0 0.0
      %996 = vmatpush1.msra.mxu0 0.0
      %997 = vmatprep.subr.mxu0 0.0
      %998 = vmatpush1.msra.mxu0 0.0
      %999 = vmatprep.subr.mxu0 0.0
      %1000 = vmatpush1.msra.mxu0 0.0
      %1001 = vmatprep.subr.mxu0 0.0
      %1002 = vmatpush1.msra.mxu0 0.0
      %1003 = vmatprep.subr.mxu0 0.0
      %1004 = vmatpush1.msra.mxu0 0.0
      %1005 = vmatprep.subr.mxu0 0.0
      %1006 = vmatpush1.msra.mxu0 0.0
      %1007 = vmatprep.subr.mxu0 0.0
      %1008 = vmatpush1.msra.mxu0 0.0
      %1009 = vmatprep.subr.mxu0 0.0
      %1010 = vmatpush1.msra.mxu0 0.0
      %1011 = vmatprep.subr.mxu0 0.0
      %1012 = vmatpush1.msra.mxu0 0.0
      %1013 = vmatprep.subr.mxu0 0.0
      %1014 = vmatpush1.msra.mxu0 0.0
      %1015 = vmatprep.subr.mxu0 0.0
      %1016 = vmatpush1.msra.mxu0 0.0
      %1017 = vmatprep.subr.mxu0 0.0
      %1018 = vmatpush1.msra.mxu0 0.0
      %1019 = vmatprep.subr.mxu0 0.0
      %1020 = vmatpush1.msra.mxu0 0.0
      %1021 = vmatprep.subr.mxu0 0.0
      %1022 = vmatpush1.msra.mxu0 0.0
      %1023 = vmatprep.subr.mxu0 0.0
      %1024 = vmatpush1.msra.mxu0 0.0
      %1025 = vmatprep.subr.mxu0 0.0
      %1026 = vmatpush1.msra.mxu0 0.0
      %1027 = vmatprep.subr.mxu0 0.0
      %1028 = vmatpush1.msra.mxu0 0.0
      %1029 = vmatprep.subr.mxu0 0.0
      %1030 = vmatpush1.msra.mxu0 0.0
      %1031 = vmatprep.subr.mxu0 0.0
      %1032 = vmatpush1.msra.mxu0 0.0
      %1033 = vmatprep.subr.mxu0 0.0
      %1034 = vmatpush1.msra.mxu0 0.0
      %1035 = vmatprep.subr.mxu0 0.0
      %1036 = vmatpush1.msra.mxu0 0.0
      %1037 = vmatprep.subr.mxu0 0.0
      %1038 = vmatpush1.msra.mxu0 0.0
      %1039 = vmatprep.subr.mxu0 0.0
      %1040 = vmatpush1.msra.mxu0 0.0
      %1041 = vmatprep.subr.mxu0 0.0
      %1042 = vmatpush1.msra.mxu0 0.0
      %1043 = vmatprep.mubr.f32.mxu0 0.0
      %1044 = vmatmul.mubr.f32.gmra.mrb[0].mxu0 %v977
      %v1045 = vpop.f32.mrb[0].mxu0
      %v1046 = vadd.f32 0.0, %v1045
      %v1047 = vpop.f32.mrb[0].mxu0
      %1048 = vdwg.mxu0
      %1049 = vrot.lane.b32.xlu0 %v692, 120
      %v1050 = vpop.permute.xlu0 %1049
      %1051 = vrot.lane.b32.xlu0 %v692, 88
      %v1052 = vpop.permute.xlu0 %1051
      %v1053 = vsel %vm723, %v1050, 0
      %v1055 = vsel %vm723, %v1052, 0
      %1057 = vmatprep.subr.mxu0 0.0
      %1058 = vmatpush1.xpose.msra.mxu0 %v1055
      %1059 = vmatprep.subr.mxu0 0.0
      %1060 = vmatpush1.xpose.msra.mxu0 0.0
      %1061 = vmatprep.subr.mxu0 0.0
      %1062 = vmatpush1.xpose.msra.mxu0 0.0
      %1063 = vmatprep.subr.mxu0 0.0
      %1064 = vmatpush1.xpose.msra.mxu0 0.0
      %1065 = vmatprep.subr.mxu0 0.0
      %1066 = vmatpush1.xpose.msra.mxu0 0.0
      %1067 = vmatprep.subr.mxu0 0.0
      %1068 = vmatpush1.xpose.msra.mxu0 0.0
      %1069 = vmatprep.subr.mxu0 0.0
      %1070 = vmatpush1.xpose.msra.mxu0 0.0
      %1071 = vmatprep.subr.mxu0 0.0
      %1072 = vmatpush1.xpose.msra.mxu0 0.0
      %1073 = vmatprep.subr.mxu0 0.0
      %1074 = vmatpush1.xpose.msra.mxu0 0.0
      %1075 = vmatprep.subr.mxu0 0.0
      %1076 = vmatpush1.xpose.msra.mxu0 0.0
      %1077 = vmatprep.subr.mxu0 0.0
      %1078 = vmatpush1.xpose.msra.mxu0 0.0
      %1079 = vmatprep.subr.mxu0 0.0
      %1080 = vmatpush1.xpose.msra.mxu0 0.0
      %1081 = vmatprep.subr.mxu0 0.0
      %1082 = vmatpush1.xpose.msra.mxu0 0.0
      %1083 = vmatprep.subr.mxu0 0.0
      %1084 = vmatpush1.xpose.msra.mxu0 0.0
      %1085 = vmatprep.subr.mxu0 0.0
      %1086 = vmatpush1.xpose.msra.mxu0 0.0
      %1087 = vmatprep.subr.mxu0 0.0
      %1088 = vmatpush1.xpose.msra.mxu0 0.0
      %1089 = vmatprep.subr.mxu0 0.0
      %1090 = vmatpush1.xpose.msra.mxu0 0.0
      %1091 = vmatprep.subr.mxu0 0.0
      %1092 = vmatpush1.xpose.msra.mxu0 0.0
      %1093 = vmatprep.subr.mxu0 0.0
      %1094 = vmatpush1.xpose.msra.mxu0 0.0
      %1095 = vmatprep.subr.mxu0 0.0
      %1096 = vmatpush1.xpose.msra.mxu0 0.0
      %1097 = vmatprep.subr.mxu0 0.0
      %1098 = vmatpush1.xpose.msra.mxu0 0.0
      %1099 = vmatprep.subr.mxu0 0.0
      %1100 = vmatpush1.xpose.msra.mxu0 0.0
      %1101 = vmatprep.subr.mxu0 0.0
      %1102 = vmatpush1.xpose.msra.mxu0 0.0
      %1103 = vmatprep.subr.mxu0 0.0
      %1104 = vmatpush1.xpose.msra.mxu0 0.0
      %1105 = vmatprep.subr.mxu0 0.0
      %1106 = vmatpush1.xpose.msra.mxu0 0.0
      %1107 = vmatprep.subr.mxu0 0.0
      %1108 = vmatpush1.xpose.msra.mxu0 0.0
      %1109 = vmatprep.subr.mxu0 0.0
      %1110 = vmatpush1.xpose.msra.mxu0 0.0
      %1111 = vmatprep.subr.mxu0 0.0
      %1112 = vmatpush1.xpose.msra.mxu0 0.0
      %1113 = vmatprep.subr.mxu0 0.0
      %1114 = vmatpush1.xpose.msra.mxu0 0.0
      %1115 = vmatprep.subr.mxu0 0.0
      %1116 = vmatpush1.xpose.msra.mxu0 0.0
      %1117 = vmatprep.subr.mxu0 0.0
      %1118 = vmatpush1.xpose.msra.mxu0 0.0
      %1119 = vmatprep.subr.mxu0 0.0
      %1120 = vmatpush1.xpose.msra.mxu0 0.0
      %1121 = vmatprep.mubr.f32.mxu0 0.0
      %1122 = vmatmul.mubr.f32.gmra.mrb[0].mxu0 %v1053
      %v1123 = vpop.f32.mrb[0].mxu0
      %v1124 = vadd.f32 %v713, %v1123
      %v1125 = vpop.f32.mrb[0].mxu0
      %1126 = vdwg.mxu0
      %1127 = vrot.lane.b32.xlu0 %v695, 120
      %v1128 = vpop.permute.xlu0 %1127
      %1129 = vrot.lane.b32.xlu0 %v695, 88
      %v1130 = vpop.permute.xlu0 %1129
      %v1131 = vsel %vm723, %v1128, 0
      %v1133 = vsel %vm723, %v1130, 0
      %1135 = vmatprep.subr.mxu0 0.0
      %1136 = vmatpush1.xpose.msra.mxu0 %v1133
      %1137 = vmatprep.subr.mxu0 0.0
      %1138 = vmatpush1.xpose.msra.mxu0 0.0
      %1139 = vmatprep.subr.mxu0 0.0
      %1140 = vmatpush1.xpose.msra.mxu0 0.0
      %1141 = vmatprep.subr.mxu0 0.0
      %1142 = vmatpush1.xpose.msra.mxu0 0.0
      %1143 = vmatprep.subr.mxu0 0.0
      %1144 = vmatpush1.xpose.msra.mxu0 0.0
      %1145 = vmatprep.subr.mxu0 0.0
      %1146 = vmatpush1.xpose.msra.mxu0 0.0
      %1147 = vmatprep.subr.mxu0 0.0
      %1148 = vmatpush1.xpose.msra.mxu0 0.0
      %1149 = vmatprep.subr.mxu0 0.0
      %1150 = vmatpush1.xpose.msra.mxu0 0.0
      %1151 = vmatprep.subr.mxu0 0.0
      %1152 = vmatpush1.xpose.msra.mxu0 0.0
      %1153 = vmatprep.subr.mxu0 0.0
      %1154 = vmatpush1.xpose.msra.mxu0 0.0
      %1155 = vmatprep.subr.mxu0 0.0
      %1156 = vmatpush1.xpose.msra.mxu0 0.0
      %1157 = vmatprep.subr.mxu0 0.0
      %1158 = vmatpush1.xpose.msra.mxu0 0.0
      %1159 = vmatprep.subr.mxu0 0.0
      %1160 = vmatpush1.xpose.msra.mxu0 0.0
      %1161 = vmatprep.subr.mxu0 0.0
      %1162 = vmatpush1.xpose.msra.mxu0 0.0
      %1163 = vmatprep.subr.mxu0 0.0
      %1164 = vmatpush1.xpose.msra.mxu0 0.0
      %1165 = vmatprep.subr.mxu0 0.0
      %1166 = vmatpush1.xpose.msra.mxu0 0.0
      %1167 = vmatprep.subr.mxu0 0.0
      %1168 = vmatpush1.xpose.msra.mxu0 0.0
      %1169 = vmatprep.subr.mxu0 0.0
      %1170 = vmatpush1.xpose.msra.mxu0 0.0
      %1171 = vmatprep.subr.mxu0 0.0
      %1172 = vmatpush1.xpose.msra.mxu0 0.0
      %1173 = vmatprep.subr.mxu0 0.0
      %1174 = vmatpush1.xpose.msra.mxu0 0.0
      %1175 = vmatprep.subr.mxu0 0.0
      %1176 = vmatpush1.xpose.msra.mxu0 0.0
      %1177 = vmatprep.subr.mxu0 0.0
      %1178 = vmatpush1.xpose.msra.mxu0 0.0
      %1179 = vmatprep.subr.mxu0 0.0
      %1180 = vmatpush1.xpose.msra.mxu0 0.0
      %1181 = vmatprep.subr.mxu0 0.0
      %1182 = vmatpush1.xpose.msra.mxu0 0.0
      %1183 = vmatprep.subr.mxu0 0.0
      %1184 = vmatpush1.xpose.msra.mxu0 0.0
      %1185 = vmatprep.subr.mxu0 0.0
      %1186 = vmatpush1.xpose.msra.mxu0 0.0
      %1187 = vmatprep.subr.mxu0 0.0
      %1188 = vmatpush1.xpose.msra.mxu0 0.0
      %1189 = vmatprep.subr.mxu0 0.0
      %1190 = vmatpush1.xpose.msra.mxu0 0.0
      %1191 = vmatprep.subr.mxu0 0.0
      %1192 = vmatpush1.xpose.msra.mxu0 0.0
      %1193 = vmatprep.subr.mxu0 0.0
      %1194 = vmatpush1.xpose.msra.mxu0 0.0
      %1195 = vmatprep.subr.mxu0 0.0
      %1196 = vmatpush1.xpose.msra.mxu0 0.0
      %1197 = vmatprep.subr.mxu0 0.0
      %1198 = vmatpush1.xpose.msra.mxu0 0.0
      %1199 = vmatprep.mubr.f32.mxu0 0.0
      %1200 = vmatmul.mubr.f32.gmra.mrb[0].mxu0 %v1131
      %v1201 = vpop.f32.mrb[0].mxu0
      %v1202 = vadd.f32 %v717, %v1201
      %v1203 = vpop.f32.mrb[0].mxu0
      %1204 = vdwg.mxu0
      %v1205 = vsel %vm723, %v1124, -inf
      %1206 = vmax.xlane.f32.xlu0 %v1205
      %v1207 = vpop.xlane.xlu0 %1206
      %v1208 = vsel %vm723, %v1202, -inf
      %1209 = vmax.xlane.f32.xlu0 %v1208
      %v1210 = vpop.xlane.xlu0 %1209
      %v1211 = vsub.f32 %v1124, %v1207
      %v1212 = vsub.f32 %v1202, %v1210
      %v1213 = vmul.f32 %v1211, 1.442695
      %v1214 = vpow.pop %v1213
      %v1215 = vmul.f32 %v1212, 1.442695
      %v1216 = vpow.pop %v1215
      %v1217 = vsel %vm723, %v1214, 0.0
      %1218 = vadd.xlane.f32.xlu0 %v1217
      %v1219 = vpop.xlane.xlu0 %1218
      %v1220 = vsel %vm723, %v1216, 0.0
      %1221 = vadd.xlane.f32.xlu0 %v1220
      %v1222 = vpop.xlane.xlu0 %1221
      %v1223 = vrcp.pop %v1219
      %v1224 = vrcp.pop %v1222
      %v1225 = vmul.f32 %v1214, %v1223
      %v1226 = vmul.f32 %v1216, %v1224
      %1227 = vrot.lane.b32.xlu0 %v692, 56
      %v1228 = vpop.permute.xlu0 %1227
      %v1231 = vsel %vm723, %v1225, 0
      %1233 = vmatprep.subr.mxu0 0.0
      %1234 = vmatpush1.msra.mxu0 %v1228
      %1235 = vmatprep.subr.mxu0 0.0
      %1236 = vmatpush1.msra.mxu0 0.0
      %1237 = vmatprep.subr.mxu0 0.0
      %1238 = vmatpush1.msra.mxu0 0.0
      %1239 = vmatprep.subr.mxu0 0.0
      %1240 = vmatpush1.msra.mxu0 0.0
      %1241 = vmatprep.subr.mxu0 0.0
      %1242 = vmatpush1.msra.mxu0 0.0
      %1243 = vmatprep.subr.mxu0 0.0
      %1244 = vmatpush1.msra.mxu0 0.0
      %1245 = vmatprep.subr.mxu0 0.0
      %1246 = vmatpush1.msra.mxu0 0.0
      %1247 = vmatprep.subr.mxu0 0.0
      %1248 = vmatpush1.msra.mxu0 0.0
      %1249 = vmatprep.subr.mxu0 0.0
      %1250 = vmatpush1.msra.mxu0 0.0
      %1251 = vmatprep.subr.mxu0 0.0
      %1252 = vmatpush1.msra.mxu0 0.0
      %1253 = vmatprep.subr.mxu0 0.0
      %1254 = vmatpush1.msra.mxu0 0.0
      %1255 = vmatprep.subr.mxu0 0.0
      %1256 = vmatpush1.msra.mxu0 0.0
      %1257 = vmatprep.subr.mxu0 0.0
      %1258 = vmatpush1.msra.mxu0 0.0
      %1259 = vmatprep.subr.mxu0 0.0
      %1260 = vmatpush1.msra.mxu0 0.0
      %1261 = vmatprep.subr.mxu0 0.0
      %1262 = vmatpush1.msra.mxu0 0.0
      %1263 = vmatprep.subr.mxu0 0.0
      %1264 = vmatpush1.msra.mxu0 0.0
      %1265 = vmatprep.subr.mxu0 0.0
      %1266 = vmatpush1.msra.mxu0 0.0
      %1267 = vmatprep.subr.mxu0 0.0
      %1268 = vmatpush1.msra.mxu0 0.0
      %1269 = vmatprep.subr.mxu0 0.0
      %1270 = vmatpush1.msra.mxu0 0.0
      %1271 = vmatprep.subr.mxu0 0.0
      %1272 = vmatpush1.msra.mxu0 0.0
      %1273 = vmatprep.subr.mxu0 0.0
      %1274 = vmatpush1.msra.mxu0 0.0
      %1275 = vmatprep.subr.mxu0 0.0
      %1276 = vmatpush1.msra.mxu0 0.0
      %1277 = vmatprep.subr.mxu0 0.0
      %1278 = vmatpush1.msra.mxu0 0.0
      %1279 = vmatprep.subr.mxu0 0.0
      %1280 = vmatpush1.msra.mxu0 0.0
      %1281 = vmatprep.subr.mxu0 0.0
      %1282 = vmatpush1.msra.mxu0 0.0
      %1283 = vmatprep.subr.mxu0 0.0
      %1284 = vmatpush1.msra.mxu0 0.0
      %1285 = vmatprep.subr.mxu0 0.0
      %1286 = vmatpush1.msra.mxu0 0.0
      %1287 = vmatprep.subr.mxu0 0.0
      %1288 = vmatpush1.msra.mxu0 0.0
      %1289 = vmatprep.subr.mxu0 0.0
      %1290 = vmatpush1.msra.mxu0 0.0
      %1291 = vmatprep.subr.mxu0 0.0
      %1292 = vmatpush1.msra.mxu0 0.0
      %1293 = vmatprep.subr.mxu0 0.0
      %1294 = vmatpush1.msra.mxu0 0.0
      %1295 = vmatprep.subr.mxu0 0.0
      %1296 = vmatpush1.msra.mxu0 0.0
      %1297 = vmatprep.mubr.f32.mxu0 0.0
      %1298 = vmatmul.mubr.f32.gmra.mrb[0].mxu0 %v1231
      %v1299 = vpop.f32.mrb[0].mxu0
      %v1300 = vadd.f32 0.0, %v1299
      %v1301 = vpop.f32.mrb[0].mxu0
      %1302 = vdwg.mxu0
      %1303 = vrot.lane.b32.xlu0 %v695, 56
      %v1304 = vpop.permute.xlu0 %1303
      %v1307 = vsel %vm723, %v1226, 0
      %1309 = vmatprep.subr.mxu0 0.0
      %1310 = vmatpush1.msra.mxu0 %v1304
      %1311 = vmatprep.subr.mxu0 0.0
      %1312 = vmatpush1.msra.mxu0 0.0
      %1313 = vmatprep.subr.mxu0 0.0
      %1314 = vmatpush1.msra.mxu0 0.0
      %1315 = vmatprep.subr.mxu0 0.0
      %1316 = vmatpush1.msra.mxu0 0.0
      %1317 = vmatprep.subr.mxu0 0.0
      %1318 = vmatpush1.msra.mxu0 0.0
      %1319 = vmatprep.subr.mxu0 0.0
      %1320 = vmatpush1.msra.mxu0 0.0
      %1321 = vmatprep.subr.mxu0 0.0
      %1322 = vmatpush1.msra.mxu0 0.0
      %1323 = vmatprep.subr.mxu0 0.0
      %1324 = vmatpush1.msra.mxu0 0.0
      %1325 = vmatprep.subr.mxu0 0.0
      %1326 = vmatpush1.msra.mxu0 0.0
      %1327 = vmatprep.subr.mxu0 0.0
      %1328 = vmatpush1.msra.mxu0 0.0
      %1329 = vmatprep.subr.mxu0 0.0
      %1330 = vmatpush1.msra.mxu0 0.0
      %1331 = vmatprep.subr.mxu0 0.0
      %1332 = vmatpush1.msra.mxu0 0.0
      %1333 = vmatprep.subr.mxu0 0.0
      %1334 = vmatpush1.msra.mxu0 0.0
      %1335 = vmatprep.subr.mxu0 0.0
      %1336 = vmatpush1.msra.mxu0 0.0
      %1337 = vmatprep.subr.mxu0 0.0
      %1338 = vmatpush1.msra.mxu0 0.0
      %1339 = vmatprep.subr.mxu0 0.0
      %1340 = vmatpush1.msra.mxu0 0.0
      %1341 = vmatprep.subr.mxu0 0.0
      %1342 = vmatpush1.msra.mxu0 0.0
      %1343 = vmatprep.subr.mxu0 0.0
      %1344 = vmatpush1.msra.mxu0 0.0
      %1345 = vmatprep.subr.mxu0 0.0
      %1346 = vmatpush1.msra.mxu0 0.0
      %1347 = vmatprep.subr.mxu0 0.0
      %1348 = vmatpush1.msra.mxu0 0.0
      %1349 = vmatprep.subr.mxu0 0.0
      %1350 = vmatpush1.msra.mxu0 0.0
      %1351 = vmatprep.subr.mxu0 0.0
      %1352 = vmatpush1.msra.mxu0 0.0
      %1353 = vmatprep.subr.mxu0 0.0
      %1354 = vmatpush1.msra.mxu0 0.0
      %1355 = vmatprep.subr.mxu0 0.0
      %1356 = vmatpush1.msra.mxu0 0.0
      %1357 = vmatprep.subr.mxu0 0.0
      %1358 = vmatpush1.msra.mxu0 0.0
      %1359 = vmatprep.subr.mxu0 0.0
      %1360 = vmatpush1.msra.mxu0 0.0
      %1361 = vmatprep.subr.mxu0 0.0
      %1362 = vmatpush1.msra.mxu0 0.0
      %1363 = vmatprep.subr.mxu0 0.0
      %1364 = vmatpush1.msra.mxu0 0.0
      %1365 = vmatprep.subr.mxu0 0.0
      %1366 = vmatpush1.msra.mxu0 0.0
      %1367 = vmatprep.subr.mxu0 0.0
      %1368 = vmatpush1.msra.mxu0 0.0
      %1369 = vmatprep.subr.mxu0 0.0
      %1370 = vmatpush1.msra.mxu0 0.0
      %1371 = vmatprep.subr.mxu0 0.0
      %1372 = vmatpush1.msra.mxu0 0.0
      %1373 = vmatprep.mubr.f32.mxu0 0.0
      %1374 = vmatmul.mubr.f32.gmra.mrb[0].mxu0 %v1307
      %v1375 = vpop.f32.mrb[0].mxu0
      %v1376 = vadd.f32 0.0, %v1375
      %v1377 = vpop.f32.mrb[0].mxu0
      %1378 = vdwg.mxu0
      %v1380 = vsel %vm723, %v1300, 0
      %v1383 = vsel %vm723, %v1376, 0
      %1385 = vmatprep.subr.mxu0 0.0
      %1386 = vmatpush1.msra.mxu0 %v705
      %1387 = vmatprep.subr.mxu0 0.0
      %1388 = vmatpush1.msra.mxu0 0.0
      %1389 = vmatprep.subr.mxu0 0.0
      %1390 = vmatpush1.msra.mxu0 0.0
      %1391 = vmatprep.subr.mxu0 0.0
      %1392 = vmatpush1.msra.mxu0 0.0
      %1393 = vmatprep.subr.mxu0 0.0
      %1394 = vmatpush1.msra.mxu0 0.0
      %1395 = vmatprep.subr.mxu0 0.0
      %1396 = vmatpush1.msra.mxu0 0.0
      %1397 = vmatprep.subr.mxu0 0.0
      %1398 = vmatpush1.msra.mxu0 0.0
      %1399 = vmatprep.subr.mxu0 0.0
      %1400 = vmatpush1.msra.mxu0 0.0
      %1401 = vmatprep.subr.mxu0 0.0
      %1402 = vmatpush1.msra.mxu0 0.0
      %1403 = vmatprep.subr.mxu0 0.0
      %1404 = vmatpush1.msra.mxu0 0.0
      %1405 = vmatprep.subr.mxu0 0.0
      %1406 = vmatpush1.msra.mxu0 0.0
      %1407 = vmatprep.subr.mxu0 0.0
      %1408 = vmatpush1.msra.mxu0 0.0
      %1409 = vmatprep.subr.mxu0 0.0
      %1410 = vmatpush1.msra.mxu0 0.0
      %1411 = vmatprep.subr.mxu0 0.0
      %1412 = vmatpush1.msra.mxu0 0.0
      %1413 = vmatprep.subr.mxu0 0.0
      %1414 = vmatpush1.msra.mxu0 0.0
      %1415 = vmatprep.subr.mxu0 0.0
      %1416 = vmatpush1.msra.mxu0 0.0
      %1417 = vmatprep.subr.mxu0 0.0
      %1418 = vmatpush1.msra.mxu0 0.0
      %1419 = vmatprep.subr.mxu0 0.0
      %1420 = vmatpush1.msra.mxu0 0.0
      %1421 = vmatprep.subr.mxu0 0.0
      %1422 = vmatpush1.msra.mxu0 0.0
      %1423 = vmatprep.subr.mxu0 0.0
      %1424 = vmatpush1.msra.mxu0 0.0
      %1425 = vmatprep.subr.mxu0 0.0
      %1426 = vmatpush1.msra.mxu0 0.0
      %1427 = vmatprep.subr.mxu0 0.0
      %1428 = vmatpush1.msra.mxu0 0.0
      %1429 = vmatprep.subr.mxu0 0.0
      %1430 = vmatpush1.msra.mxu0 0.0
      %1431 = vmatprep.subr.mxu0 0.0
      %1432 = vmatpush1.msra.mxu0 0.0
      %1433 = vmatprep.subr.mxu0 0.0
      %1434 = vmatpush1.msra.mxu0 0.0
      %1435 = vmatprep.subr.mxu0 0.0
      %1436 = vmatpush1.msra.mxu0 0.0
      %1437 = vmatprep.subr.mxu0 0.0
      %1438 = vmatpush1.msra.mxu0 0.0
      %1439 = vmatprep.subr.mxu0 0.0
      %1440 = vmatpush1.msra.mxu0 0.0
      %1441 = vmatprep.subr.mxu0 0.0
      %1442 = vmatpush1.msra.mxu0 0.0
      %1443 = vmatprep.subr.mxu0 0.0
      %1444 = vmatpush1.msra.mxu0 0.0
      %1445 = vmatprep.subr.mxu0 0.0
      %1446 = vmatpush1.msra.mxu0 0.0
      %1447 = vmatprep.subr.mxu0 0.0
      %1448 = vmatpush1.msra.mxu0 0.0
      %1449 = vmatprep.mubr.f32.mxu0 0.0
      %1450 = vmatmul.mubr.f32.gmra.mrb[0].mxu0 %v1380
      %v1451 = vpop.f32.mrb[0].mxu0
      %v1452 = vadd.f32 0.0, %v1451
      %v1453 = vpop.f32.mrb[0].mxu0
      %1454 = vmatprep.mubr.f32.mxu0 0.0
      %1455 = vmatmul.mubr.f32.gmra.mrb[0].mxu0 %v1383
      %v1456 = vpop.f32.mrb[0].mxu0
      %v1457 = vadd.f32 0.0, %v1456
      %v1458 = vpop.f32.mrb[0].mxu0
      %1459 = vdwg.mxu0
      %v1461 = vsel %vm723, %v970, 0
      %v1464 = vsel %vm723, %v1046, 0
      %1466 = vmatprep.subr.mxu0 0.0
      %1467 = vmatpush1.msra.mxu0 %v704
      %1468 = vmatprep.subr.mxu0 0.0
      %1469 = vmatpush1.msra.mxu0 0.0
      %1470 = vmatprep.subr.mxu0 0.0
      %1471 = vmatpush1.msra.mxu0 0.0
      %1472 = vmatprep.subr.mxu0 0.0
      %1473 = vmatpush1.msra.mxu0 0.0
      %1474 = vmatprep.subr.mxu0 0.0
      %1475 = vmatpush1.msra.mxu0 0.0
      %1476 = vmatprep.subr.mxu0 0.0
      %1477 = vmatpush1.msra.mxu0 0.0
      %1478 = vmatprep.subr.mxu0 0.0
      %1479 = vmatpush1.msra.mxu0 0.0
      %1480 = vmatprep.subr.mxu0 0.0
      %1481 = vmatpush1.msra.mxu0 0.0
      %1482 = vmatprep.subr.mxu0 0.0
      %1483 = vmatpush1.msra.mxu0 0.0
      %1484 = vmatprep.subr.mxu0 0.0
      %1485 = vmatpush1.msra.mxu0 0.0
      %1486 = vmatprep.subr.mxu0 0.0
      %1487 = vmatpush1.msra.mxu0 0.0
      %1488 = vmatprep.subr.mxu0 0.0
      %1489 = vmatpush1.msra.mxu0 0.0
      %1490 = vmatprep.subr.mxu0 0.0
      %1491 = vmatpush1.msra.mxu0 0.0
      %1492 = vmatprep.subr.mxu0 0.0
      %1493 = vmatpush1.msra.mxu0 0.0
      %1494 = vmatprep.subr.mxu0 0.0
      %1495 = vmatpush1.msra.mxu0 0.0
      %1496 = vmatprep.subr.mxu0 0.0
      %1497 = vmatpush1.msra.mxu0 0.0
      %1498 = vmatprep.subr.mxu0 0.0
      %1499 = vmatpush1.msra.mxu0 0.0
      %1500 = vmatprep.subr.mxu0 0.0
      %1501 = vmatpush1.msra.mxu0 0.0
      %1502 = vmatprep.subr.mxu0 0.0
      %1503 = vmatpush1.msra.mxu0 0.0
      %1504 = vmatprep.subr.mxu0 0.0
      %1505 = vmatpush1.msra.mxu0 0.0
      %1506 = vmatprep.subr.mxu0 0.0
      %1507 = vmatpush1.msra.mxu0 0.0
      %1508 = vmatprep.subr.mxu0 0.0
      %1509 = vmatpush1.msra.mxu0 0.0
      %1510 = vmatprep.subr.mxu0 0.0
      %1511 = vmatpush1.msra.mxu0 0.0
      %1512 = vmatprep.subr.mxu0 0.0
      %1513 = vmatpush1.msra.mxu0 0.0
      %1514 = vmatprep.subr.mxu0 0.0
      %1515 = vmatpush1.msra.mxu0 0.0
      %1516 = vmatprep.subr.mxu0 0.0
      %1517 = vmatpush1.msra.mxu0 0.0
      %1518 = vmatprep.subr.mxu0 0.0
      %1519 = vmatpush1.msra.mxu0 0.0
      %1520 = vmatprep.subr.mxu0 0.0
      %1521 = vmatpush1.msra.mxu0 0.0
      %1522 = vmatprep.subr.mxu0 0.0
      %1523 = vmatpush1.msra.mxu0 0.0
      %1524 = vmatprep.subr.mxu0 0.0
      %1525 = vmatpush1.msra.mxu0 0.0
      %1526 = vmatprep.subr.mxu0 0.0
      %1527 = vmatpush1.msra.mxu0 0.0
      %1528 = vmatprep.subr.mxu0 0.0
      %1529 = vmatpush1.msra.mxu0 0.0
      %1530 = vmatprep.mubr.f32.mxu0 0.0
      %1531 = vmatmul.mubr.f32.gmra.mrb[0].mxu0 %v1461
      %v1532 = vpop.f32.mrb[0].mxu0
      %v1533 = vadd.f32 %v1452, %v1532
      %v1534 = vpop.f32.mrb[0].mxu0
      %1535 = vmatprep.mubr.f32.mxu0 0.0
      %1536 = vmatmul.mubr.f32.gmra.mrb[0].mxu0 %v1464
      %v1537 = vpop.f32.mrb[0].mxu0
      %v1538 = vadd.f32 %v1457, %v1537
      %v1539 = vpop.f32.mrb[0].mxu0
      %1540 = vdwg.mxu0
      %1541 = vrot.lane.b32.xlu0 %v692, 112
      %v1542 = vpop.permute.xlu0 %1541
      %1543 = vrot.lane.b32.xlu0 %v692, 80
      %v1544 = vpop.permute.xlu0 %1543
      %v1545 = vsel %vm723, %v1542, 0
      %v1547 = vsel %vm723, %v1544, 0
      %1549 = vmatprep.subr.mxu0 0.0
      %1550 = vmatpush1.xpose.msra.mxu0 %v1547
      %1551 = vmatprep.subr.mxu0 0.0
      %1552 = vmatpush1.xpose.msra.mxu0 0.0
      %1553 = vmatprep.subr.mxu0 0.0
      %1554 = vmatpush1.xpose.msra.mxu0 0.0
      %1555 = vmatprep.subr.mxu0 0.0
      %1556 = vmatpush1.xpose.msra.mxu0 0.0
      %1557 = vmatprep.subr.mxu0 0.0
      %1558 = vmatpush1.xpose.msra.mxu0 0.0
      %1559 = vmatprep.subr.mxu0 0.0
      %1560 = vmatpush1.xpose.msra.mxu0 0.0
      %1561 = vmatprep.subr.mxu0 0.0
      %1562 = vmatpush1.xpose.msra.mxu0 0.0
      %1563 = vmatprep.subr.mxu0 0.0
      %1564 = vmatpush1.xpose.msra.mxu0 0.0
      %1565 = vmatprep.subr.mxu0 0.0
      %1566 = vmatpush1.xpose.msra.mxu0 0.0
      %1567 = vmatprep.subr.mxu0 0.0
      %1568 = vmatpush1.xpose.msra.mxu0 0.0
      %1569 = vmatprep.subr.mxu0 0.0
      %1570 = vmatpush1.xpose.msra.mxu0 0.0
      %1571 = vmatprep.subr.mxu0 0.0
      %1572 = vmatpush1.xpose.msra.mxu0 0.0
      %1573 = vmatprep.subr.mxu0 0.0
      %1574 = vmatpush1.xpose.msra.mxu0 0.0
      %1575 = vmatprep.subr.mxu0 0.0
      %1576 = vmatpush1.xpose.msra.mxu0 0.0
      %1577 = vmatprep.subr.mxu0 0.0
      %1578 = vmatpush1.xpose.msra.mxu0 0.0
      %1579 = vmatprep.subr.mxu0 0.0
      %1580 = vmatpush1.xpose.msra.mxu0 0.0
      %1581 = vmatprep.subr.mxu0 0.0
      %1582 = vmatpush1.xpose.msra.mxu0 0.0
      %1583 = vmatprep.subr.mxu0 0.0
      %1584 = vmatpush1.xpose.msra.mxu0 0.0
      %1585 = vmatprep.subr.mxu0 0.0
      %1586 = vmatpush1.xpose.msra.mxu0 0.0
      %1587 = vmatprep.subr.mxu0 0.0
      %1588 = vmatpush1.xpose.msra.mxu0 0.0
      %1589 = vmatprep.subr.mxu0 0.0
      %1590 = vmatpush1.xpose.msra.mxu0 0.0
      %1591 = vmatprep.subr.mxu0 0.0
      %1592 = vmatpush1.xpose.msra.mxu0 0.0
      %1593 = vmatprep.subr.mxu0 0.0
      %1594 = vmatpush1.xpose.msra.mxu0 0.0
      %1595 = vmatprep.subr.mxu0 0.0
      %1596 = vmatpush1.xpose.msra.mxu0 0.0
      %1597 = vmatprep.subr.mxu0 0.0
      %1598 = vmatpush1.xpose.msra.mxu0 0.0
      %1599 = vmatprep.subr.mxu0 0.0
      %1600 = vmatpush1.xpose.msra.mxu0 0.0
      %1601 = vmatprep.subr.mxu0 0.0
      %1602 = vmatpush1.xpose.msra.mxu0 0.0
      %1603 = vmatprep.subr.mxu0 0.0
      %1604 = vmatpush1.xpose.msra.mxu0 0.0
      %1605 = vmatprep.subr.mxu0 0.0
      %1606 = vmatpush1.xpose.msra.mxu0 0.0
      %1607 = vmatprep.subr.mxu0 0.0
      %1608 = vmatpush1.xpose.msra.mxu0 0.0
      %1609 = vmatprep.subr.mxu0 0.0
      %1610 = vmatpush1.xpose.msra.mxu0 0.0
      %1611 = vmatprep.subr.mxu0 0.0
      %1612 = vmatpush1.xpose.msra.mxu0 0.0
      %1613 = vmatprep.mubr.f32.mxu0 0.0
      %1614 = vmatmul.mubr.f32.gmra.mrb[0].mxu0 %v1545
      %v1615 = vpop.f32.mrb[0].mxu0
      %v1616 = vadd.f32 %v713, %v1615
      %v1617 = vpop.f32.mrb[0].mxu0
      %1618 = vdwg.mxu0
      %1619 = vrot.lane.b32.xlu0 %v695, 112
      %v1620 = vpop.permute.xlu0 %1619
      %1621 = vrot.lane.b32.xlu0 %v695, 80
      %v1622 = vpop.permute.xlu0 %1621
      %v1623 = vsel %vm723, %v1620, 0
      %v1625 = vsel %vm723, %v1622, 0
      %1627 = vmatprep.subr.mxu0 0.0
      %1628 = vmatpush1.xpose.msra.mxu0 %v1625
      %1629 = vmatprep.subr.mxu0 0.0
      %1630 = vmatpush1.xpose.msra.mxu0 0.0
      %1631 = vmatprep.subr.mxu0 0.0
      %1632 = vmatpush1.xpose.msra.mxu0 0.0
      %1633 = vmatprep.subr.mxu0 0.0
      %1634 = vmatpush1.xpose.msra.mxu0 0.0
      %1635 = vmatprep.subr.mxu0 0.0
      %1636 = vmatpush1.xpose.msra.mxu0 0.0
      %1637 = vmatprep.subr.mxu0 0.0
      %1638 = vmatpush1.xpose.msra.mxu0 0.0
      %1639 = vmatprep.subr.mxu0 0.0
      %1640 = vmatpush1.xpose.msra.mxu0 0.0
      %1641 = vmatprep.subr.mxu0 0.0
      %1642 = vmatpush1.xpose.msra.mxu0 0.0
      %1643 = vmatprep.subr.mxu0 0.0
      %1644 = vmatpush1.xpose.msra.mxu0 0.0
      %1645 = vmatprep.subr.mxu0 0.0
      %1646 = vmatpush1.xpose.msra.mxu0 0.0
      %1647 = vmatprep.subr.mxu0 0.0
      %1648 = vmatpush1.xpose.msra.mxu0 0.0
      %1649 = vmatprep.subr.mxu0 0.0
      %1650 = vmatpush1.xpose.msra.mxu0 0.0
      %1651 = vmatprep.subr.mxu0 0.0
      %1652 = vmatpush1.xpose.msra.mxu0 0.0
      %1653 = vmatprep.subr.mxu0 0.0
      %1654 = vmatpush1.xpose.msra.mxu0 0.0
      %1655 = vmatprep.subr.mxu0 0.0
      %1656 = vmatpush1.xpose.msra.mxu0 0.0
      %1657 = vmatprep.subr.mxu0 0.0
      %1658 = vmatpush1.xpose.msra.mxu0 0.0
      %1659 = vmatprep.subr.mxu0 0.0
      %1660 = vmatpush1.xpose.msra.mxu0 0.0
      %1661 = vmatprep.subr.mxu0 0.0
      %1662 = vmatpush1.xpose.msra.mxu0 0.0
      %1663 = vmatprep.subr.mxu0 0.0
      %1664 = vmatpush1.xpose.msra.mxu0 0.0
      %1665 = vmatprep.subr.mxu0 0.0
      %1666 = vmatpush1.xpose.msra.mxu0 0.0
      %1667 = vmatprep.subr.mxu0 0.0
      %1668 = vmatpush1.xpose.msra.mxu0 0.0
      %1669 = vmatprep.subr.mxu0 0.0
      %1670 = vmatpush1.xpose.msra.mxu0 0.0
      %1671 = vmatprep.subr.mxu0 0.0
      %1672 = vmatpush1.xpose.msra.mxu0 0.0
      %1673 = vmatprep.subr.mxu0 0.0
      %1674 = vmatpush1.xpose.msra.mxu0 0.0
      %1675 = vmatprep.subr.mxu0 0.0
      %1676 = vmatpush1.xpose.msra.mxu0 0.0
      %1677 = vmatprep.subr.mxu0 0.0
      %1678 = vmatpush1.xpose.msra.mxu0 0.0
      %1679 = vmatprep.subr.mxu0 0.0
      %1680 = vmatpush1.xpose.msra.mxu0 0.0
      %1681 = vmatprep.subr.mxu0 0.0
      %1682 = vmatpush1.xpose.msra.mxu0 0.0
      %1683 = vmatprep.subr.mxu0 0.0
      %1684 = vmatpush1.xpose.msra.mxu0 0.0
      %1685 = vmatprep.subr.mxu0 0.0
      %1686 = vmatpush1.xpose.msra.mxu0 0.0
      %1687 = vmatprep.subr.mxu0 0.0
      %1688 = vmatpush1.xpose.msra.mxu0 0.0
      %1689 = vmatprep.subr.mxu0 0.0
      %1690 = vmatpush1.xpose.msra.mxu0 0.0
      %1691 = vmatprep.mubr.f32.mxu0 0.0
      %1692 = vmatmul.mubr.f32.gmra.mrb[0].mxu0 %v1623
      %v1693 = vpop.f32.mrb[0].mxu0
      %v1694 = vadd.f32 %v717, %v1693
      %v1695 = vpop.f32.mrb[0].mxu0
      %1696 = vdwg.mxu0
      %v1697 = vsel %vm723, %v1616, -inf
      %1698 = vmax.xlane.f32.xlu0 %v1697
      %v1699 = vpop.xlane.xlu0 %1698
      %v1700 = vsel %vm723, %v1694, -inf
      %1701 = vmax.xlane.f32.xlu0 %v1700
      %v1702 = vpop.xlane.xlu0 %1701
      %v1703 = vsub.f32 %v1616, %v1699
      %v1704 = vsub.f32 %v1694, %v1702
      %v1705 = vmul.f32 %v1703, 1.442695
      %v1706 = vpow.pop %v1705
      %v1707 = vmul.f32 %v1704, 1.442695
      %v1708 = vpow.pop %v1707
      %v1709 = vsel %vm723, %v1706, 0.0
      %1710 = vadd.xlane.f32.xlu0 %v1709
      %v1711 = vpop.xlane.xlu0 %1710
      %v1712 = vsel %vm723, %v1708, 0.0
      %1713 = vadd.xlane.f32.xlu0 %v1712
      %v1714 = vpop.xlane.xlu0 %1713
      %v1715 = vrcp.pop %v1711
      %v1716 = vrcp.pop %v1714
      %v1717 = vmul.f32 %v1706, %v1715
      %v1718 = vmul.f32 %v1708, %v1716
      %1719 = vrot.lane.b32.xlu0 %v692, 48
      %v1720 = vpop.permute.xlu0 %1719
      %v1723 = vsel %vm723, %v1717, 0
      %1725 = vmatprep.subr.mxu0 0.0
      %1726 = vmatpush1.msra.mxu0 %v1720
      %1727 = vmatprep.subr.mxu0 0.0
      %1728 = vmatpush1.msra.mxu0 0.0
      %1729 = vmatprep.subr.mxu0 0.0
      %1730 = vmatpush1.msra.mxu0 0.0
      %1731 = vmatprep.subr.mxu0 0.0
      %1732 = vmatpush1.msra.mxu0 0.0
      %1733 = vmatprep.subr.mxu0 0.0
      %1734 = vmatpush1.msra.mxu0 0.0
      %1735 = vmatprep.subr.mxu0 0.0
      %1736 = vmatpush1.msra.mxu0 0.0
      %1737 = vmatprep.subr.mxu0 0.0
      %1738 = vmatpush1.msra.mxu0 0.0
      %1739 = vmatprep.subr.mxu0 0.0
      %1740 = vmatpush1.msra.mxu0 0.0
      %1741 = vmatprep.subr.mxu0 0.0
      %1742 = vmatpush1.msra.mxu0 0.0
      %1743 = vmatprep.subr.mxu0 0.0
      %1744 = vmatpush1.msra.mxu0 0.0
      %1745 = vmatprep.subr.mxu0 0.0
      %1746 = vmatpush1.msra.mxu0 0.0
      %1747 = vmatprep.subr.mxu0 0.0
      %1748 = vmatpush1.msra.mxu0 0.0
      %1749 = vmatprep.subr.mxu0 0.0
      %1750 = vmatpush1.msra.mxu0 0.0
      %1751 = vmatprep.subr.mxu0 0.0
      %1752 = vmatpush1.msra.mxu0 0.0
      %1753 = vmatprep.subr.mxu0 0.0
      %1754 = vmatpush1.msra.mxu0 0.0
      %1755 = vmatprep.subr.mxu0 0.0
      %1756 = vmatpush1.msra.mxu0 0.0
      %1757 = vmatprep.subr.mxu0 0.0
      %1758 = vmatpush1.msra.mxu0 0.0
      %1759 = vmatprep.subr.mxu0 0.0
      %1760 = vmatpush1.msra.mxu0 0.0
      %1761 = vmatprep.subr.mxu0 0.0
      %1762 = vmatpush1.msra.mxu0 0.0
      %1763 = vmatprep.subr.mxu0 0.0
      %1764 = vmatpush1.msra.mxu0 0.0
      %1765 = vmatprep.subr.mxu0 0.0
      %1766 = vmatpush1.msra.mxu0 0.0
      %1767 = vmatprep.subr.mxu0 0.0
      %1768 = vmatpush1.msra.mxu0 0.0
      %1769 = vmatprep.subr.mxu0 0.0
      %1770 = vmatpush1.msra.mxu0 0.0
      %1771 = vmatprep.subr.mxu0 0.0
      %1772 = vmatpush1.msra.mxu0 0.0
      %1773 = vmatprep.subr.mxu0 0.0
      %1774 = vmatpush1.msra.mxu0 0.0
      %1775 = vmatprep.subr.mxu0 0.0
      %1776 = vmatpush1.msra.mxu0 0.0
      %1777 = vmatprep.subr.mxu0 0.0
      %1778 = vmatpush1.msra.mxu0 0.0
      %1779 = vmatprep.subr.mxu0 0.0
      %1780 = vmatpush1.msra.mxu0 0.0
      %1781 = vmatprep.subr.mxu0 0.0
      %1782 = vmatpush1.msra.mxu0 0.0
      %1783 = vmatprep.subr.mxu0 0.0
      %1784 = vmatpush1.msra.mxu0 0.0
      %1785 = vmatprep.subr.mxu0 0.0
      %1786 = vmatpush1.msra.mxu0 0.0
      %1787 = vmatprep.subr.mxu0 0.0
      %1788 = vmatpush1.msra.mxu0 0.0
      %1789 = vmatprep.mubr.f32.mxu0 0.0
      %1790 = vmatmul.mubr.f32.gmra.mrb[0].mxu0 %v1723
      %v1791 = vpop.f32.mrb[0].mxu0
      %v1792 = vadd.f32 0.0, %v1791
      %v1793 = vpop.f32.mrb[0].mxu0
      %1794 = vdwg.mxu0
      %1795 = vrot.lane.b32.xlu0 %v695, 48
      %v1796 = vpop.permute.xlu0 %1795
      %v1799 = vsel %vm723, %v1718, 0
      %1801 = vmatprep.subr.mxu0 0.0
      %1802 = vmatpush1.msra.mxu0 %v1796
      %1803 = vmatprep.subr.mxu0 0.0
      %1804 = vmatpush1.msra.mxu0 0.0
      %1805 = vmatprep.subr.mxu0 0.0
      %1806 = vmatpush1.msra.mxu0 0.0
      %1807 = vmatprep.subr.mxu0 0.0
      %1808 = vmatpush1.msra.mxu0 0.0
      %1809 = vmatprep.subr.mxu0 0.0
      %1810 = vmatpush1.msra.mxu0 0.0
      %1811 = vmatprep.subr.mxu0 0.0
      %1812 = vmatpush1.msra.mxu0 0.0
      %1813 = vmatprep.subr.mxu0 0.0
      %1814 = vmatpush1.msra.mxu0 0.0
      %1815 = vmatprep.subr.mxu0 0.0
      %1816 = vmatpush1.msra.mxu0 0.0
      %1817 = vmatprep.subr.mxu0 0.0
      %1818 = vmatpush1.msra.mxu0 0.0
      %1819 = vmatprep.subr.mxu0 0.0
      %1820 = vmatpush1.msra.mxu0 0.0
      %1821 = vmatprep.subr.mxu0 0.0
      %1822 = vmatpush1.msra.mxu0 0.0
      %1823 = vmatprep.subr.mxu0 0.0
      %1824 = vmatpush1.msra.mxu0 0.0
      %1825 = vmatprep.subr.mxu0 0.0
      %1826 = vmatpush1.msra.mxu0 0.0
      %1827 = vmatprep.subr.mxu0 0.0
      %1828 = vmatpush1.msra.mxu0 0.0
      %1829 = vmatprep.subr.mxu0 0.0
      %1830 = vmatpush1.msra.mxu0 0.0
      %1831 = vmatprep.subr.mxu0 0.0
      %1832 = vmatpush1.msra.mxu0 0.0
      %1833 = vmatprep.subr.mxu0 0.0
      %1834 = vmatpush1.msra.mxu0 0.0
      %1835 = vmatprep.subr.mxu0 0.0
      %1836 = vmatpush1.msra.mxu0 0.0
      %1837 = vmatprep.subr.mxu0 0.0
      %1838 = vmatpush1.msra.mxu0 0.0
      %1839 = vmatprep.subr.mxu0 0.0
      %1840 = vmatpush1.msra.mxu0 0.0
      %1841 = vmatprep.subr.mxu0 0.0
      %1842 = vmatpush1.msra.mxu0 0.0
      %1843 = vmatprep.subr.mxu0 0.0
      %1844 = vmatpush1.msra.mxu0 0.0
      %1845 = vmatprep.subr.mxu0 0.0
      %1846 = vmatpush1.msra.mxu0 0.0
      %1847 = vmatprep.subr.mxu0 0.0
      %1848 = vmatpush1.msra.mxu0 0.0
      %1849 = vmatprep.subr.mxu0 0.0
      %1850 = vmatpush1.msra.mxu0 0.0
      %1851 = vmatprep.subr.mxu0 0.0
      %1852 = vmatpush1.msra.mxu0 0.0
      %1853 = vmatprep.subr.mxu0 0.0
      %1854 = vmatpush1.msra.mxu0 0.0
      %1855 = vmatprep.subr.mxu0 0.0
      %1856 = vmatpush1.msra.mxu0 0.0
      %1857 = vmatprep.subr.mxu0 0.0
      %1858 = vmatpush1.msra.mxu0 0.0
      %1859 = vmatprep.subr.mxu0 0.0
      %1860 = vmatpush1.msra.mxu0 0.0
      %1861 = vmatprep.subr.mxu0 0.0
      %1862 = vmatpush1.msra.mxu0 0.0
      %1863 = vmatprep.subr.mxu0 0.0
      %1864 = vmatpush1.msra.mxu0 0.0
      %1865 = vmatprep.mubr.f32.mxu0 0.0
      %1866 = vmatmul.mubr.f32.gmra.mrb[0].mxu0 %v1799
      %v1867 = vpop.f32.mrb[0].mxu0
      %v1868 = vadd.f32 0.0, %v1867
      %v1869 = vpop.f32.mrb[0].mxu0
      %1870 = vdwg.mxu0
      %v1872 = vsel %vm723, %v1792, 0
      %v1875 = vsel %vm723, %v1868, 0
      %1877 = vmatprep.subr.mxu0 0.0
      %1878 = vmatpush1.msra.mxu0 %v706
      %1879 = vmatprep.subr.mxu0 0.0
      %1880 = vmatpush1.msra.mxu0 0.0
      %1881 = vmatprep.subr.mxu0 0.0
      %1882 = vmatpush1.msra.mxu0 0.0
      %1883 = vmatprep.subr.mxu0 0.0
      %1884 = vmatpush1.msra.mxu0 0.0
      %1885 = vmatprep.subr.mxu0 0.0
      %1886 = vmatpush1.msra.mxu0 0.0
      %1887 = vmatprep.subr.mxu0 0.0
      %1888 = vmatpush1.msra.mxu0 0.0
      %1889 = vmatprep.subr.mxu0 0.0
      %1890 = vmatpush1.msra.mxu0 0.0
      %1891 = vmatprep.subr.mxu0 0.0
      %1892 = vmatpush1.msra.mxu0 0.0
      %1893 = vmatprep.subr.mxu0 0.0
      %1894 = vmatpush1.msra.mxu0 0.0
      %1895 = vmatprep.subr.mxu0 0.0
      %1896 = vmatpush1.msra.mxu0 0.0
      %1897 = vmatprep.subr.mxu0 0.0
      %1898 = vmatpush1.msra.mxu0 0.0
      %1899 = vmatprep.subr.mxu0 0.0
      %1900 = vmatpush1.msra.mxu0 0.0
      %1901 = vmatprep.subr.mxu0 0.0
      %1902 = vmatpush1.msra.mxu0 0.0
      %1903 = vmatprep.subr.mxu0 0.0
      %1904 = vmatpush1.msra.mxu0 0.0
      %1905 = vmatprep.subr.mxu0 0.0
      %1906 = vmatpush1.msra.mxu0 0.0
      %1907 = vmatprep.subr.mxu0 0.0
      %1908 = vmatpush1.msra.mxu0 0.0
      %1909 = vmatprep.subr.mxu0 0.0
      %1910 = vmatpush1.msra.mxu0 0.0
      %1911 = vmatprep.subr.mxu0 0.0
      %1912 = vmatpush1.msra.mxu0 0.0
      %1913 = vmatprep.subr.mxu0 0.0
      %1914 = vmatpush1.msra.mxu0 0.0
      %1915 = vmatprep.subr.mxu0 0.0
      %1916 = vmatpush1.msra.mxu0 0.0
      %1917 = vmatprep.subr.mxu0 0.0
      %1918 = vmatpush1.msra.mxu0 0.0
      %1919 = vmatprep.subr.mxu0 0.0
      %1920 = vmatpush1.msra.mxu0 0.0
      %1921 = vmatprep.subr.mxu0 0.0
      %1922 = vmatpush1.msra.mxu0 0.0
      %1923 = vmatprep.subr.mxu0 0.0
      %1924 = vmatpush1.msra.mxu0 0.0
      %1925 = vmatprep.subr.mxu0 0.0
      %1926 = vmatpush1.msra.mxu0 0.0
      %1927 = vmatprep.subr.mxu0 0.0
      %1928 = vmatpush1.msra.mxu0 0.0
      %1929 = vmatprep.subr.mxu0 0.0
      %1930 = vmatpush1.msra.mxu0 0.0
      %1931 = vmatprep.subr.mxu0 0.0
      %1932 = vmatpush1.msra.mxu0 0.0
      %1933 = vmatprep.subr.mxu0 0.0
      %1934 = vmatpush1.msra.mxu0 0.0
      %1935 = vmatprep.subr.mxu0 0.0
      %1936 = vmatpush1.msra.mxu0 0.0
      %1937 = vmatprep.subr.mxu0 0.0
      %1938 = vmatpush1.msra.mxu0 0.0
      %1939 = vmatprep.subr.mxu0 0.0
      %1940 = vmatpush1.msra.mxu0 0.0
      %1941 = vmatprep.mubr.f32.mxu0 0.0
      %1942 = vmatmul.mubr.f32.gmra.mrb[0].mxu0 %v1872
      %v1943 = vpop.f32.mrb[0].mxu0
      %v1944 = vadd.f32 0.0, %v1943
      %v1945 = vpop.f32.mrb[0].mxu0
      %1946 = vmatprep.mubr.f32.mxu0 0.0
      %1947 = vmatmul.mubr.f32.gmra.mrb[0].mxu0 %v1875
      %v1948 = vpop.f32.mrb[0].mxu0
      %v1949 = vadd.f32 0.0, %v1948
      %v1950 = vpop.f32.mrb[0].mxu0
      %1951 = vdwg.mxu0
      %v1952 = vadd.f32 %v1533, %v1944
      %v1953 = vadd.f32 %v1538, %v1949
      %1954 = vrot.lane.b32.xlu0 %v692, 104
      %v1955 = vpop.permute.xlu0 %1954
      %1956 = vrot.lane.b32.xlu0 %v692, 72
      %v1957 = vpop.permute.xlu0 %1956
      %v1958 = vsel %vm723, %v1955, 0
      %v1960 = vsel %vm723, %v1957, 0
      %1962 = vmatprep.subr.mxu0 0.0
      %1963 = vmatpush1.xpose.msra.mxu0 %v1960
      %1964 = vmatprep.subr.mxu0 0.0
      %1965 = vmatpush1.xpose.msra.mxu0 0.0
      %1966 = vmatprep.subr.mxu0 0.0
      %1967 = vmatpush1.xpose.msra.mxu0 0.0
      %1968 = vmatprep.subr.mxu0 0.0
      %1969 = vmatpush1.xpose.msra.mxu0 0.0
      %1970 = vmatprep.subr.mxu0 0.0
      %1971 = vmatpush1.xpose.msra.mxu0 0.0
      %1972 = vmatprep.subr.mxu0 0.0
      %1973 = vmatpush1.xpose.msra.mxu0 0.0
      %1974 = vmatprep.subr.mxu0 0.0
      %1975 = vmatpush1.xpose.msra.mxu0 0.0
      %1976 = vmatprep.subr.mxu0 0.0
      %1977 = vmatpush1.xpose.msra.mxu0 0.0
      %1978 = vmatprep.subr.mxu0 0.0
      %1979 = vmatpush1.xpose.msra.mxu0 0.0
      %1980 = vmatprep.subr.mxu0 0.0
      %1981 = vmatpush1.xpose.msra.mxu0 0.0
      %1982 = vmatprep.subr.mxu0 0.0
      %1983 = vmatpush1.xpose.msra.mxu0 0.0
      %1984 = vmatprep.subr.mxu0 0.0
      %1985 = vmatpush1.xpose.msra.mxu0 0.0
      %1986 = vmatprep.subr.mxu0 0.0
      %1987 = vmatpush1.xpose.msra.mxu0 0.0
      %1988 = vmatprep.subr.mxu0 0.0
      %1989 = vmatpush1.xpose.msra.mxu0 0.0
      %1990 = vmatprep.subr.mxu0 0.0
      %1991 = vmatpush1.xpose.msra.mxu0 0.0
      %1992 = vmatprep.subr.mxu0 0.0
      %1993 = vmatpush1.xpose.msra.mxu0 0.0
      %1994 = vmatprep.subr.mxu0 0.0
      %1995 = vmatpush1.xpose.msra.mxu0 0.0
      %1996 = vmatprep.subr.mxu0 0.0
      %1997 = vmatpush1.xpose.msra.mxu0 0.0
      %1998 = vmatprep.subr.mxu0 0.0
      %1999 = vmatpush1.xpose.msra.mxu0 0.0
      %2000 = vmatprep.subr.mxu0 0.0
      %2001 = vmatpush1.xpose.msra.mxu0 0.0
      %2002 = vmatprep.subr.mxu0 0.0
      %2003 = vmatpush1.xpose.msra.mxu0 0.0
      %2004 = vmatprep.subr.mxu0 0.0
      %2005 = vmatpush1.xpose.msra.mxu0 0.0
      %2006 = vmatprep.subr.mxu0 0.0
      %2007 = vmatpush1.xpose.msra.mxu0 0.0
      %2008 = vmatprep.subr.mxu0 0.0
      %2009 = vmatpush1.xpose.msra.mxu0 0.0
      %2010 = vmatprep.subr.mxu0 0.0
      %2011 = vmatpush1.xpose.msra.mxu0 0.0
      %2012 = vmatprep.subr.mxu0 0.0
      %2013 = vmatpush1.xpose.msra.mxu0 0.0
      %2014 = vmatprep.subr.mxu0 0.0
      %2015 = vmatpush1.xpose.msra.mxu0 0.0
      %2016 = vmatprep.subr.mxu0 0.0
      %2017 = vmatpush1.xpose.msra.mxu0 0.0
      %2018 = vmatprep.subr.mxu0 0.0
      %2019 = vmatpush1.xpose.msra.mxu0 0.0
      %2020 = vmatprep.subr.mxu0 0.0
      %2021 = vmatpush1.xpose.msra.mxu0 0.0
      %2022 = vmatprep.subr.mxu0 0.0
      %2023 = vmatpush1.xpose.msra.mxu0 0.0
      %2024 = vmatprep.subr.mxu0 0.0
      %2025 = vmatpush1.xpose.msra.mxu0 0.0
      %2026 = vmatprep.mubr.f32.mxu0 0.0
      %2027 = vmatmul.mubr.f32.gmra.mrb[0].mxu0 %v1958
      %v2028 = vpop.f32.mrb[0].mxu0
      %v2029 = vadd.f32 %v713, %v2028
      %v2030 = vpop.f32.mrb[0].mxu0
      %2031 = vdwg.mxu0
      %2032 = vrot.lane.b32.xlu0 %v695, 104
      %v2033 = vpop.permute.xlu0 %2032
      %2034 = vrot.lane.b32.xlu0 %v695, 72
      %v2035 = vpop.permute.xlu0 %2034
      %v2036 = vsel %vm723, %v2033, 0
      %v2038 = vsel %vm723, %v2035, 0
      %2040 = vmatprep.subr.mxu0 0.0
      %2041 = vmatpush1.xpose.msra.mxu0 %v2038
      %2042 = vmatprep.subr.mxu0 0.0
      %2043 = vmatpush1.xpose.msra.mxu0 0.0
      %2044 = vmatprep.subr.mxu0 0.0
      %2045 = vmatpush1.xpose.msra.mxu0 0.0
      %2046 = vmatprep.subr.mxu0 0.0
      %2047 = vmatpush1.xpose.msra.mxu0 0.0
      %2048 = vmatprep.subr.mxu0 0.0
      %2049 = vmatpush1.xpose.msra.mxu0 0.0
      %2050 = vmatprep.subr.mxu0 0.0
      %2051 = vmatpush1.xpose.msra.mxu0 0.0
      %2052 = vmatprep.subr.mxu0 0.0
      %2053 = vmatpush1.xpose.msra.mxu0 0.0
      %2054 = vmatprep.subr.mxu0 0.0
      %2055 = vmatpush1.xpose.msra.mxu0 0.0
      %2056 = vmatprep.subr.mxu0 0.0
      %2057 = vmatpush1.xpose.msra.mxu0 0.0
      %2058 = vmatprep.subr.mxu0 0.0
      %2059 = vmatpush1.xpose.msra.mxu0 0.0
      %2060 = vmatprep.subr.mxu0 0.0
      %2061 = vmatpush1.xpose.msra.mxu0 0.0
      %2062 = vmatprep.subr.mxu0 0.0
      %2063 = vmatpush1.xpose.msra.mxu0 0.0
      %2064 = vmatprep.subr.mxu0 0.0
      %2065 = vmatpush1.xpose.msra.mxu0 0.0
      %2066 = vmatprep.subr.mxu0 0.0
      %2067 = vmatpush1.xpose.msra.mxu0 0.0
      %2068 = vmatprep.subr.mxu0 0.0
      %2069 = vmatpush1.xpose.msra.mxu0 0.0
      %2070 = vmatprep.subr.mxu0 0.0
      %2071 = vmatpush1.xpose.msra.mxu0 0.0
      %2072 = vmatprep.subr.mxu0 0.0
      %2073 = vmatpush1.xpose.msra.mxu0 0.0
      %2074 = vmatprep.subr.mxu0 0.0
      %2075 = vmatpush1.xpose.msra.mxu0 0.0
      %2076 = vmatprep.subr.mxu0 0.0
      %2077 = vmatpush1.xpose.msra.mxu0 0.0
      %2078 = vmatprep.subr.mxu0 0.0
      %2079 = vmatpush1.xpose.msra.mxu0 0.0
      %2080 = vmatprep.subr.mxu0 0.0
      %2081 = vmatpush1.xpose.msra.mxu0 0.0
      %2082 = vmatprep.subr.mxu0 0.0
      %2083 = vmatpush1.xpose.msra.mxu0 0.0
      %2084 = vmatprep.subr.mxu0 0.0
      %2085 = vmatpush1.xpose.msra.mxu0 0.0
      %2086 = vmatprep.subr.mxu0 0.0
      %2087 = vmatpush1.xpose.msra.mxu0 0.0
      %2088 = vmatprep.subr.mxu0 0.0
      %2089 = vmatpush1.xpose.msra.mxu0 0.0
      %2090 = vmatprep.subr.mxu0 0.0
      %2091 = vmatpush1.xpose.msra.mxu0 0.0
      %2092 = vmatprep.subr.mxu0 0.0
      %2093 = vmatpush1.xpose.msra.mxu0 0.0
      %2094 = vmatprep.subr.mxu0 0.0
      %2095 = vmatpush1.xpose.msra.mxu0 0.0
      %2096 = vmatprep.subr.mxu0 0.0
      %2097 = vmatpush1.xpose.msra.mxu0 0.0
      %2098 = vmatprep.subr.mxu0 0.0
      %2099 = vmatpush1.xpose.msra.mxu0 0.0
      %2100 = vmatprep.subr.mxu0 0.0
      %2101 = vmatpush1.xpose.msra.mxu0 0.0
      %2102 = vmatprep.subr.mxu0 0.0
      %2103 = vmatpush1.xpose.msra.mxu0 0.0
      %2104 = vmatprep.mubr.f32.mxu0 0.0
      %2105 = vmatmul.mubr.f32.gmra.mrb[0].mxu0 %v2036
      %v2106 = vpop.f32.mrb[0].mxu0
      %v2107 = vadd.f32 %v717, %v2106
      %v2108 = vpop.f32.mrb[0].mxu0
      %2109 = vdwg.mxu0
      %v2110 = vsel %vm723, %v2029, -inf
      %2111 = vmax.xlane.f32.xlu0 %v2110
      %v2112 = vpop.xlane.xlu0 %2111
      %v2113 = vsel %vm723, %v2107, -inf
      %2114 = vmax.xlane.f32.xlu0 %v2113
      %v2115 = vpop.xlane.xlu0 %2114
      %v2116 = vsub.f32 %v2029, %v2112
      %v2117 = vsub.f32 %v2107, %v2115
      %v2118 = vmul.f32 %v2116, 1.442695
      %v2119 = vpow.pop %v2118
      %v2120 = vmul.f32 %v2117, 1.442695
      %v2121 = vpow.pop %v2120
      %v2122 = vsel %vm723, %v2119, 0.0
      %2123 = vadd.xlane.f32.xlu0 %v2122
      %v2124 = vpop.xlane.xlu0 %2123
      %v2125 = vsel %vm723, %v2121, 0.0
      %2126 = vadd.xlane.f32.xlu0 %v2125
      %v2127 = vpop.xlane.xlu0 %2126
      %v2128 = vrcp.pop %v2124
      %v2129 = vrcp.pop %v2127
      %v2130 = vmul.f32 %v2119, %v2128
      %v2131 = vmul.f32 %v2121, %v2129
      %2132 = vrot.lane.b32.xlu0 %v692, 40
      %v2133 = vpop.permute.xlu0 %2132
      %v2136 = vsel %vm723, %v2130, 0
      %2138 = vmatprep.subr.mxu0 0.0
      %2139 = vmatpush1.msra.mxu0 %v2133
      %2140 = vmatprep.subr.mxu0 0.0
      %2141 = vmatpush1.msra.mxu0 0.0
      %2142 = vmatprep.subr.mxu0 0.0
      %2143 = vmatpush1.msra.mxu0 0.0
      %2144 = vmatprep.subr.mxu0 0.0
      %2145 = vmatpush1.msra.mxu0 0.0
      %2146 = vmatprep.subr.mxu0 0.0
      %2147 = vmatpush1.msra.mxu0 0.0
      %2148 = vmatprep.subr.mxu0 0.0
      %2149 = vmatpush1.msra.mxu0 0.0
      %2150 = vmatprep.subr.mxu0 0.0
      %2151 = vmatpush1.msra.mxu0 0.0
      %2152 = vmatprep.subr.mxu0 0.0
      %2153 = vmatpush1.msra.mxu0 0.0
      %2154 = vmatprep.subr.mxu0 0.0
      %2155 = vmatpush1.msra.mxu0 0.0
      %2156 = vmatprep.subr.mxu0 0.0
      %2157 = vmatpush1.msra.mxu0 0.0
      %2158 = vmatprep.subr.mxu0 0.0
      %2159 = vmatpush1.msra.mxu0 0.0
      %2160 = vmatprep.subr.mxu0 0.0
      %2161 = vmatpush1.msra.mxu0 0.0
      %2162 = vmatprep.subr.mxu0 0.0
      %2163 = vmatpush1.msra.mxu0 0.0
      %2164 = vmatprep.subr.mxu0 0.0
      %2165 = vmatpush1.msra.mxu0 0.0
      %2166 = vmatprep.subr.mxu0 0.0
      %2167 = vmatpush1.msra.mxu0 0.0
      %2168 = vmatprep.subr.mxu0 0.0
      %2169 = vmatpush1.msra.mxu0 0.0
      %2170 = vmatprep.subr.mxu0 0.0
      %2171 = vmatpush1.msra.mxu0 0.0
      %2172 = vmatprep.subr.mxu0 0.0
      %2173 = vmatpush1.msra.mxu0 0.0
      %2174 = vmatprep.subr.mxu0 0.0
      %2175 = vmatpush1.msra.mxu0 0.0
      %2176 = vmatprep.subr.mxu0 0.0
      %2177 = vmatpush1.msra.mxu0 0.0
      %2178 = vmatprep.subr.mxu0 0.0
      %2179 = vmatpush1.msra.mxu0 0.0
      %2180 = vmatprep.subr.mxu0 0.0
      %2181 = vmatpush1.msra.mxu0 0.0
      %2182 = vmatprep.subr.mxu0 0.0
      %2183 = vmatpush1.msra.mxu0 0.0
      %2184 = vmatprep.subr.mxu0 0.0
      %2185 = vmatpush1.msra.mxu0 0.0
      %2186 = vmatprep.subr.mxu0 0.0
      %2187 = vmatpush1.msra.mxu0 0.0
      %2188 = vmatprep.subr.mxu0 0.0
      %2189 = vmatpush1.msra.mxu0 0.0
      %2190 = vmatprep.subr.mxu0 0.0
      %2191 = vmatpush1.msra.mxu0 0.0
      %2192 = vmatprep.subr.mxu0 0.0
      %2193 = vmatpush1.msra.mxu0 0.0
      %2194 = vmatprep.subr.mxu0 0.0
      %2195 = vmatpush1.msra.mxu0 0.0
      %2196 = vmatprep.subr.mxu0 0.0
      %2197 = vmatpush1.msra.mxu0 0.0
      %2198 = vmatprep.subr.mxu0 0.0
      %2199 = vmatpush1.msra.mxu0 0.0
      %2200 = vmatprep.subr.mxu0 0.0
      %2201 = vmatpush1.msra.mxu0 0.0
      %2202 = vmatprep.mubr.f32.mxu0 0.0
      %2203 = vmatmul.mubr.f32.gmra.mrb[0].mxu0 %v2136
      %v2204 = vpop.f32.mrb[0].mxu0
      %v2205 = vadd.f32 0.0, %v2204
      %v2206 = vpop.f32.mrb[0].mxu0
      %2207 = vdwg.mxu0
      %2208 = vrot.lane.b32.xlu0 %v695, 40
      %v2209 = vpop.permute.xlu0 %2208
      %v2212 = vsel %vm723, %v2131, 0
      %2214 = vmatprep.subr.mxu0 0.0
      %2215 = vmatpush1.msra.mxu0 %v2209
      %2216 = vmatprep.subr.mxu0 0.0
      %2217 = vmatpush1.msra.mxu0 0.0
      %2218 = vmatprep.subr.mxu0 0.0
      %2219 = vmatpush1.msra.mxu0 0.0
      %2220 = vmatprep.subr.mxu0 0.0
      %2221 = vmatpush1.msra.mxu0 0.0
      %2222 = vmatprep.subr.mxu0 0.0
      %2223 = vmatpush1.msra.mxu0 0.0
      %2224 = vmatprep.subr.mxu0 0.0
      %2225 = vmatpush1.msra.mxu0 0.0
      %2226 = vmatprep.subr.mxu0 0.0
      %2227 = vmatpush1.msra.mxu0 0.0
      %2228 = vmatprep.subr.mxu0 0.0
      %2229 = vmatpush1.msra.mxu0 0.0
      %2230 = vmatprep.subr.mxu0 0.0
      %2231 = vmatpush1.msra.mxu0 0.0
      %2232 = vmatprep.subr.mxu0 0.0
      %2233 = vmatpush1.msra.mxu0 0.0
      %2234 = vmatprep.subr.mxu0 0.0
      %2235 = vmatpush1.msra.mxu0 0.0
      %2236 = vmatprep.subr.mxu0 0.0
      %2237 = vmatpush1.msra.mxu0 0.0
      %2238 = vmatprep.subr.mxu0 0.0
      %2239 = vmatpush1.msra.mxu0 0.0
      %2240 = vmatprep.subr.mxu0 0.0
      %2241 = vmatpush1.msra.mxu0 0.0
      %2242 = vmatprep.subr.mxu0 0.0
      %2243 = vmatpush1.msra.mxu0 0.0
      %2244 = vmatprep.subr.mxu0 0.0
      %2245 = vmatpush1.msra.mxu0 0.0
      %2246 = vmatprep.subr.mxu0 0.0
      %2247 = vmatpush1.msra.mxu0 0.0
      %2248 = vmatprep.subr.mxu0 0.0
      %2249 = vmatpush1.msra.mxu0 0.0
      %2250 = vmatprep.subr.mxu0 0.0
      %2251 = vmatpush1.msra.mxu0 0.0
      %2252 = vmatprep.subr.mxu0 0.0
      %2253 = vmatpush1.msra.mxu0 0.0
      %2254 = vmatprep.subr.mxu0 0.0
      %2255 = vmatpush1.msra.mxu0 0.0
      %2256 = vmatprep.subr.mxu0 0.0
      %2257 = vmatpush1.msra.mxu0 0.0
      %2258 = vmatprep.subr.mxu0 0.0
      %2259 = vmatpush1.msra.mxu0 0.0
      %2260 = vmatprep.subr.mxu0 0.0
      %2261 = vmatpush1.msra.mxu0 0.0
      %2262 = vmatprep.subr.mxu0 0.0
      %2263 = vmatpush1.msra.mxu0 0.0
      %2264 = vmatprep.subr.mxu0 0.0
      %2265 = vmatpush1.msra.mxu0 0.0
      %2266 = vmatprep.subr.mxu0 0.0
      %2267 = vmatpush1.msra.mxu0 0.0
      %2268 = vmatprep.subr.mxu0 0.0
      %2269 = vmatpush1.msra.mxu0 0.0
      %2270 = vmatprep.subr.mxu0 0.0
      %2271 = vmatpush1.msra.mxu0 0.0
      %2272 = vmatprep.subr.mxu0 0.0
      %2273 = vmatpush1.msra.mxu0 0.0
      %2274 = vmatprep.subr.mxu0 0.0
      %2275 = vmatpush1.msra.mxu0 0.0
      %2276 = vmatprep.subr.mxu0 0.0
      %2277 = vmatpush1.msra.mxu0 0.0
      %2278 = vmatprep.mubr.f32.mxu0 0.0
      %2279 = vmatmul.mubr.f32.gmra.mrb[0].mxu0 %v2212
      %v2280 = vpop.f32.mrb[0].mxu0
      %v2281 = vadd.f32 0.0, %v2280
      %v2282 = vpop.f32.mrb[0].mxu0
      %2283 = vdwg.mxu0
      %v2285 = vsel %vm723, %v2205, 0
      %v2288 = vsel %vm723, %v2281, 0
      %2290 = vmatprep.subr.mxu0 0.0
      %2291 = vmatpush1.msra.mxu0 %v707
      %2292 = vmatprep.subr.mxu0 0.0
      %2293 = vmatpush1.msra.mxu0 0.0
      %2294 = vmatprep.subr.mxu0 0.0
      %2295 = vmatpush1.msra.mxu0 0.0
      %2296 = vmatprep.subr.mxu0 0.0
      %2297 = vmatpush1.msra.mxu0 0.0
      %2298 = vmatprep.subr.mxu0 0.0
      %2299 = vmatpush1.msra.mxu0 0.0
      %2300 = vmatprep.subr.mxu0 0.0
      %2301 = vmatpush1.msra.mxu0 0.0
      %2302 = vmatprep.subr.mxu0 0.0
      %2303 = vmatpush1.msra.mxu0 0.0
      %2304 = vmatprep.subr.mxu0 0.0
      %2305 = vmatpush1.msra.mxu0 0.0
      %2306 = vmatprep.subr.mxu0 0.0
      %2307 = vmatpush1.msra.mxu0 0.0
      %2308 = vmatprep.subr.mxu0 0.0
      %2309 = vmatpush1.msra.mxu0 0.0
      %2310 = vmatprep.subr.mxu0 0.0
      %2311 = vmatpush1.msra.mxu0 0.0
      %2312 = vmatprep.subr.mxu0 0.0
      %2313 = vmatpush1.msra.mxu0 0.0
      %2314 = vmatprep.subr.mxu0 0.0
      %2315 = vmatpush1.msra.mxu0 0.0
      %2316 = vmatprep.subr.mxu0 0.0
      %2317 = vmatpush1.msra.mxu0 0.0
      %2318 = vmatprep.subr.mxu0 0.0
      %2319 = vmatpush1.msra.mxu0 0.0
      %2320 = vmatprep.subr.mxu0 0.0
      %2321 = vmatpush1.msra.mxu0 0.0
      %2322 = vmatprep.subr.mxu0 0.0
      %2323 = vmatpush1.msra.mxu0 0.0
      %2324 = vmatprep.subr.mxu0 0.0
      %2325 = vmatpush1.msra.mxu0 0.0
      %2326 = vmatprep.subr.mxu0 0.0
      %2327 = vmatpush1.msra.mxu0 0.0
      %2328 = vmatprep.subr.mxu0 0.0
      %2329 = vmatpush1.msra.mxu0 0.0
      %2330 = vmatprep.subr.mxu0 0.0
      %2331 = vmatpush1.msra.mxu0 0.0
      %2332 = vmatprep.subr.mxu0 0.0
      %2333 = vmatpush1.msra.mxu0 0.0
      %2334 = vmatprep.subr.mxu0 0.0
      %2335 = vmatpush1.msra.mxu0 0.0
      %2336 = vmatprep.subr.mxu0 0.0
      %2337 = vmatpush1.msra.mxu0 0.0
      %2338 = vmatprep.subr.mxu0 0.0
      %2339 = vmatpush1.msra.mxu0 0.0
      %2340 = vmatprep.subr.mxu0 0.0
      %2341 = vmatpush1.msra.mxu0 0.0
      %2342 = vmatprep.subr.mxu0 0.0
      %2343 = vmatpush1.msra.mxu0 0.0
      %2344 = vmatprep.subr.mxu0 0.0
      %2345 = vmatpush1.msra.mxu0 0.0
      %2346 = vmatprep.subr.mxu0 0.0
      %2347 = vmatpush1.msra.mxu0 0.0
      %2348 = vmatprep.subr.mxu0 0.0
      %2349 = vmatpush1.msra.mxu0 0.0
      %2350 = vmatprep.subr.mxu0 0.0
      %2351 = vmatpush1.msra.mxu0 0.0
      %2352 = vmatprep.subr.mxu0 0.0
      %2353 = vmatpush1.msra.mxu0 0.0
      %2354 = vmatprep.mubr.f32.mxu0 0.0
      %2355 = vmatmul.mubr.f32.gmra.mrb[0].mxu0 %v2285
      %v2356 = vpop.f32.mrb[0].mxu0
      %v2357 = vadd.f32 0.0, %v2356
      %v2358 = vpop.f32.mrb[0].mxu0
      %2359 = vmatprep.mubr.f32.mxu0 0.0
      %2360 = vmatmul.mubr.f32.gmra.mrb[0].mxu0 %v2288
      %v2361 = vpop.f32.mrb[0].mxu0
      %v2362 = vadd.f32 0.0, %v2361
      %v2363 = vpop.f32.mrb[0].mxu0
      %2364 = vdwg.mxu0
      %v2365 = vadd.f32 %v1952, %v2357
      %v2366 = vadd.f32 %v1953, %v2362
      %v2367 = vld [vmem:[%s587] sm:$0x1]
      %v2368 = vunpack.c.l.bf16 %v2367
      %v2369 = vlaneseq
      %v2370 = vshrl.u32 %v2369, 7
      %v2371 = vsub.s32 0, %v2370
      %v2372 = vrot.slane %v2368, %v2371
      %v2373 = vadd.f32 %v2365, %v2372
      %v2374 = vadd.f32 %v2366, %v2372
      %v2375 = vld [vmem:[%s607] sm:$0xf]
      %v2376 = vunpack.c.l.bf16 %v2375
      %v2377 = vld [vmem:[%s611] sm:$0xf]
      %v2378 = vunpack.c.l.bf16 %v2377
      %v2379 = vadd.f32 %v2373, %v628
      %v2380 = vadd.f32 %v2374, %v629
      %v2381 = vsel %vm653, %v2379, 0.0
      %2382 = vadd.xlane.f32.xlu0 %v2381
      %v2383 = vpop.xlane.xlu0 %2382
      %v2384 = vsel %vm653, %v2380, 0.0
      %2385 = vadd.xlane.f32.xlu0 %v2384
      %v2386 = vpop.xlane.xlu0 %2385
      %v2387 = vrcp.pop 32.0
      %v2388 = vmul.f32 %v2383, %v2387
      %v2389 = vmul.f32 %v2386, %v2387
      %v2390 = vrot.slane %v2388, 4
      %v2391 = vadd.f32 %v2388, %v2390
      %v2392 = vrot.slane %v2391, 2
      %v2393 = vadd.f32 %v2391, %v2392
      %v2394 = vrot.slane %v2393, 1
      %v2395 = vadd.f32 %v2393, %v2394
      %v2396 = vrot.slane %v2389, 4
      %v2397 = vadd.f32 %v2389, %v2396
      %v2398 = vrot.slane %v2397, 2
      %v2399 = vadd.f32 %v2397, %v2398
      %v2400 = vrot.slane %v2399, 1
      %v2401 = vadd.f32 %v2399, %v2400
      %v2402 = vrcp.pop 8.0
      %v2403 = vmul.f32 %v2395, %v2402
      %v2404 = vmul.f32 %v2401, %v2402
      %v2405 = vsub.f32 %v2379, %v2403
      %v2406 = vsub.f32 %v2380, %v2404
      %v2407 = vmul.f32 %v2405, %v2405
      %v2408 = vmul.f32 %v2406, %v2406
      %v2409 = vsel %vm653, %v2407, 0.0
      %2410 = vadd.xlane.f32.xlu0 %v2409
      %v2411 = vpop.xlane.xlu0 %2410
      %v2412 = vsel %vm653, %v2408, 0.0
      %2413 = vadd.xlane.f32.xlu0 %v2412
      %v2414 = vpop.xlane.xlu0 %2413
      %v2415 = vmul.f32 %v2411, %v2387
      %v2416 = vmul.f32 %v2414, %v2387
      %v2417 = vrot.slane %v2415, 4
      %v2418 = vadd.f32 %v2415, %v2417
      %v2419 = vrot.slane %v2418, 2
      %v2420 = vadd.f32 %v2418, %v2419
      %v2421 = vrot.slane %v2420, 1
      %v2422 = vadd.f32 %v2420, %v2421
      %v2423 = vrot.slane %v2416, 4
      %v2424 = vadd.f32 %v2416, %v2423
      %v2425 = vrot.slane %v2424, 2
      %v2426 = vadd.f32 %v2424, %v2425
      %v2427 = vrot.slane %v2426, 1
      %v2428 = vadd.f32 %v2426, %v2427
      %v2429 = vmul.f32 %v2422, %v2402
      %v2430 = vmul.f32 %v2428, %v2402
      %v2431 = vadd.f32 %v2429, 1e-06
      %v2432 = vadd.f32 %v2430, 1e-06
      %v2433 = vrsqrt.pop %v2431
      %v2434 = vrsqrt.pop %v2432
      %v2435 = vmul.f32 %v2405, %v2433
      %v2436 = vmul.f32 %v2406, %v2434
      %v2437 = vmul.f32 %v2435, %v2376
      %v2438 = vmul.f32 %v2436, %v2376
      %v2439 = vadd.f32 %v2437, %v2378
      %v2440 = vadd.f32 %v2438, %v2378
      %v2441 = vld [vmem:[%s592] sm:$0xf]
      %v2442 = vld [vmem:[%s592 + $0x4] sm:$0xf]
      %v2443 = vld [vmem:[%s592 + $0x8] sm:$0xf]
      %v2444 = vld [vmem:[%s592 + $0xc] sm:$0xf]
      %v2445 = vpack.c.bf16 %v2440, %v2439
      %v2446 = vld [vmem:[%s595] sm:$0x1]
      %v2447 = vunpack.c.l.bf16 %v2446
      %v2448 = vlaneseq
      %v2449 = vshrl.u32 %v2448, 7
      %v2450 = vsub.s32 0, %v2449
      %v2451 = vrot.slane %v2447, %v2450
      %v2456 = vunpack.c.l.b16 %v2441
      %v2457 = vunpack.c.l.b16 %v2442
      %v2458 = vunpack.c.l.b16 %v2443
      %v2459 = vunpack.c.l.b16 %v2444
      %v2460 = vpack.c.b16 %v2457, %v2456
      %v2461 = vpack.c.b16 %v2459, %v2458
      %v2465 = vsel %vm653, %v2445, 0
      %2467 = vmatprep.subr.bf16.mxu0 0
      %2468 = vmatpush1.bf16.msra.mxu0 %v2460
      %2469 = vmatprep.subr.bf16.mxu0 0
      %2470 = vmatpush1.bf16.msra.mxu0 %v2461
      %2471 = vmatprep.subr.bf16.mxu0 0
      %2472 = vmatpush1.bf16.msra.mxu0 0
      %2473 = vmatprep.subr.bf16.mxu0 0
      %2474 = vmatpush1.bf16.msra.mxu0 0
      %2475 = vmatprep.subr.bf16.mxu0 0
      %2476 = vmatpush1.bf16.msra.mxu0 0
      %2477 = vmatprep.subr.bf16.mxu0 0
      %2478 = vmatpush1.bf16.msra.mxu0 0
      %2479 = vmatprep.subr.bf16.mxu0 0
      %2480 = vmatpush1.bf16.msra.mxu0 0
      %2481 = vmatprep.subr.bf16.mxu0 0
      %2482 = vmatpush1.bf16.msra.mxu0 0
      %2483 = vmatprep.subr.bf16.mxu0 0
      %2484 = vmatpush1.bf16.msra.mxu0 0
      %2485 = vmatprep.subr.bf16.mxu0 0
      %2486 = vmatpush1.bf16.msra.mxu0 0
      %2487 = vmatprep.subr.bf16.mxu0 0
      %2488 = vmatpush1.bf16.msra.mxu0 0
      %2489 = vmatprep.subr.bf16.mxu0 0
      %2490 = vmatpush1.bf16.msra.mxu0 0
      %2491 = vmatprep.subr.bf16.mxu0 0
      %2492 = vmatpush1.bf16.msra.mxu0 0
      %2493 = vmatprep.subr.bf16.mxu0 0
      %2494 = vmatpush1.bf16.msra.mxu0 0
      %2495 = vmatprep.subr.bf16.mxu0 0
      %2496 = vmatpush1.bf16.msra.mxu0 0
      %2497 = vmatprep.subr.bf16.mxu0 0
      %2498 = vmatpush1.bf16.msra.mxu0 0
      %2499 = vmatprep.mubr.bf16.mxu0 0
      %2500 = vmatmul.mubr.bf16.gmra.mrb[0].mxu0 %v2465
      %v2501 = vpop.f32.mrb[0].mxu0
      %v2502 = vadd.f32 %v2451, %v2501
      %v2503 = vpop.f32.mrb[0].mxu0
      %v2504 = vpop.f32.mrb[0].mxu0
      %v2505 = vadd.f32 %v2451, %v2504
      %v2506 = vpop.f32.mrb[0].mxu0
      %2507 = vdwg.mxu0
      %v2508 = vmax.f32 %v2502, 0.0
      %v2509 = vmax.f32 %v2505, 0.0
      %v2510 = vld [vmem:[%s600] sm:$0xf]
      %v2511 = vld [vmem:[%s600 + $0x4] sm:$0xf]
      %v2512 = vld [vmem:[%s600 + $0x8] sm:$0xf]
      %v2513 = vld [vmem:[%s600 + $0xc] sm:$0xf]
      %v2514 = vld [vmem:[%s600 + $0x10] sm:$0xf]
      %v2515 = vld [vmem:[%s600 + $0x14] sm:$0xf]
      %v2516 = vld [vmem:[%s600 + $0x18] sm:$0xf]
      %v2517 = vld [vmem:[%s600 + $0x1c] sm:$0xf]
      %v2518 = vpack.c.bf16 %v2509, %v2508
      %v2519 = vld [vmem:[%s603] sm:$0x1]
      %v2520 = vunpack.c.l.bf16 %v2519
      %v2521 = vlaneseq
      %v2522 = vshrl.u32 %v2521, 7
      %v2523 = vsub.s32 0, %v2522
      %v2524 = vrot.slane %v2520, %v2523
      %v2533 = vunpack.c.l.b16 %v2510
      %v2534 = vunpack.c.l.b16 %v2511
      %v2535 = vunpack.c.l.b16 %v2512
      %v2536 = vunpack.c.l.b16 %v2513
      %v2537 = vunpack.c.l.b16 %v2514
      %v2538 = vunpack.c.l.b16 %v2515
      %v2539 = vunpack.c.l.b16 %v2516
      %v2540 = vunpack.c.l.b16 %v2517
      %v2541 = vpack.c.b16 %v2534, %v2533
      %v2542 = vpack.c.b16 %v2536, %v2535
      %v2543 = vpack.c.b16 %v2538, %v2537
      %v2544 = vpack.c.b16 %v2540, %v2539
      %vm2549 = vcmask 523264
      %v2551 = vsel %vm2549, %v2518, 0
      %2553 = vmatprep.subr.bf16.mxu0 0
      %2554 = vmatpush1.bf16.msra.mxu0 %v2541
      %2555 = vmatprep.subr.bf16.mxu0 0
      %2556 = vmatpush1.bf16.msra.mxu0 %v2542
      %2557 = vmatprep.subr.bf16.mxu0 0
      %2558 = vmatpush1.bf16.msra.mxu0 %v2543
      %2559 = vmatprep.subr.bf16.mxu0 0
      %2560 = vmatpush1.bf16.msra.mxu0 %v2544
      %2561 = vmatprep.subr.bf16.mxu0 0
      %2562 = vmatpush1.bf16.msra.mxu0 0
      %2563 = vmatprep.subr.bf16.mxu0 0
      %2564 = vmatpush1.bf16.msra.mxu0 0
      %2565 = vmatprep.subr.bf16.mxu0 0
      %2566 = vmatpush1.bf16.msra.mxu0 0
      %2567 = vmatprep.subr.bf16.mxu0 0
      %2568 = vmatpush1.bf16.msra.mxu0 0
      %2569 = vmatprep.subr.bf16.mxu0 0
      %2570 = vmatpush1.bf16.msra.mxu0 0
      %2571 = vmatprep.subr.bf16.mxu0 0
      %2572 = vmatpush1.bf16.msra.mxu0 0
      %2573 = vmatprep.subr.bf16.mxu0 0
      %2574 = vmatpush1.bf16.msra.mxu0 0
      %2575 = vmatprep.subr.bf16.mxu0 0
      %2576 = vmatpush1.bf16.msra.mxu0 0
      %2577 = vmatprep.subr.bf16.mxu0 0
      %2578 = vmatpush1.bf16.msra.mxu0 0
      %2579 = vmatprep.subr.bf16.mxu0 0
      %2580 = vmatpush1.bf16.msra.mxu0 0
      %2581 = vmatprep.subr.bf16.mxu0 0
      %2582 = vmatpush1.bf16.msra.mxu0 0
      %2583 = vmatprep.subr.bf16.mxu0 0
      %2584 = vmatpush1.bf16.msra.mxu0 0
      %2585 = vmatprep.mubr.bf16.mxu0 0
      %2586 = vmatmul.mubr.bf16.gmra.mrb[0].mxu0 %v2551
      %v2587 = vpop.f32.mrb[0].mxu0
      %v2588 = vadd.f32 %v2524, %v2587
      %v2589 = vpop.f32.mrb[0].mxu0
      %v2590 = vpop.f32.mrb[0].mxu0
      %v2591 = vadd.f32 %v2524, %v2590
      %v2592 = vpop.f32.mrb[0].mxu0
      %2593 = vdwg.mxu0
      %v2594 = vadd.f32 %v2588, %v2439
      %v2595 = vadd.f32 %v2591, %v2440
      %v2596 = vsel %vm653, %v2594, 0.0
      %2597 = vadd.xlane.f32.xlu0 %v2596
      %v2598 = vpop.xlane.xlu0 %2597
      %v2599 = vsel %vm653, %v2595, 0.0
      %2600 = vadd.xlane.f32.xlu0 %v2599
      %v2601 = vpop.xlane.xlu0 %2600
      %v2602 = vmul.f32 %v2598, %v2387
      %v2603 = vmul.f32 %v2601, %v2387
      %v2604 = vrot.slane %v2602, 4
      %v2605 = vadd.f32 %v2602, %v2604
      %v2606 = vrot.slane %v2605, 2
      %v2607 = vadd.f32 %v2605, %v2606
      %v2608 = vrot.slane %v2607, 1
      %v2609 = vadd.f32 %v2607, %v2608
      %v2610 = vrot.slane %v2603, 4
      %v2611 = vadd.f32 %v2603, %v2610
      %v2612 = vrot.slane %v2611, 2
      %v2613 = vadd.f32 %v2611, %v2612
      %v2614 = vrot.slane %v2613, 1
      %v2615 = vadd.f32 %v2613, %v2614
      %v2616 = vmul.f32 %v2609, %v2402
      %v2617 = vmul.f32 %v2615, %v2402
      %v2618 = vsub.f32 %v2594, %v2616
      %v2619 = vsub.f32 %v2595, %v2617
      %v2620 = vmul.f32 %v2618, %v2618
      %v2621 = vmul.f32 %v2619, %v2619
      %v2622 = vsel %vm653, %v2620, 0.0
      %2623 = vadd.xlane.f32.xlu0 %v2622
      %v2624 = vpop.xlane.xlu0 %2623
      %v2625 = vsel %vm653, %v2621, 0.0
      %2626 = vadd.xlane.f32.xlu0 %v2625
      %v2627 = vpop.xlane.xlu0 %2626
      %v2628 = vmul.f32 %v2624, %v2387
      %v2629 = vmul.f32 %v2627, %v2387
      %v2630 = vrot.slane %v2628, 4
      %v2631 = vadd.f32 %v2628, %v2630
      %v2632 = vrot.slane %v2631, 2
      %v2633 = vadd.f32 %v2631, %v2632
      %v2634 = vrot.slane %v2633, 1
      %v2635 = vadd.f32 %v2633, %v2634
      %v2636 = vrot.slane %v2629, 4
      %v2637 = vadd.f32 %v2629, %v2636
      %v2638 = vrot.slane %v2637, 2
      %v2639 = vadd.f32 %v2637, %v2638
      %v2640 = vrot.slane %v2639, 1
      %v2641 = vadd.f32 %v2639, %v2640
      %v2642 = vmul.f32 %v2635, %v2402
      %v2643 = vmul.f32 %v2641, %v2402
      %v2644 = vadd.f32 %v2642, 1e-06
      %v2645 = vadd.f32 %v2643, 1e-06
      %v2646 = vrsqrt.pop %v2644
      %v2647 = vrsqrt.pop %v2645
      %v2648 = vmul.f32 %v2618, %v2646
      %v2649 = vmul.f32 %v2619, %v2647
      %v2650 = vmul.f32 %v2648, %v2376
      %v2651 = vmul.f32 %v2649, %v2376
      %v2652 = vadd.f32 %v2650, %v2378
      %v2653 = vadd.f32 %v2651, %v2378
      %2654 = vst.msk [vmem:[#allocation2] sm:$0xff] %vm653, %v2652
      %2655 = vst.msk [vmem:[#allocation2 + $0x8] sm:$0xff] %vm653, %v2653
      %p2656 = scmp.eq.s32.totalorder %s28, 1
      // Predicated region
      $region73: #{token_pretrained_forward.3} parent=67 // pred_check
        %p2657 = pneg %p2656
      $region74: #{token_pretrained_forward.3} parent=67 // pred_check_branch
        %2659 = sbr.rel (%p2657) target = $region76
      $region75: #{token_pretrained_forward.3} parent=67 // pred_region
        %2660 = vst.msk [vmem:[%s616] sm:$0xff] %vm653, %v2652
        %2661 = vst.msk [vmem:[%s616 + $0x8] sm:$0xff] %vm653, %v2653
      $region76: #{token_pretrained_forward.3} parent=67 // pred_fallthru
        _
      %s2662 = smul.u32 2, %s27
      %p2663 = scmp.lt.s32.totalorder %s2662, 3
      %s2664 = scalar_select %p2663, %s2662, 3
      %s2665 = smul.addr %s2664, 8
      %s2666 = scalar_lea.vmem %s12, %s2665
      // Predicated region
      $region77: #{token_pretrained_forward.3} parent=67 // pred_check
        %p2667 = pneg %p365
      $region78: #{token_pretrained_forward.3} parent=67 // pred_check_branch
        %2669 = sbr.rel (%p2667) target = $region80
      $region79: #{token_pretrained_forward.3} parent=67 // pred_region
        %s2670 = smul.u32 2, %s27
      $region80: #{token_pretrained_forward.3} parent=67 // pred_fallthru
        _
    $region68: #{token_pretrained_forward.3} parent=5 // pred_fallthru
      _
    %p2671 = scmp.le.s32.totalorder 2, %s18
    // Predicated region
    $region81: #{token_pretrained_forward.3} parent=5 // pred_check
      %p2672 = pneg %p2671
    $region82: #{token_pretrained_forward.3} parent=5 // pred_check_branch
      %2674 = sbr.rel (%p2672) target = $region84
    $region83: #{token_pretrained_forward.3} parent=5 // pred_region
      %s2675 = ssub.s32 %s18, 2
      // Predicated region
      $region85: #{token_pretrained_forward.3} parent=83 // pred_check
        %p2676 = pneg %p371
      $region86: #{token_pretrained_forward.3} parent=83 // pred_check_branch
        %2678 = sbr.rel (%p2676) target = $region88
      $region87: #{token_pretrained_forward.3} parent=83 // pred_region
        %s2679 = smul.u32 2, %s29
        %p2680 = scmp.lt.s32.totalorder %s2679, 3
        %s2681 = scalar_select %p2680, %s2679, 3
        %s2682 = smul.addr %s2681, 8
        %s2683 = scalar_lea.vmem %s12, %s2682
      $region88: #{token_pretrained_forward.3} parent=83 // pred_fallthru
        _
    $region84: #{token_pretrained_forward.3} parent=5 // pred_fallthru
      _
  $region6: #{token_pretrained_forward.3} parent=0 // loop_footer
    %s22 = sadd.s32 1, %s18
  $region7: #{token_pretrained_forward.3} parent=0 // loop_footer_branch
    %17 = sbr.rel target = $region3
  $region8: #{token_pretrained_forward.3} parent=0 // loop_exit
    _

</llo_original>
